<compile_context>
chip_gen: v7x
topology: tpu7x:2x2x1
jax: 0.10.0
libtpu: 0.0.40
codegen_flags: <defaults>
</compile_context>

<pallas_src>
import jax
import jax.numpy as jnp
import numpy as np
from jax import lax
from jax.experimental import pallas as pl
from jax.experimental.pallas import tpu as pltpu

# Hyperparameters implied by the module's __init__ (the TT_* constants).
TT_HIDDEN_SIZE = 32     # lstm_size; nn.LSTM(input_size=hidden_size, ...)
TT_EMBEDDING_SIZE = 32  # must equal hidden_size (LSTM input_size=hidden_size)
TT_NUM_LAYERS = 1
TT_NUM_CLASSES = 6
TT_OUTPUT_NODES = 10    # 'powerset': len(dataset.classes2slots)
SEQ_LEN = 8
VOCAB = 50
PAD_TOKEN = 0

LANE = 128              # lane width: pad tiny class dims so stores are lane-dense
VOCAB_PAD = 128         # padded vocab rows for the one-hot embedding matmul


def token_tagging_kernel(tok_ref,            # SMEM (S,) int32 token ids (scalar prefetch)
                         table_ref,          # (VOCAB_PAD, H) embedding table (zero-padded rows)
                         wih_ref,            # (H, 8H)  [W_ih_f.T | W_ih_b.T]
                         b_ref,              # (1, 8H)  [b_ih_f+b_hh_f | b_ih_b+b_hh_b]
                         whh_f_ref,          # (H, 4H)  W_hh_f.T
                         whh_b_ref,          # (H, 4H)  W_hh_b.T
                         w1f_ref, w1b_ref,   # (H, H) each: fc1.weight.T split fwd/bwd halves
                         w2_ref,             # (H, LANE)   fc2.weight.T zero-padded to 128 lanes
                         w3_ref,             # (LANE, LANE) fc3.weight.T zero-padded
                         probs_ref,          # out (S, LANE) f32: first O lanes = softmax probs
                         preds_ref,          # out (S, 1) int32: argmax over the O classes
                         enc_f_ref, enc_b_ref):  # scratch (S, H) each
    H = whh_f_ref.shape[0]
    S = enc_f_ref.shape[0]
    O = TT_OUTPUT_NODES
    f32 = jnp.float32

    def sigm(x):                     # 1/(1+exp(-x)) via EUP tanh (no f32 division)
        return 0.5 * (jnp.tanh(0.5 * x) + 1.0)

    # ---- embedding lookup: one-hot(tokens) @ table on the MXU ---------------------
    sub_col = lax.broadcasted_iota(jnp.int32, (S, 1), 0)
    tok_col = jnp.zeros((S, 1), jnp.int32)
    for t in range(S):                               # S=8, static: 8 tiny selects
        tok_col = jnp.where(sub_col == t, tok_ref[t], tok_col)
    onehot = (lax.broadcasted_iota(jnp.int32, (S, VOCAB_PAD), 1) == tok_col).astype(f32)
    emb = jnp.dot(onehot, table_ref[...], preferred_element_type=f32)       # (S, H)

    # ---- hoisted input-to-hidden projection for BOTH directions -------------------
    gin = jnp.dot(emb, wih_ref[...], preferred_element_type=f32) + b_ref[...]  # (S, 8H)
    gin_f = gin[:, :4 * H]                                                      # (S, 4H)
    gin_b = gin[:, 4 * H:]                                                      # (S, 4H)

    whh_f = whh_f_ref[...]           # hoist recurrent weight loads out of the loop
    whh_b = whh_b_ref[...]

    # ---- fused, fully unrolled bidirectional recurrence ---------------------------
    # Only h @ W_hh remains on the serialized chain; fwd/bwd chains are independent
    # and interleaved so the scheduler can overlap their MXU/EUP latencies.
    h_f = jnp.zeros((1, H), f32); c_f = jnp.zeros((1, H), f32)
    h_b = jnp.zeros((1, H), f32); c_b = jnp.zeros((1, H), f32)
    for t in range(S):
        tb = S - 1 - t
        g_f = gin_f[t:t + 1, :] + jnp.dot(h_f, whh_f, preferred_element_type=f32)
        g_b = gin_b[tb:tb + 1, :] + jnp.dot(h_b, whh_b, preferred_element_type=f32)
        # PyTorch gate order: i, f, g, o
        c_f = sigm(g_f[:, H:2 * H]) * c_f + sigm(g_f[:, :H]) * jnp.tanh(g_f[:, 2 * H:3 * H])
        h_f = sigm(g_f[:, 3 * H:]) * jnp.tanh(c_f)
        enc_f_ref[pl.ds(t, 1), :] = h_f
        c_b = sigm(g_b[:, H:2 * H]) * c_b + sigm(g_b[:, :H]) * jnp.tanh(g_b[:, 2 * H:3 * H])
        h_b = sigm(g_b[:, 3 * H:]) * jnp.tanh(c_b)
        enc_b_ref[pl.ds(tb, 1), :] = h_b

    # ---- EncoderRNN relu + fc1 (split matmul: relu commutes with the lane concat) -
    ef = jnp.maximum(enc_f_ref[...], 0.0)
    eb = jnp.maximum(enc_b_ref[...], 0.0)
    h1 = jnp.maximum(jnp.dot(ef, w1f_ref[...], preferred_element_type=f32)
                     + jnp.dot(eb, w1b_ref[...], preferred_element_type=f32), 0.0)
    # dropout is identity in eval mode
    l2 = jnp.dot(h1, w2_ref[...], preferred_element_type=f32)                  # (S, LANE)
    l3 = jnp.dot(jnp.maximum(l2, 0.0), w3_ref[...], preferred_element_type=f32)

    # ---- masked softmax over the first O lanes (lane-dense store) + argmax --------
    lane_idx = lax.broadcasted_iota(jnp.int32, (S, LANE), 1)
    valid = lane_idx < O
    lm = jnp.where(valid, l3, jnp.float32(-1e30))
    m = jnp.max(lm, axis=-1, keepdims=True)
    e = jnp.where(valid, jnp.exp(lm - m), 0.0)
    s = jnp.sum(e, axis=-1, keepdims=True)
    probs = e / s                                    # exact division (1e-4 tolerance)
    probs_ref[...] = probs

    pm = jnp.max(probs, axis=-1, keepdims=True)
    is_max = jnp.logical_and(probs == pm, valid)
    pred_f = jnp.min(jnp.where(is_max, lane_idx.astype(f32), jnp.float32(LANE)),
                     axis=-1, keepdims=True)         # first-max index, float reduce
    preds_ref[...] = pred_f.astype(jnp.int32)


def token_tagging_forward(tokens, p):
    """tokens: int32 (S,) -- corresponds to x['text'] before unsqueeze(0). Eval mode."""
    H, O = TT_HIDDEN_SIZE, TT_OUTPUT_NODES
    S = tokens.shape[0]

    # Weight prep (PyTorch layouts -> row-vector convention, lane-padded where tiny).
    table = jnp.zeros((VOCAB_PAD, H), jnp.float32).at[:VOCAB].set(
        p['embedding'].astype(jnp.float32))
    wih_cat = jnp.concatenate([p['w_ih_f'].T, p['w_ih_b'].T], axis=1)            # (H, 8H)
    b_cat = jnp.concatenate([p['b_ih_f'] + p['b_hh_f'],
                             p['b_ih_b'] + p['b_hh_b']])[None, :]                # (1, 8H)
    whh_f = p['w_hh_f'].T                                                        # (H, 4H)
    whh_b = p['w_hh_b'].T
    w1T = p['fc1'].T                                                             # (2H, H)
    w1f, w1b = w1T[:H], w1T[H:]
    w2 = jnp.zeros((H, LANE), jnp.float32).at[:, :O].set(p['fc2'].T)
    w3 = jnp.zeros((LANE, LANE), jnp.float32).at[:O, :O].set(p['fc3'].T)

    args = (table, wih_cat, b_cat, whh_f, whh_b, w1f, w1b, w2, w3)

    probs_pad, preds = pl.pallas_call(
        token_tagging_kernel,
        out_shape=(jax.ShapeDtypeStruct((S, LANE), jnp.float32),
                   jax.ShapeDtypeStruct((S, 1), jnp.int32)),
        grid_spec=pltpu.PrefetchScalarGridSpec(
            num_scalar_prefetch=1,                 # token ids -> SMEM
            grid=(1,),
            in_specs=[pl.BlockSpec(a.shape, lambda i, tok: (0, 0)) for a in args],
            out_specs=(pl.BlockSpec((S, LANE), lambda i, tok: (0, 0)),
                       pl.BlockSpec((S, 1), lambda i, tok: (0, 0))),
            scratch_shapes=[pltpu.VMEM((S, H), jnp.float32),
                            pltpu.VMEM((S, H), jnp.float32)],
        ),
        compiler_params=pltpu.CompilerParams(dimension_semantics=("arbitrary",)),
    )(tokens.astype(jnp.int32), *args)

    return probs_pad[:, :O], preds[:, 0]


def init_params(key):
    """Deterministic synthetic parameters with PyTorch layouts."""
    ks = jax.random.split(key, 12)
    sc = 0.1
    H, O = TT_HIDDEN_SIZE, TT_OUTPUT_NODES
    emb_table = sc * jax.random.normal(ks[0], (VOCAB, TT_EMBEDDING_SIZE), jnp.float32)
    emb_table = emb_table.at[PAD_TOKEN].set(0.0)  # padding_idx row is zero
    return dict(
        embedding=emb_table,
        # nn.LSTM layout: weight_ih (4H, in), weight_hh (4H, H), gate order i,f,g,o
        w_ih_f=sc * jax.random.normal(ks[1], (4 * H, H), jnp.float32),
        w_hh_f=sc * jax.random.normal(ks[2], (4 * H, H), jnp.float32),
        b_ih_f=sc * jax.random.normal(ks[3], (4 * H,), jnp.float32),
        b_hh_f=sc * jax.random.normal(ks[4], (4 * H,), jnp.float32),
        w_ih_b=sc * jax.random.normal(ks[5], (4 * H, H), jnp.float32),
        w_hh_b=sc * jax.random.normal(ks[6], (4 * H, H), jnp.float32),
        b_ih_b=sc * jax.random.normal(ks[7], (4 * H,), jnp.float32),
        b_hh_b=sc * jax.random.normal(ks[8], (4 * H,), jnp.float32),
        # nn.Linear layout: weight (out_features, in_features), bias=False
        fc1=sc * jax.random.normal(ks[9], (H, 2 * H), jnp.float32),
        fc2=sc * jax.random.normal(ks[10], (O, H), jnp.float32),
        fc3=sc * jax.random.normal(ks[11], (O, O), jnp.float32),
    )


def ref_forward(tokens, p):
    """Pure-JAX reference of the same forward pass (for correctness check)."""
    emb = p['embedding'][tokens]
    H = TT_HIDDEN_SIZE

    def sigm(x):
        return 1.0 / (1.0 + jnp.exp(-x))

    def run_dir(xs, w_ih, w_hh, b):
        h = jnp.zeros((H,), jnp.float32)
        c = jnp.zeros((H,), jnp.float32)
        outs = []
        for t in range(xs.shape[0]):
            gates = xs[t] @ w_ih.T + h @ w_hh.T + b
            i, f, g, o = jnp.split(gates, 4)
            i, f, g, o = sigm(i), sigm(f), jnp.tanh(g), sigm(o)
            c = f * c + i * g
            h = o * jnp.tanh(c)
            outs.append(h)
        return jnp.stack(outs)

    fwd = run_dir(emb, p['w_ih_f'], p['w_hh_f'], p['b_ih_f'] + p['b_hh_f'])
    bwd = run_dir(emb[::-1], p['w_ih_b'], p['w_hh_b'], p['b_ih_b'] + p['b_hh_b'])[::-1]
    enc = jnp.maximum(jnp.concatenate([fwd, bwd], axis=-1), 0.0)
    h1 = jnp.maximum(enc @ p['fc1'].T, 0.0)
    logits = h1 @ p['fc2'].T
    logits = jnp.maximum(logits, 0.0) @ p['fc3'].T
    return jax.nn.softmax(logits, axis=1)


if __name__ == "__main__":
    key = jax.random.PRNGKey(0)
    pkey, tkey = jax.random.split(key)
    params = init_params(pkey)
    # x['text']: a single instance's token ids (padding handled via PAD_TOKEN=0)
    tokens = jax.random.randint(tkey, (SEQ_LEN,), 1, VOCAB, dtype=jnp.int32)

    probs, preds = token_tagging_forward(tokens, params)
    jax.block_until_ready((probs, preds))

    ref = ref_forward(tokens, params)
    assert np.allclose(np.asarray(probs), np.asarray(ref), atol=1e-4, rtol=1e-4), \
        "Pallas kernel does not match JAX reference"
    assert np.array_equal(np.asarray(preds),
                          np.argmax(np.asarray(probs), axis=1)), \
        "In-kernel argmax does not match softmax output"
    print("KERNEL_OK")
</pallas_src>

<mosaic_0001>
module attributes {stable_mosaic.version = 11 : i64} {
  func.func @token_tagging_kernel(%arg0: i32, %arg1: memref<8xi32, #tpu.memory_space<smem>>, %arg2: memref<128x32xf32, #tpu.memory_space<vmem>>, %arg3: memref<32x256xf32, #tpu.memory_space<vmem>>, %arg4: memref<1x256xf32, #tpu.memory_space<vmem>>, %arg5: memref<32x128xf32, #tpu.memory_space<vmem>>, %arg6: memref<32x128xf32, #tpu.memory_space<vmem>>, %arg7: memref<32x32xf32, #tpu.memory_space<vmem>>, %arg8: memref<32x32xf32, #tpu.memory_space<vmem>>, %arg9: memref<32x128xf32, #tpu.memory_space<vmem>>, %arg10: memref<128x128xf32, #tpu.memory_space<vmem>>, %arg11: memref<8x128xf32, #tpu.memory_space<vmem>>, %arg12: memref<8x1xi32, #tpu.memory_space<vmem>>, %arg13: memref<8x32xf32, #tpu.memory_space<vmem>>, %arg14: memref<8x32xf32, #tpu.memory_space<vmem>>) attributes {dimension_semantics = [#tpu.dimension_semantics<arbitrary>], iteration_bounds = array<i64: 1>, scalar_prefetch = 1 : i64, scratch_operands = 2 : i64, tpu.core_type = #tpu.core_type<tc>, window_params = [{pipeline_mode = #tpu.pipeline_mode<synchronous>, transform_indices = @transform_0, window_bounds = array<i64: 128, 32>}, {pipeline_mode = #tpu.pipeline_mode<synchronous>, transform_indices = @transform_1, window_bounds = array<i64: 32, 256>}, {pipeline_mode = #tpu.pipeline_mode<synchronous>, transform_indices = @transform_2, window_bounds = array<i64: 1, 256>}, {pipeline_mode = #tpu.pipeline_mode<synchronous>, transform_indices = @transform_3, window_bounds = array<i64: 32, 128>}, {pipeline_mode = #tpu.pipeline_mode<synchronous>, transform_indices = @transform_4, window_bounds = array<i64: 32, 128>}, {pipeline_mode = #tpu.pipeline_mode<synchronous>, transform_indices = @transform_5, window_bounds = array<i64: 32, 32>}, {pipeline_mode = #tpu.pipeline_mode<synchronous>, transform_indices = @transform_6, window_bounds = array<i64: 32, 32>}, {pipeline_mode = #tpu.pipeline_mode<synchronous>, transform_indices = @transform_7, window_bounds = array<i64: 32, 128>}, {pipeline_mode = #tpu.pipeline_mode<synchronous>, transform_indices = @transform_8, window_bounds = array<i64: 128, 128>}, {pipeline_mode = #tpu.pipeline_mode<synchronous>, transform_indices = @transform_9, window_bounds = array<i64: 8, 128>}, {pipeline_mode = #tpu.pipeline_mode<synchronous>, transform_indices = @transform_10, window_bounds = array<i64: 8, 1>}]} {
    %0 = tpu.iota {dimensions = array<i32: 0>} : vector<8x1xi32>
    %c0_i32 = arith.constant 0 : i32
    %1 = vector.broadcast %c0_i32 : i32 to vector<8x1xi32>
    %c0_i32_0 = arith.constant 0 : i32
    %2 = vector.broadcast %c0_i32_0 : i32 to vector<8x1xi32>
    %3 = arith.cmpi eq, %0, %2 : vector<8x1xi32>
    %c0 = arith.constant 0 : index
    %4 = memref.load %arg1[%c0] : memref<8xi32, #tpu.memory_space<smem>>
    %5 = vector.broadcast %4 : i32 to vector<8x1xi32>
    %6 = arith.select %3, %5, %1 : vector<8x1xi1>, vector<8x1xi32>
    %c1_i32 = arith.constant 1 : i32
    %7 = vector.broadcast %c1_i32 : i32 to vector<8x1xi32>
    %8 = arith.cmpi eq, %0, %7 : vector<8x1xi32>
    %c1 = arith.constant 1 : index
    %9 = memref.load %arg1[%c1] : memref<8xi32, #tpu.memory_space<smem>>
    %10 = vector.broadcast %9 : i32 to vector<8x1xi32>
    %11 = arith.select %8, %10, %6 : vector<8x1xi1>, vector<8x1xi32>
    %c2_i32 = arith.constant 2 : i32
    %12 = vector.broadcast %c2_i32 : i32 to vector<8x1xi32>
    %13 = arith.cmpi eq, %0, %12 : vector<8x1xi32>
    %c2 = arith.constant 2 : index
    %14 = memref.load %arg1[%c2] : memref<8xi32, #tpu.memory_space<smem>>
    %15 = vector.broadcast %14 : i32 to vector<8x1xi32>
    %16 = arith.select %13, %15, %11 : vector<8x1xi1>, vector<8x1xi32>
    %c3_i32 = arith.constant 3 : i32
    %17 = vector.broadcast %c3_i32 : i32 to vector<8x1xi32>
    %18 = arith.cmpi eq, %0, %17 : vector<8x1xi32>
    %c3 = arith.constant 3 : index
    %19 = memref.load %arg1[%c3] : memref<8xi32, #tpu.memory_space<smem>>
    %20 = vector.broadcast %19 : i32 to vector<8x1xi32>
    %21 = arith.select %18, %20, %16 : vector<8x1xi1>, vector<8x1xi32>
    %c4_i32 = arith.constant 4 : i32
    %22 = vector.broadcast %c4_i32 : i32 to vector<8x1xi32>
    %23 = arith.cmpi eq, %0, %22 : vector<8x1xi32>
    %c4 = arith.constant 4 : index
    %24 = memref.load %arg1[%c4] : memref<8xi32, #tpu.memory_space<smem>>
    %25 = vector.broadcast %24 : i32 to vector<8x1xi32>
    %26 = arith.select %23, %25, %21 : vector<8x1xi1>, vector<8x1xi32>
    %c5_i32 = arith.constant 5 : i32
    %27 = vector.broadcast %c5_i32 : i32 to vector<8x1xi32>
    %28 = arith.cmpi eq, %0, %27 : vector<8x1xi32>
    %c5 = arith.constant 5 : index
    %29 = memref.load %arg1[%c5] : memref<8xi32, #tpu.memory_space<smem>>
    %30 = vector.broadcast %29 : i32 to vector<8x1xi32>
    %31 = arith.select %28, %30, %26 : vector<8x1xi1>, vector<8x1xi32>
    %c6_i32 = arith.constant 6 : i32
    %32 = vector.broadcast %c6_i32 : i32 to vector<8x1xi32>
    %33 = arith.cmpi eq, %0, %32 : vector<8x1xi32>
    %c6 = arith.constant 6 : index
    %34 = memref.load %arg1[%c6] : memref<8xi32, #tpu.memory_space<smem>>
    %35 = vector.broadcast %34 : i32 to vector<8x1xi32>
    %36 = arith.select %33, %35, %31 : vector<8x1xi1>, vector<8x1xi32>
    %c7_i32 = arith.constant 7 : i32
    %37 = vector.broadcast %c7_i32 : i32 to vector<8x1xi32>
    %38 = arith.cmpi eq, %0, %37 : vector<8x1xi32>
    %c7 = arith.constant 7 : index
    %39 = memref.load %arg1[%c7] : memref<8xi32, #tpu.memory_space<smem>>
    %40 = vector.broadcast %39 : i32 to vector<8x1xi32>
    %41 = arith.select %38, %40, %36 : vector<8x1xi1>, vector<8x1xi32>
    %42 = tpu.iota {dimensions = array<i32: 1>} : vector<8x128xi32>
    %43 = vector.broadcast %41 : vector<8x1xi32> to vector<8x128xi32>
    %44 = arith.cmpi eq, %42, %43 : vector<8x128xi32>
    %45 = arith.extui %44 : vector<8x128xi1> to vector<8x128xi32>
    %46 = arith.sitofp %45 : vector<8x128xi32> to vector<8x128xf32>
    %c0_1 = arith.constant 0 : index
    %c0_2 = arith.constant 0 : index
    %47 = vector.load %arg2[%c0_1, %c0_2] : memref<128x32xf32, #tpu.memory_space<vmem>>, vector<128x32xf32>
    %cst = arith.constant dense<0.000000e+00> : vector<8x32xf32>
    %48 = tpu.matmul %46, %47, %cst {dimension_numbers = #tpu.dot_dimension_numbers<[1], [0], [0], [1], [0, 0, 1, 1], [], []>} : vector<8x128xf32>, vector<128x32xf32>, vector<8x32xf32> -> vector<8x32xf32>
    %c0_3 = arith.constant 0 : index
    %c0_4 = arith.constant 0 : index
    %49 = vector.load %arg3[%c0_3, %c0_4] : memref<32x256xf32, #tpu.memory_space<vmem>>, vector<32x256xf32>
    %cst_5 = arith.constant dense<0.000000e+00> : vector<8x256xf32>
    %50 = tpu.matmul %48, %49, %cst_5 {dimension_numbers = #tpu.dot_dimension_numbers<[1], [0], [0], [1], [0, 0, 1, 1], [], []>} : vector<8x32xf32>, vector<32x256xf32>, vector<8x256xf32> -> vector<8x256xf32>
    %c0_6 = arith.constant 0 : index
    %c0_7 = arith.constant 0 : index
    %51 = vector.load %arg4[%c0_6, %c0_7] : memref<1x256xf32, #tpu.memory_space<vmem>>, vector<1x256xf32>
    %52 = vector.broadcast %51 : vector<1x256xf32> to vector<8x256xf32>
    %53 = arith.addf %50, %52 : vector<8x256xf32>
    %54 = vector.extract_strided_slice %53 {offsets = [0, 0], sizes = [8, 128], strides = [1, 1]} : vector<8x256xf32> to vector<8x128xf32>
    %55 = vector.extract_strided_slice %53 {offsets = [0, 128], sizes = [8, 128], strides = [1, 1]} : vector<8x256xf32> to vector<8x128xf32>
    %c0_8 = arith.constant 0 : index
    %c0_9 = arith.constant 0 : index
    %56 = vector.load %arg5[%c0_8, %c0_9] : memref<32x128xf32, #tpu.memory_space<vmem>>, vector<32x128xf32>
    %c0_10 = arith.constant 0 : index
    %c0_11 = arith.constant 0 : index
    %57 = vector.load %arg6[%c0_10, %c0_11] : memref<32x128xf32, #tpu.memory_space<vmem>>, vector<32x128xf32>
    %cst_12 = arith.constant 0.000000e+00 : f32
    %58 = vector.broadcast %cst_12 : f32 to vector<1x32xf32>
    %cst_13 = arith.constant 0.000000e+00 : f32
    %59 = vector.broadcast %cst_13 : f32 to vector<1x32xf32>
    %cst_14 = arith.constant 0.000000e+00 : f32
    %60 = vector.broadcast %cst_14 : f32 to vector<1x32xf32>
    %cst_15 = arith.constant 0.000000e+00 : f32
    %61 = vector.broadcast %cst_15 : f32 to vector<1x32xf32>
    %62 = vector.extract_strided_slice %54 {offsets = [0, 0], sizes = [1, 128], strides = [1, 1]} : vector<8x128xf32> to vector<1x128xf32>
    %cst_16 = arith.constant dense<0.000000e+00> : vector<1x128xf32>
    %63 = tpu.matmul %58, %56, %cst_16 {dimension_numbers = #tpu.dot_dimension_numbers<[1], [0], [0], [1], [0, 0, 1, 1], [], []>} : vector<1x32xf32>, vector<32x128xf32>, vector<1x128xf32> -> vector<1x128xf32>
    %64 = arith.addf %62, %63 : vector<1x128xf32>
    %65 = vector.extract_strided_slice %55 {offsets = [7, 0], sizes = [1, 128], strides = [1, 1]} : vector<8x128xf32> to vector<1x128xf32>
    %cst_17 = arith.constant dense<0.000000e+00> : vector<1x128xf32>
    %66 = tpu.matmul %60, %57, %cst_17 {dimension_numbers = #tpu.dot_dimension_numbers<[1], [0], [0], [1], [0, 0, 1, 1], [], []>} : vector<1x32xf32>, vector<32x128xf32>, vector<1x128xf32> -> vector<1x128xf32>
    %67 = arith.addf %65, %66 : vector<1x128xf32>
    %68 = vector.extract_strided_slice %64 {offsets = [0, 32], sizes = [1, 32], strides = [1, 1]} : vector<1x128xf32> to vector<1x32xf32>
    %cst_18 = arith.constant 5.000000e-01 : f32
    %69 = vector.broadcast %cst_18 : f32 to vector<1x32xf32>
    %70 = arith.mulf %69, %68 : vector<1x32xf32>
    %71 = math.tanh %70 : vector<1x32xf32>
    %cst_19 = arith.constant 1.000000e+00 : f32
    %72 = vector.broadcast %cst_19 : f32 to vector<1x32xf32>
    %73 = arith.addf %71, %72 : vector<1x32xf32>
    %cst_20 = arith.constant 5.000000e-01 : f32
    %74 = vector.broadcast %cst_20 : f32 to vector<1x32xf32>
    %75 = arith.mulf %74, %73 : vector<1x32xf32>
    %76 = arith.mulf %75, %59 : vector<1x32xf32>
    %77 = vector.extract_strided_slice %64 {offsets = [0, 0], sizes = [1, 32], strides = [1, 1]} : vector<1x128xf32> to vector<1x32xf32>
    %cst_21 = arith.constant 5.000000e-01 : f32
    %78 = vector.broadcast %cst_21 : f32 to vector<1x32xf32>
    %79 = arith.mulf %78, %77 : vector<1x32xf32>
    %80 = math.tanh %79 : vector<1x32xf32>
    %cst_22 = arith.constant 1.000000e+00 : f32
    %81 = vector.broadcast %cst_22 : f32 to vector<1x32xf32>
    %82 = arith.addf %80, %81 : vector<1x32xf32>
    %cst_23 = arith.constant 5.000000e-01 : f32
    %83 = vector.broadcast %cst_23 : f32 to vector<1x32xf32>
    %84 = arith.mulf %83, %82 : vector<1x32xf32>
    %85 = vector.extract_strided_slice %64 {offsets = [0, 64], sizes = [1, 32], strides = [1, 1]} : vector<1x128xf32> to vector<1x32xf32>
    %86 = math.tanh %85 : vector<1x32xf32>
    %87 = arith.mulf %84, %86 : vector<1x32xf32>
    %88 = arith.addf %76, %87 : vector<1x32xf32>
    %89 = vector.extract_strided_slice %64 {offsets = [0, 96], sizes = [1, 32], strides = [1, 1]} : vector<1x128xf32> to vector<1x32xf32>
    %cst_24 = arith.constant 5.000000e-01 : f32
    %90 = vector.broadcast %cst_24 : f32 to vector<1x32xf32>
    %91 = arith.mulf %90, %89 : vector<1x32xf32>
    %92 = math.tanh %91 : vector<1x32xf32>
    %cst_25 = arith.constant 1.000000e+00 : f32
    %93 = vector.broadcast %cst_25 : f32 to vector<1x32xf32>
    %94 = arith.addf %92, %93 : vector<1x32xf32>
    %cst_26 = arith.constant 5.000000e-01 : f32
    %95 = vector.broadcast %cst_26 : f32 to vector<1x32xf32>
    %96 = arith.mulf %95, %94 : vector<1x32xf32>
    %97 = math.tanh %88 : vector<1x32xf32>
    %98 = arith.mulf %96, %97 : vector<1x32xf32>
    %c0_27 = arith.constant 0 : index
    %c0_28 = arith.constant 0 : index
    %99 = vector.load %arg13[%c0_27, %c0_28] : memref<8x32xf32, #tpu.memory_space<vmem>>, vector<1x32xf32>
    tpu.vector_store %arg13[%c0_27, %c0_28], %98 {strides = array<i32>} : memref<8x32xf32, #tpu.memory_space<vmem>>, vector<1x32xf32>,
    %100 = vector.extract_strided_slice %67 {offsets = [0, 32], sizes = [1, 32], strides = [1, 1]} : vector<1x128xf32> to vector<1x32xf32>
    %cst_29 = arith.constant 5.000000e-01 : f32
    %101 = vector.broadcast %cst_29 : f32 to vector<1x32xf32>
    %102 = arith.mulf %101, %100 : vector<1x32xf32>
    %103 = math.tanh %102 : vector<1x32xf32>
    %cst_30 = arith.constant 1.000000e+00 : f32
    %104 = vector.broadcast %cst_30 : f32 to vector<1x32xf32>
    %105 = arith.addf %103, %104 : vector<1x32xf32>
    %cst_31 = arith.constant 5.000000e-01 : f32
    %106 = vector.broadcast %cst_31 : f32 to vector<1x32xf32>
    %107 = arith.mulf %106, %105 : vector<1x32xf32>
    %108 = arith.mulf %107, %61 : vector<1x32xf32>
    %109 = vector.extract_strided_slice %67 {offsets = [0, 0], sizes = [1, 32], strides = [1, 1]} : vector<1x128xf32> to vector<1x32xf32>
    %cst_32 = arith.constant 5.000000e-01 : f32
    %110 = vector.broadcast %cst_32 : f32 to vector<1x32xf32>
    %111 = arith.mulf %110, %109 : vector<1x32xf32>
    %112 = math.tanh %111 : vector<1x32xf32>
    %cst_33 = arith.constant 1.000000e+00 : f32
    %113 = vector.broadcast %cst_33 : f32 to vector<1x32xf32>
    %114 = arith.addf %112, %113 : vector<1x32xf32>
    %cst_34 = arith.constant 5.000000e-01 : f32
    %115 = vector.broadcast %cst_34 : f32 to vector<1x32xf32>
    %116 = arith.mulf %115, %114 : vector<1x32xf32>
    %117 = vector.extract_strided_slice %67 {offsets = [0, 64], sizes = [1, 32], strides = [1, 1]} : vector<1x128xf32> to vector<1x32xf32>
    %118 = math.tanh %117 : vector<1x32xf32>
    %119 = arith.mulf %116, %118 : vector<1x32xf32>
    %120 = arith.addf %108, %119 : vector<1x32xf32>
    %121 = vector.extract_strided_slice %67 {offsets = [0, 96], sizes = [1, 32], strides = [1, 1]} : vector<1x128xf32> to vector<1x32xf32>
    %cst_35 = arith.constant 5.000000e-01 : f32
    %122 = vector.broadcast %cst_35 : f32 to vector<1x32xf32>
    %123 = arith.mulf %122, %121 : vector<1x32xf32>
    %124 = math.tanh %123 : vector<1x32xf32>
    %cst_36 = arith.constant 1.000000e+00 : f32
    %125 = vector.broadcast %cst_36 : f32 to vector<1x32xf32>
    %126 = arith.addf %124, %125 : vector<1x32xf32>
    %cst_37 = arith.constant 5.000000e-01 : f32
    %127 = vector.broadcast %cst_37 : f32 to vector<1x32xf32>
    %128 = arith.mulf %127, %126 : vector<1x32xf32>
    %129 = math.tanh %120 : vector<1x32xf32>
    %130 = arith.mulf %128, %129 : vector<1x32xf32>
    %c7_38 = arith.constant 7 : index
    %c0_39 = arith.constant 0 : index
    %131 = vector.load %arg14[%c7_38, %c0_39] : memref<8x32xf32, #tpu.memory_space<vmem>>, vector<1x32xf32>
    tpu.vector_store %arg14[%c7_38, %c0_39], %130 {strides = array<i32>} : memref<8x32xf32, #tpu.memory_space<vmem>>, vector<1x32xf32>,
    %132 = vector.extract_strided_slice %54 {offsets = [1, 0], sizes = [1, 128], strides = [1, 1]} : vector<8x128xf32> to vector<1x128xf32>
    %cst_40 = arith.constant dense<0.000000e+00> : vector<1x128xf32>
    %133 = tpu.matmul %98, %56, %cst_40 {dimension_numbers = #tpu.dot_dimension_numbers<[1], [0], [0], [1], [0, 0, 1, 1], [], []>} : vector<1x32xf32>, vector<32x128xf32>, vector<1x128xf32> -> vector<1x128xf32>
    %134 = arith.addf %132, %133 : vector<1x128xf32>
    %135 = vector.extract_strided_slice %55 {offsets = [6, 0], sizes = [1, 128], strides = [1, 1]} : vector<8x128xf32> to vector<1x128xf32>
    %cst_41 = arith.constant dense<0.000000e+00> : vector<1x128xf32>
    %136 = tpu.matmul %130, %57, %cst_41 {dimension_numbers = #tpu.dot_dimension_numbers<[1], [0], [0], [1], [0, 0, 1, 1], [], []>} : vector<1x32xf32>, vector<32x128xf32>, vector<1x128xf32> -> vector<1x128xf32>
    %137 = arith.addf %135, %136 : vector<1x128xf32>
    %138 = vector.extract_strided_slice %134 {offsets = [0, 32], sizes = [1, 32], strides = [1, 1]} : vector<1x128xf32> to vector<1x32xf32>
    %cst_42 = arith.constant 5.000000e-01 : f32
    %139 = vector.broadcast %cst_42 : f32 to vector<1x32xf32>
    %140 = arith.mulf %139, %138 : vector<1x32xf32>
    %141 = math.tanh %140 : vector<1x32xf32>
    %cst_43 = arith.constant 1.000000e+00 : f32
    %142 = vector.broadcast %cst_43 : f32 to vector<1x32xf32>
    %143 = arith.addf %141, %142 : vector<1x32xf32>
    %cst_44 = arith.constant 5.000000e-01 : f32
    %144 = vector.broadcast %cst_44 : f32 to vector<1x32xf32>
    %145 = arith.mulf %144, %143 : vector<1x32xf32>
    %146 = arith.mulf %145, %88 : vector<1x32xf32>
    %147 = vector.extract_strided_slice %134 {offsets = [0, 0], sizes = [1, 32], strides = [1, 1]} : vector<1x128xf32> to vector<1x32xf32>
    %cst_45 = arith.constant 5.000000e-01 : f32
    %148 = vector.broadcast %cst_45 : f32 to vector<1x32xf32>
    %149 = arith.mulf %148, %147 : vector<1x32xf32>
    %150 = math.tanh %149 : vector<1x32xf32>
    %cst_46 = arith.constant 1.000000e+00 : f32
    %151 = vector.broadcast %cst_46 : f32 to vector<1x32xf32>
    %152 = arith.addf %150, %151 : vector<1x32xf32>
    %cst_47 = arith.constant 5.000000e-01 : f32
    %153 = vector.broadcast %cst_47 : f32 to vector<1x32xf32>
    %154 = arith.mulf %153, %152 : vector<1x32xf32>
    %155 = vector.extract_strided_slice %134 {offsets = [0, 64], sizes = [1, 32], strides = [1, 1]} : vector<1x128xf32> to vector<1x32xf32>
    %156 = math.tanh %155 : vector<1x32xf32>
    %157 = arith.mulf %154, %156 : vector<1x32xf32>
    %158 = arith.addf %146, %157 : vector<1x32xf32>
    %159 = vector.extract_strided_slice %134 {offsets = [0, 96], sizes = [1, 32], strides = [1, 1]} : vector<1x128xf32> to vector<1x32xf32>
    %cst_48 = arith.constant 5.000000e-01 : f32
    %160 = vector.broadcast %cst_48 : f32 to vector<1x32xf32>
    %161 = arith.mulf %160, %159 : vector<1x32xf32>
    %162 = math.tanh %161 : vector<1x32xf32>
    %cst_49 = arith.constant 1.000000e+00 : f32
    %163 = vector.broadcast %cst_49 : f32 to vector<1x32xf32>
    %164 = arith.addf %162, %163 : vector<1x32xf32>
    %cst_50 = arith.constant 5.000000e-01 : f32
    %165 = vector.broadcast %cst_50 : f32 to vector<1x32xf32>
    %166 = arith.mulf %165, %164 : vector<1x32xf32>
    %167 = math.tanh %158 : vector<1x32xf32>
    %168 = arith.mulf %166, %167 : vector<1x32xf32>
    %c1_51 = arith.constant 1 : index
    %c0_52 = arith.constant 0 : index
    %169 = vector.load %arg13[%c1_51, %c0_52] : memref<8x32xf32, #tpu.memory_space<vmem>>, vector<1x32xf32>
    tpu.vector_store %arg13[%c1_51, %c0_52], %168 {strides = array<i32>} : memref<8x32xf32, #tpu.memory_space<vmem>>, vector<1x32xf32>,
    %170 = vector.extract_strided_slice %137 {offsets = [0, 32], sizes = [1, 32], strides = [1, 1]} : vector<1x128xf32> to vector<1x32xf32>
    %cst_53 = arith.constant 5.000000e-01 : f32
    %171 = vector.broadcast %cst_53 : f32 to vector<1x32xf32>
    %172 = arith.mulf %171, %170 : vector<1x32xf32>
    %173 = math.tanh %172 : vector<1x32xf32>
    %cst_54 = arith.constant 1.000000e+00 : f32
    %174 = vector.broadcast %cst_54 : f32 to vector<1x32xf32>
    %175 = arith.addf %173, %174 : vector<1x32xf32>
    %cst_55 = arith.constant 5.000000e-01 : f32
    %176 = vector.broadcast %cst_55 : f32 to vector<1x32xf32>
    %177 = arith.mulf %176, %175 : vector<1x32xf32>
    %178 = arith.mulf %177, %120 : vector<1x32xf32>
    %179 = vector.extract_strided_slice %137 {offsets = [0, 0], sizes = [1, 32], strides = [1, 1]} : vector<1x128xf32> to vector<1x32xf32>
    %cst_56 = arith.constant 5.000000e-01 : f32
    %180 = vector.broadcast %cst_56 : f32 to vector<1x32xf32>
    %181 = arith.mulf %180, %179 : vector<1x32xf32>
    %182 = math.tanh %181 : vector<1x32xf32>
    %cst_57 = arith.constant 1.000000e+00 : f32
    %183 = vector.broadcast %cst_57 : f32 to vector<1x32xf32>
    %184 = arith.addf %182, %183 : vector<1x32xf32>
    %cst_58 = arith.constant 5.000000e-01 : f32
    %185 = vector.broadcast %cst_58 : f32 to vector<1x32xf32>
    %186 = arith.mulf %185, %184 : vector<1x32xf32>
    %187 = vector.extract_strided_slice %137 {offsets = [0, 64], sizes = [1, 32], strides = [1, 1]} : vector<1x128xf32> to vector<1x32xf32>
    %188 = math.tanh %187 : vector<1x32xf32>
    %189 = arith.mulf %186, %188 : vector<1x32xf32>
    %190 = arith.addf %178, %189 : vector<1x32xf32>
    %191 = vector.extract_strided_slice %137 {offsets = [0, 96], sizes = [1, 32], strides = [1, 1]} : vector<1x128xf32> to vector<1x32xf32>
    %cst_59 = arith.constant 5.000000e-01 : f32
    %192 = vector.broadcast %cst_59 : f32 to vector<1x32xf32>
    %193 = arith.mulf %192, %191 : vector<1x32xf32>
    %194 = math.tanh %193 : vector<1x32xf32>
    %cst_60 = arith.constant 1.000000e+00 : f32
    %195 = vector.broadcast %cst_60 : f32 to vector<1x32xf32>
    %196 = arith.addf %194, %195 : vector<1x32xf32>
    %cst_61 = arith.constant 5.000000e-01 : f32
    %197 = vector.broadcast %cst_61 : f32 to vector<1x32xf32>
    %198 = arith.mulf %197, %196 : vector<1x32xf32>
    %199 = math.tanh %190 : vector<1x32xf32>
    %200 = arith.mulf %198, %199 : vector<1x32xf32>
    %c6_62 = arith.constant 6 : index
    %c0_63 = arith.constant 0 : index
    %201 = vector.load %arg14[%c6_62, %c0_63] : memref<8x32xf32, #tpu.memory_space<vmem>>, vector<1x32xf32>
    tpu.vector_store %arg14[%c6_62, %c0_63], %200 {strides = array<i32>} : memref<8x32xf32, #tpu.memory_space<vmem>>, vector<1x32xf32>,
    %202 = vector.extract_strided_slice %54 {offsets = [2, 0], sizes = [1, 128], strides = [1, 1]} : vector<8x128xf32> to vector<1x128xf32>
    %cst_64 = arith.constant dense<0.000000e+00> : vector<1x128xf32>
    %203 = tpu.matmul %168, %56, %cst_64 {dimension_numbers = #tpu.dot_dimension_numbers<[1], [0], [0], [1], [0, 0, 1, 1], [], []>} : vector<1x32xf32>, vector<32x128xf32>, vector<1x128xf32> -> vector<1x128xf32>
    %204 = arith.addf %202, %203 : vector<1x128xf32>
    %205 = vector.extract_strided_slice %55 {offsets = [5, 0], sizes = [1, 128], strides = [1, 1]} : vector<8x128xf32> to vector<1x128xf32>
    %cst_65 = arith.constant dense<0.000000e+00> : vector<1x128xf32>
    %206 = tpu.matmul %200, %57, %cst_65 {dimension_numbers = #tpu.dot_dimension_numbers<[1], [0], [0], [1], [0, 0, 1, 1], [], []>} : vector<1x32xf32>, vector<32x128xf32>, vector<1x128xf32> -> vector<1x128xf32>
    %207 = arith.addf %205, %206 : vector<1x128xf32>
    %208 = vector.extract_strided_slice %204 {offsets = [0, 32], sizes = [1, 32], strides = [1, 1]} : vector<1x128xf32> to vector<1x32xf32>
    %cst_66 = arith.constant 5.000000e-01 : f32
    %209 = vector.broadcast %cst_66 : f32 to vector<1x32xf32>
    %210 = arith.mulf %209, %208 : vector<1x32xf32>
    %211 = math.tanh %210 : vector<1x32xf32>
    %cst_67 = arith.constant 1.000000e+00 : f32
    %212 = vector.broadcast %cst_67 : f32 to vector<1x32xf32>
    %213 = arith.addf %211, %212 : vector<1x32xf32>
    %cst_68 = arith.constant 5.000000e-01 : f32
    %214 = vector.broadcast %cst_68 : f32 to vector<1x32xf32>
    %215 = arith.mulf %214, %213 : vector<1x32xf32>
    %216 = arith.mulf %215, %158 : vector<1x32xf32>
    %217 = vector.extract_strided_slice %204 {offsets = [0, 0], sizes = [1, 32], strides = [1, 1]} : vector<1x128xf32> to vector<1x32xf32>
    %cst_69 = arith.constant 5.000000e-01 : f32
    %218 = vector.broadcast %cst_69 : f32 to vector<1x32xf32>
    %219 = arith.mulf %218, %217 : vector<1x32xf32>
    %220 = math.tanh %219 : vector<1x32xf32>
    %cst_70 = arith.constant 1.000000e+00 : f32
    %221 = vector.broadcast %cst_70 : f32 to vector<1x32xf32>
    %222 = arith.addf %220, %221 : vector<1x32xf32>
    %cst_71 = arith.constant 5.000000e-01 : f32
    %223 = vector.broadcast %cst_71 : f32 to vector<1x32xf32>
    %224 = arith.mulf %223, %222 : vector<1x32xf32>
    %225 = vector.extract_strided_slice %204 {offsets = [0, 64], sizes = [1, 32], strides = [1, 1]} : vector<1x128xf32> to vector<1x32xf32>
    %226 = math.tanh %225 : vector<1x32xf32>
    %227 = arith.mulf %224, %226 : vector<1x32xf32>
    %228 = arith.addf %216, %227 : vector<1x32xf32>
    %229 = vector.extract_strided_slice %204 {offsets = [0, 96], sizes = [1, 32], strides = [1, 1]} : vector<1x128xf32> to vector<1x32xf32>
    %cst_72 = arith.constant 5.000000e-01 : f32
    %230 = vector.broadcast %cst_72 : f32 to vector<1x32xf32>
    %231 = arith.mulf %230, %229 : vector<1x32xf32>
    %232 = math.tanh %231 : vector<1x32xf32>
    %cst_73 = arith.constant 1.000000e+00 : f32
    %233 = vector.broadcast %cst_73 : f32 to vector<1x32xf32>
    %234 = arith.addf %232, %233 : vector<1x32xf32>
    %cst_74 = arith.constant 5.000000e-01 : f32
    %235 = vector.broadcast %cst_74 : f32 to vector<1x32xf32>
    %236 = arith.mulf %235, %234 : vector<1x32xf32>
    %237 = math.tanh %228 : vector<1x32xf32>
    %238 = arith.mulf %236, %237 : vector<1x32xf32>
    %c2_75 = arith.constant 2 : index
    %c0_76 = arith.constant 0 : index
    %239 = vector.load %arg13[%c2_75, %c0_76] : memref<8x32xf32, #tpu.memory_space<vmem>>, vector<1x32xf32>
    tpu.vector_store %arg13[%c2_75, %c0_76], %238 {strides = array<i32>} : memref<8x32xf32, #tpu.memory_space<vmem>>, vector<1x32xf32>,
    %240 = vector.extract_strided_slice %207 {offsets = [0, 32], sizes = [1, 32], strides = [1, 1]} : vector<1x128xf32> to vector<1x32xf32>
    %cst_77 = arith.constant 5.000000e-01 : f32
    %241 = vector.broadcast %cst_77 : f32 to vector<1x32xf32>
    %242 = arith.mulf %241, %240 : vector<1x32xf32>
    %243 = math.tanh %242 : vector<1x32xf32>
    %cst_78 = arith.constant 1.000000e+00 : f32
    %244 = vector.broadcast %cst_78 : f32 to vector<1x32xf32>
    %245 = arith.addf %243, %244 : vector<1x32xf32>
    %cst_79 = arith.constant 5.000000e-01 : f32
    %246 = vector.broadcast %cst_79 : f32 to vector<1x32xf32>
    %247 = arith.mulf %246, %245 : vector<1x32xf32>
    %248 = arith.mulf %247, %190 : vector<1x32xf32>
    %249 = vector.extract_strided_slice %207 {offsets = [0, 0], sizes = [1, 32], strides = [1, 1]} : vector<1x128xf32> to vector<1x32xf32>
    %cst_80 = arith.constant 5.000000e-01 : f32
    %250 = vector.broadcast %cst_80 : f32 to vector<1x32xf32>
    %251 = arith.mulf %250, %249 : vector<1x32xf32>
    %252 = math.tanh %251 : vector<1x32xf32>
    %cst_81 = arith.constant 1.000000e+00 : f32
    %253 = vector.broadcast %cst_81 : f32 to vector<1x32xf32>
    %254 = arith.addf %252, %253 : vector<1x32xf32>
    %cst_82 = arith.constant 5.000000e-01 : f32
    %255 = vector.broadcast %cst_82 : f32 to vector<1x32xf32>
    %256 = arith.mulf %255, %254 : vector<1x32xf32>
    %257 = vector.extract_strided_slice %207 {offsets = [0, 64], sizes = [1, 32], strides = [1, 1]} : vector<1x128xf32> to vector<1x32xf32>
    %258 = math.tanh %257 : vector<1x32xf32>
    %259 = arith.mulf %256, %258 : vector<1x32xf32>
    %260 = arith.addf %248, %259 : vector<1x32xf32>
    %261 = vector.extract_strided_slice %207 {offsets = [0, 96], sizes = [1, 32], strides = [1, 1]} : vector<1x128xf32> to vector<1x32xf32>
    %cst_83 = arith.constant 5.000000e-01 : f32
    %262 = vector.broadcast %cst_83 : f32 to vector<1x32xf32>
    %263 = arith.mulf %262, %261 : vector<1x32xf32>
    %264 = math.tanh %263 : vector<1x32xf32>
    %cst_84 = arith.constant 1.000000e+00 : f32
    %265 = vector.broadcast %cst_84 : f32 to vector<1x32xf32>
    %266 = arith.addf %264, %265 : vector<1x32xf32>
    %cst_85 = arith.constant 5.000000e-01 : f32
    %267 = vector.broadcast %cst_85 : f32 to vector<1x32xf32>
    %268 = arith.mulf %267, %266 : vector<1x32xf32>
    %269 = math.tanh %260 : vector<1x32xf32>
    %270 = arith.mulf %268, %269 : vector<1x32xf32>
    %c5_86 = arith.constant 5 : index
    %c0_87 = arith.constant 0 : index
    %271 = vector.load %arg14[%c5_86, %c0_87] : memref<8x32xf32, #tpu.memory_space<vmem>>, vector<1x32xf32>
    tpu.vector_store %arg14[%c5_86, %c0_87], %270 {strides = array<i32>} : memref<8x32xf32, #tpu.memory_space<vmem>>, vector<1x32xf32>,
    %272 = vector.extract_strided_slice %54 {offsets = [3, 0], sizes = [1, 128], strides = [1, 1]} : vector<8x128xf32> to vector<1x128xf32>
    %cst_88 = arith.constant dense<0.000000e+00> : vector<1x128xf32>
    %273 = tpu.matmul %238, %56, %cst_88 {dimension_numbers = #tpu.dot_dimension_numbers<[1], [0], [0], [1], [0, 0, 1, 1], [], []>} : vector<1x32xf32>, vector<32x128xf32>, vector<1x128xf32> -> vector<1x128xf32>
    %274 = arith.addf %272, %273 : vector<1x128xf32>
    %275 = vector.extract_strided_slice %55 {offsets = [4, 0], sizes = [1, 128], strides = [1, 1]} : vector<8x128xf32> to vector<1x128xf32>
    %cst_89 = arith.constant dense<0.000000e+00> : vector<1x128xf32>
    %276 = tpu.matmul %270, %57, %cst_89 {dimension_numbers = #tpu.dot_dimension_numbers<[1], [0], [0], [1], [0, 0, 1, 1], [], []>} : vector<1x32xf32>, vector<32x128xf32>, vector<1x128xf32> -> vector<1x128xf32>
    %277 = arith.addf %275, %276 : vector<1x128xf32>
    %278 = vector.extract_strided_slice %274 {offsets = [0, 32], sizes = [1, 32], strides = [1, 1]} : vector<1x128xf32> to vector<1x32xf32>
    %cst_90 = arith.constant 5.000000e-01 : f32
    %279 = vector.broadcast %cst_90 : f32 to vector<1x32xf32>
    %280 = arith.mulf %279, %278 : vector<1x32xf32>
    %281 = math.tanh %280 : vector<1x32xf32>
    %cst_91 = arith.constant 1.000000e+00 : f32
    %282 = vector.broadcast %cst_91 : f32 to vector<1x32xf32>
    %283 = arith.addf %281, %282 : vector<1x32xf32>
    %cst_92 = arith.constant 5.000000e-01 : f32
    %284 = vector.broadcast %cst_92 : f32 to vector<1x32xf32>
    %285 = arith.mulf %284, %283 : vector<1x32xf32>
    %286 = arith.mulf %285, %228 : vector<1x32xf32>
    %287 = vector.extract_strided_slice %274 {offsets = [0, 0], sizes = [1, 32], strides = [1, 1]} : vector<1x128xf32> to vector<1x32xf32>
    %cst_93 = arith.constant 5.000000e-01 : f32
    %288 = vector.broadcast %cst_93 : f32 to vector<1x32xf32>
    %289 = arith.mulf %288, %287 : vector<1x32xf32>
    %290 = math.tanh %289 : vector<1x32xf32>
    %cst_94 = arith.constant 1.000000e+00 : f32
    %291 = vector.broadcast %cst_94 : f32 to vector<1x32xf32>
    %292 = arith.addf %290, %291 : vector<1x32xf32>
    %cst_95 = arith.constant 5.000000e-01 : f32
    %293 = vector.broadcast %cst_95 : f32 to vector<1x32xf32>
    %294 = arith.mulf %293, %292 : vector<1x32xf32>
    %295 = vector.extract_strided_slice %274 {offsets = [0, 64], sizes = [1, 32], strides = [1, 1]} : vector<1x128xf32> to vector<1x32xf32>
    %296 = math.tanh %295 : vector<1x32xf32>
    %297 = arith.mulf %294, %296 : vector<1x32xf32>
    %298 = arith.addf %286, %297 : vector<1x32xf32>
    %299 = vector.extract_strided_slice %274 {offsets = [0, 96], sizes = [1, 32], strides = [1, 1]} : vector<1x128xf32> to vector<1x32xf32>
    %cst_96 = arith.constant 5.000000e-01 : f32
    %300 = vector.broadcast %cst_96 : f32 to vector<1x32xf32>
    %301 = arith.mulf %300, %299 : vector<1x32xf32>
    %302 = math.tanh %301 : vector<1x32xf32>
    %cst_97 = arith.constant 1.000000e+00 : f32
    %303 = vector.broadcast %cst_97 : f32 to vector<1x32xf32>
    %304 = arith.addf %302, %303 : vector<1x32xf32>
    %cst_98 = arith.constant 5.000000e-01 : f32
    %305 = vector.broadcast %cst_98 : f32 to vector<1x32xf32>
    %306 = arith.mulf %305, %304 : vector<1x32xf32>
    %307 = math.tanh %298 : vector<1x32xf32>
    %308 = arith.mulf %306, %307 : vector<1x32xf32>
    %c3_99 = arith.constant 3 : index
    %c0_100 = arith.constant 0 : index
    %309 = vector.load %arg13[%c3_99, %c0_100] : memref<8x32xf32, #tpu.memory_space<vmem>>, vector<1x32xf32>
    tpu.vector_store %arg13[%c3_99, %c0_100], %308 {strides = array<i32>} : memref<8x32xf32, #tpu.memory_space<vmem>>, vector<1x32xf32>,
    %310 = vector.extract_strided_slice %277 {offsets = [0, 32], sizes = [1, 32], strides = [1, 1]} : vector<1x128xf32> to vector<1x32xf32>
    %cst_101 = arith.constant 5.000000e-01 : f32
    %311 = vector.broadcast %cst_101 : f32 to vector<1x32xf32>
    %312 = arith.mulf %311, %310 : vector<1x32xf32>
    %313 = math.tanh %312 : vector<1x32xf32>
    %cst_102 = arith.constant 1.000000e+00 : f32
    %314 = vector.broadcast %cst_102 : f32 to vector<1x32xf32>
    %315 = arith.addf %313, %314 : vector<1x32xf32>
    %cst_103 = arith.constant 5.000000e-01 : f32
    %316 = vector.broadcast %cst_103 : f32 to vector<1x32xf32>
    %317 = arith.mulf %316, %315 : vector<1x32xf32>
    %318 = arith.mulf %317, %260 : vector<1x32xf32>
    %319 = vector.extract_strided_slice %277 {offsets = [0, 0], sizes = [1, 32], strides = [1, 1]} : vector<1x128xf32> to vector<1x32xf32>
    %cst_104 = arith.constant 5.000000e-01 : f32
    %320 = vector.broadcast %cst_104 : f32 to vector<1x32xf32>
    %321 = arith.mulf %320, %319 : vector<1x32xf32>
    %322 = math.tanh %321 : vector<1x32xf32>
    %cst_105 = arith.constant 1.000000e+00 : f32
    %323 = vector.broadcast %cst_105 : f32 to vector<1x32xf32>
    %324 = arith.addf %322, %323 : vector<1x32xf32>
    %cst_106 = arith.constant 5.000000e-01 : f32
    %325 = vector.broadcast %cst_106 : f32 to vector<1x32xf32>
    %326 = arith.mulf %325, %324 : vector<1x32xf32>
    %327 = vector.extract_strided_slice %277 {offsets = [0, 64], sizes = [1, 32], strides = [1, 1]} : vector<1x128xf32> to vector<1x32xf32>
    %328 = math.tanh %327 : vector<1x32xf32>
    %329 = arith.mulf %326, %328 : vector<1x32xf32>
    %330 = arith.addf %318, %329 : vector<1x32xf32>
    %331 = vector.extract_strided_slice %277 {offsets = [0, 96], sizes = [1, 32], strides = [1, 1]} : vector<1x128xf32> to vector<1x32xf32>
    %cst_107 = arith.constant 5.000000e-01 : f32
    %332 = vector.broadcast %cst_107 : f32 to vector<1x32xf32>
    %333 = arith.mulf %332, %331 : vector<1x32xf32>
    %334 = math.tanh %333 : vector<1x32xf32>
    %cst_108 = arith.constant 1.000000e+00 : f32
    %335 = vector.broadcast %cst_108 : f32 to vector<1x32xf32>
    %336 = arith.addf %334, %335 : vector<1x32xf32>
    %cst_109 = arith.constant 5.000000e-01 : f32
    %337 = vector.broadcast %cst_109 : f32 to vector<1x32xf32>
    %338 = arith.mulf %337, %336 : vector<1x32xf32>
    %339 = math.tanh %330 : vector<1x32xf32>
    %340 = arith.mulf %338, %339 : vector<1x32xf32>
    %c4_110 = arith.constant 4 : index
    %c0_111 = arith.constant 0 : index
    %341 = vector.load %arg14[%c4_110, %c0_111] : memref<8x32xf32, #tpu.memory_space<vmem>>, vector<1x32xf32>
    tpu.vector_store %arg14[%c4_110, %c0_111], %340 {strides = array<i32>} : memref<8x32xf32, #tpu.memory_space<vmem>>, vector<1x32xf32>,
    %342 = vector.extract_strided_slice %54 {offsets = [4, 0], sizes = [1, 128], strides = [1, 1]} : vector<8x128xf32> to vector<1x128xf32>
    %cst_112 = arith.constant dense<0.000000e+00> : vector<1x128xf32>
    %343 = tpu.matmul %308, %56, %cst_112 {dimension_numbers = #tpu.dot_dimension_numbers<[1], [0], [0], [1], [0, 0, 1, 1], [], []>} : vector<1x32xf32>, vector<32x128xf32>, vector<1x128xf32> -> vector<1x128xf32>
    %344 = arith.addf %342, %343 : vector<1x128xf32>
    %345 = vector.extract_strided_slice %55 {offsets = [3, 0], sizes = [1, 128], strides = [1, 1]} : vector<8x128xf32> to vector<1x128xf32>
    %cst_113 = arith.constant dense<0.000000e+00> : vector<1x128xf32>
    %346 = tpu.matmul %340, %57, %cst_113 {dimension_numbers = #tpu.dot_dimension_numbers<[1], [0], [0], [1], [0, 0, 1, 1], [], []>} : vector<1x32xf32>, vector<32x128xf32>, vector<1x128xf32> -> vector<1x128xf32>
    %347 = arith.addf %345, %346 : vector<1x128xf32>
    %348 = vector.extract_strided_slice %344 {offsets = [0, 32], sizes = [1, 32], strides = [1, 1]} : vector<1x128xf32> to vector<1x32xf32>
    %cst_114 = arith.constant 5.000000e-01 : f32
    %349 = vector.broadcast %cst_114 : f32 to vector<1x32xf32>
    %350 = arith.mulf %349, %348 : vector<1x32xf32>
    %351 = math.tanh %350 : vector<1x32xf32>
    %cst_115 = arith.constant 1.000000e+00 : f32
    %352 = vector.broadcast %cst_115 : f32 to vector<1x32xf32>
    %353 = arith.addf %351, %352 : vector<1x32xf32>
    %cst_116 = arith.constant 5.000000e-01 : f32
    %354 = vector.broadcast %cst_116 : f32 to vector<1x32xf32>
    %355 = arith.mulf %354, %353 : vector<1x32xf32>
    %356 = arith.mulf %355, %298 : vector<1x32xf32>
    %357 = vector.extract_strided_slice %344 {offsets = [0, 0], sizes = [1, 32], strides = [1, 1]} : vector<1x128xf32> to vector<1x32xf32>
    %cst_117 = arith.constant 5.000000e-01 : f32
    %358 = vector.broadcast %cst_117 : f32 to vector<1x32xf32>
    %359 = arith.mulf %358, %357 : vector<1x32xf32>
    %360 = math.tanh %359 : vector<1x32xf32>
    %cst_118 = arith.constant 1.000000e+00 : f32
    %361 = vector.broadcast %cst_118 : f32 to vector<1x32xf32>
    %362 = arith.addf %360, %361 : vector<1x32xf32>
    %cst_119 = arith.constant 5.000000e-01 : f32
    %363 = vector.broadcast %cst_119 : f32 to vector<1x32xf32>
    %364 = arith.mulf %363, %362 : vector<1x32xf32>
    %365 = vector.extract_strided_slice %344 {offsets = [0, 64], sizes = [1, 32], strides = [1, 1]} : vector<1x128xf32> to vector<1x32xf32>
    %366 = math.tanh %365 : vector<1x32xf32>
    %367 = arith.mulf %364, %366 : vector<1x32xf32>
    %368 = arith.addf %356, %367 : vector<1x32xf32>
    %369 = vector.extract_strided_slice %344 {offsets = [0, 96], sizes = [1, 32], strides = [1, 1]} : vector<1x128xf32> to vector<1x32xf32>
    %cst_120 = arith.constant 5.000000e-01 : f32
    %370 = vector.broadcast %cst_120 : f32 to vector<1x32xf32>
    %371 = arith.mulf %370, %369 : vector<1x32xf32>
    %372 = math.tanh %371 : vector<1x32xf32>
    %cst_121 = arith.constant 1.000000e+00 : f32
    %373 = vector.broadcast %cst_121 : f32 to vector<1x32xf32>
    %374 = arith.addf %372, %373 : vector<1x32xf32>
    %cst_122 = arith.constant 5.000000e-01 : f32
    %375 = vector.broadcast %cst_122 : f32 to vector<1x32xf32>
    %376 = arith.mulf %375, %374 : vector<1x32xf32>
    %377 = math.tanh %368 : vector<1x32xf32>
    %378 = arith.mulf %376, %377 : vector<1x32xf32>
    %c4_123 = arith.constant 4 : index
    %c0_124 = arith.constant 0 : index
    %379 = vector.load %arg13[%c4_123, %c0_124] : memref<8x32xf32, #tpu.memory_space<vmem>>, vector<1x32xf32>
    tpu.vector_store %arg13[%c4_123, %c0_124], %378 {strides = array<i32>} : memref<8x32xf32, #tpu.memory_space<vmem>>, vector<1x32xf32>,
    %380 = vector.extract_strided_slice %347 {offsets = [0, 32], sizes = [1, 32], strides = [1, 1]} : vector<1x128xf32> to vector<1x32xf32>
    %cst_125 = arith.constant 5.000000e-01 : f32
    %381 = vector.broadcast %cst_125 : f32 to vector<1x32xf32>
    %382 = arith.mulf %381, %380 : vector<1x32xf32>
    %383 = math.tanh %382 : vector<1x32xf32>
    %cst_126 = arith.constant 1.000000e+00 : f32
    %384 = vector.broadcast %cst_126 : f32 to vector<1x32xf32>
    %385 = arith.addf %383, %384 : vector<1x32xf32>
    %cst_127 = arith.constant 5.000000e-01 : f32
    %386 = vector.broadcast %cst_127 : f32 to vector<1x32xf32>
    %387 = arith.mulf %386, %385 : vector<1x32xf32>
    %388 = arith.mulf %387, %330 : vector<1x32xf32>
    %389 = vector.extract_strided_slice %347 {offsets = [0, 0], sizes = [1, 32], strides = [1, 1]} : vector<1x128xf32> to vector<1x32xf32>
    %cst_128 = arith.constant 5.000000e-01 : f32
    %390 = vector.broadcast %cst_128 : f32 to vector<1x32xf32>
    %391 = arith.mulf %390, %389 : vector<1x32xf32>
    %392 = math.tanh %391 : vector<1x32xf32>
    %cst_129 = arith.constant 1.000000e+00 : f32
    %393 = vector.broadcast %cst_129 : f32 to vector<1x32xf32>
    %394 = arith.addf %392, %393 : vector<1x32xf32>
    %cst_130 = arith.constant 5.000000e-01 : f32
    %395 = vector.broadcast %cst_130 : f32 to vector<1x32xf32>
    %396 = arith.mulf %395, %394 : vector<1x32xf32>
    %397 = vector.extract_strided_slice %347 {offsets = [0, 64], sizes = [1, 32], strides = [1, 1]} : vector<1x128xf32> to vector<1x32xf32>
    %398 = math.tanh %397 : vector<1x32xf32>
    %399 = arith.mulf %396, %398 : vector<1x32xf32>
    %400 = arith.addf %388, %399 : vector<1x32xf32>
    %401 = vector.extract_strided_slice %347 {offsets = [0, 96], sizes = [1, 32], strides = [1, 1]} : vector<1x128xf32> to vector<1x32xf32>
    %cst_131 = arith.constant 5.000000e-01 : f32
    %402 = vector.broadcast %cst_131 : f32 to vector<1x32xf32>
    %403 = arith.mulf %402, %401 : vector<1x32xf32>
    %404 = math.tanh %403 : vector<1x32xf32>
    %cst_132 = arith.constant 1.000000e+00 : f32
    %405 = vector.broadcast %cst_132 : f32 to vector<1x32xf32>
    %406 = arith.addf %404, %405 : vector<1x32xf32>
    %cst_133 = arith.constant 5.000000e-01 : f32
    %407 = vector.broadcast %cst_133 : f32 to vector<1x32xf32>
    %408 = arith.mulf %407, %406 : vector<1x32xf32>
    %409 = math.tanh %400 : vector<1x32xf32>
    %410 = arith.mulf %408, %409 : vector<1x32xf32>
    %c3_134 = arith.constant 3 : index
    %c0_135 = arith.constant 0 : index
    %411 = vector.load %arg14[%c3_134, %c0_135] : memref<8x32xf32, #tpu.memory_space<vmem>>, vector<1x32xf32>
    tpu.vector_store %arg14[%c3_134, %c0_135], %410 {strides = array<i32>} : memref<8x32xf32, #tpu.memory_space<vmem>>, vector<1x32xf32>,
    %412 = vector.extract_strided_slice %54 {offsets = [5, 0], sizes = [1, 128], strides = [1, 1]} : vector<8x128xf32> to vector<1x128xf32>
    %cst_136 = arith.constant dense<0.000000e+00> : vector<1x128xf32>
    %413 = tpu.matmul %378, %56, %cst_136 {dimension_numbers = #tpu.dot_dimension_numbers<[1], [0], [0], [1], [0, 0, 1, 1], [], []>} : vector<1x32xf32>, vector<32x128xf32>, vector<1x128xf32> -> vector<1x128xf32>
    %414 = arith.addf %412, %413 : vector<1x128xf32>
    %415 = vector.extract_strided_slice %55 {offsets = [2, 0], sizes = [1, 128], strides = [1, 1]} : vector<8x128xf32> to vector<1x128xf32>
    %cst_137 = arith.constant dense<0.000000e+00> : vector<1x128xf32>
    %416 = tpu.matmul %410, %57, %cst_137 {dimension_numbers = #tpu.dot_dimension_numbers<[1], [0], [0], [1], [0, 0, 1, 1], [], []>} : vector<1x32xf32>, vector<32x128xf32>, vector<1x128xf32> -> vector<1x128xf32>
    %417 = arith.addf %415, %416 : vector<1x128xf32>
    %418 = vector.extract_strided_slice %414 {offsets = [0, 32], sizes = [1, 32], strides = [1, 1]} : vector<1x128xf32> to vector<1x32xf32>
    %cst_138 = arith.constant 5.000000e-01 : f32
    %419 = vector.broadcast %cst_138 : f32 to vector<1x32xf32>
    %420 = arith.mulf %419, %418 : vector<1x32xf32>
    %421 = math.tanh %420 : vector<1x32xf32>
    %cst_139 = arith.constant 1.000000e+00 : f32
    %422 = vector.broadcast %cst_139 : f32 to vector<1x32xf32>
    %423 = arith.addf %421, %422 : vector<1x32xf32>
    %cst_140 = arith.constant 5.000000e-01 : f32
    %424 = vector.broadcast %cst_140 : f32 to vector<1x32xf32>
    %425 = arith.mulf %424, %423 : vector<1x32xf32>
    %426 = arith.mulf %425, %368 : vector<1x32xf32>
    %427 = vector.extract_strided_slice %414 {offsets = [0, 0], sizes = [1, 32], strides = [1, 1]} : vector<1x128xf32> to vector<1x32xf32>
    %cst_141 = arith.constant 5.000000e-01 : f32
    %428 = vector.broadcast %cst_141 : f32 to vector<1x32xf32>
    %429 = arith.mulf %428, %427 : vector<1x32xf32>
    %430 = math.tanh %429 : vector<1x32xf32>
    %cst_142 = arith.constant 1.000000e+00 : f32
    %431 = vector.broadcast %cst_142 : f32 to vector<1x32xf32>
    %432 = arith.addf %430, %431 : vector<1x32xf32>
    %cst_143 = arith.constant 5.000000e-01 : f32
    %433 = vector.broadcast %cst_143 : f32 to vector<1x32xf32>
    %434 = arith.mulf %433, %432 : vector<1x32xf32>
    %435 = vector.extract_strided_slice %414 {offsets = [0, 64], sizes = [1, 32], strides = [1, 1]} : vector<1x128xf32> to vector<1x32xf32>
    %436 = math.tanh %435 : vector<1x32xf32>
    %437 = arith.mulf %434, %436 : vector<1x32xf32>
    %438 = arith.addf %426, %437 : vector<1x32xf32>
    %439 = vector.extract_strided_slice %414 {offsets = [0, 96], sizes = [1, 32], strides = [1, 1]} : vector<1x128xf32> to vector<1x32xf32>
    %cst_144 = arith.constant 5.000000e-01 : f32
    %440 = vector.broadcast %cst_144 : f32 to vector<1x32xf32>
    %441 = arith.mulf %440, %439 : vector<1x32xf32>
    %442 = math.tanh %441 : vector<1x32xf32>
    %cst_145 = arith.constant 1.000000e+00 : f32
    %443 = vector.broadcast %cst_145 : f32 to vector<1x32xf32>
    %444 = arith.addf %442, %443 : vector<1x32xf32>
    %cst_146 = arith.constant 5.000000e-01 : f32
    %445 = vector.broadcast %cst_146 : f32 to vector<1x32xf32>
    %446 = arith.mulf %445, %444 : vector<1x32xf32>
    %447 = math.tanh %438 : vector<1x32xf32>
    %448 = arith.mulf %446, %447 : vector<1x32xf32>
    %c5_147 = arith.constant 5 : index
    %c0_148 = arith.constant 0 : index
    %449 = vector.load %arg13[%c5_147, %c0_148] : memref<8x32xf32, #tpu.memory_space<vmem>>, vector<1x32xf32>
    tpu.vector_store %arg13[%c5_147, %c0_148], %448 {strides = array<i32>} : memref<8x32xf32, #tpu.memory_space<vmem>>, vector<1x32xf32>,
    %450 = vector.extract_strided_slice %417 {offsets = [0, 32], sizes = [1, 32], strides = [1, 1]} : vector<1x128xf32> to vector<1x32xf32>
    %cst_149 = arith.constant 5.000000e-01 : f32
    %451 = vector.broadcast %cst_149 : f32 to vector<1x32xf32>
    %452 = arith.mulf %451, %450 : vector<1x32xf32>
    %453 = math.tanh %452 : vector<1x32xf32>
    %cst_150 = arith.constant 1.000000e+00 : f32
    %454 = vector.broadcast %cst_150 : f32 to vector<1x32xf32>
    %455 = arith.addf %453, %454 : vector<1x32xf32>
    %cst_151 = arith.constant 5.000000e-01 : f32
    %456 = vector.broadcast %cst_151 : f32 to vector<1x32xf32>
    %457 = arith.mulf %456, %455 : vector<1x32xf32>
    %458 = arith.mulf %457, %400 : vector<1x32xf32>
    %459 = vector.extract_strided_slice %417 {offsets = [0, 0], sizes = [1, 32], strides = [1, 1]} : vector<1x128xf32> to vector<1x32xf32>
    %cst_152 = arith.constant 5.000000e-01 : f32
    %460 = vector.broadcast %cst_152 : f32 to vector<1x32xf32>
    %461 = arith.mulf %460, %459 : vector<1x32xf32>
    %462 = math.tanh %461 : vector<1x32xf32>
    %cst_153 = arith.constant 1.000000e+00 : f32
    %463 = vector.broadcast %cst_153 : f32 to vector<1x32xf32>
    %464 = arith.addf %462, %463 : vector<1x32xf32>
    %cst_154 = arith.constant 5.000000e-01 : f32
    %465 = vector.broadcast %cst_154 : f32 to vector<1x32xf32>
    %466 = arith.mulf %465, %464 : vector<1x32xf32>
    %467 = vector.extract_strided_slice %417 {offsets = [0, 64], sizes = [1, 32], strides = [1, 1]} : vector<1x128xf32> to vector<1x32xf32>
    %468 = math.tanh %467 : vector<1x32xf32>
    %469 = arith.mulf %466, %468 : vector<1x32xf32>
    %470 = arith.addf %458, %469 : vector<1x32xf32>
    %471 = vector.extract_strided_slice %417 {offsets = [0, 96], sizes = [1, 32], strides = [1, 1]} : vector<1x128xf32> to vector<1x32xf32>
    %cst_155 = arith.constant 5.000000e-01 : f32
    %472 = vector.broadcast %cst_155 : f32 to vector<1x32xf32>
    %473 = arith.mulf %472, %471 : vector<1x32xf32>
    %474 = math.tanh %473 : vector<1x32xf32>
    %cst_156 = arith.constant 1.000000e+00 : f32
    %475 = vector.broadcast %cst_156 : f32 to vector<1x32xf32>
    %476 = arith.addf %474, %475 : vector<1x32xf32>
    %cst_157 = arith.constant 5.000000e-01 : f32
    %477 = vector.broadcast %cst_157 : f32 to vector<1x32xf32>
    %478 = arith.mulf %477, %476 : vector<1x32xf32>
    %479 = math.tanh %470 : vector<1x32xf32>
    %480 = arith.mulf %478, %479 : vector<1x32xf32>
    %c2_158 = arith.constant 2 : index
    %c0_159 = arith.constant 0 : index
    %481 = vector.load %arg14[%c2_158, %c0_159] : memref<8x32xf32, #tpu.memory_space<vmem>>, vector<1x32xf32>
    tpu.vector_store %arg14[%c2_158, %c0_159], %480 {strides = array<i32>} : memref<8x32xf32, #tpu.memory_space<vmem>>, vector<1x32xf32>,
    %482 = vector.extract_strided_slice %54 {offsets = [6, 0], sizes = [1, 128], strides = [1, 1]} : vector<8x128xf32> to vector<1x128xf32>
    %cst_160 = arith.constant dense<0.000000e+00> : vector<1x128xf32>
    %483 = tpu.matmul %448, %56, %cst_160 {dimension_numbers = #tpu.dot_dimension_numbers<[1], [0], [0], [1], [0, 0, 1, 1], [], []>} : vector<1x32xf32>, vector<32x128xf32>, vector<1x128xf32> -> vector<1x128xf32>
    %484 = arith.addf %482, %483 : vector<1x128xf32>
    %485 = vector.extract_strided_slice %55 {offsets = [1, 0], sizes = [1, 128], strides = [1, 1]} : vector<8x128xf32> to vector<1x128xf32>
    %cst_161 = arith.constant dense<0.000000e+00> : vector<1x128xf32>
    %486 = tpu.matmul %480, %57, %cst_161 {dimension_numbers = #tpu.dot_dimension_numbers<[1], [0], [0], [1], [0, 0, 1, 1], [], []>} : vector<1x32xf32>, vector<32x128xf32>, vector<1x128xf32> -> vector<1x128xf32>
    %487 = arith.addf %485, %486 : vector<1x128xf32>
    %488 = vector.extract_strided_slice %484 {offsets = [0, 32], sizes = [1, 32], strides = [1, 1]} : vector<1x128xf32> to vector<1x32xf32>
    %cst_162 = arith.constant 5.000000e-01 : f32
    %489 = vector.broadcast %cst_162 : f32 to vector<1x32xf32>
    %490 = arith.mulf %489, %488 : vector<1x32xf32>
    %491 = math.tanh %490 : vector<1x32xf32>
    %cst_163 = arith.constant 1.000000e+00 : f32
    %492 = vector.broadcast %cst_163 : f32 to vector<1x32xf32>
    %493 = arith.addf %491, %492 : vector<1x32xf32>
    %cst_164 = arith.constant 5.000000e-01 : f32
    %494 = vector.broadcast %cst_164 : f32 to vector<1x32xf32>
    %495 = arith.mulf %494, %493 : vector<1x32xf32>
    %496 = arith.mulf %495, %438 : vector<1x32xf32>
    %497 = vector.extract_strided_slice %484 {offsets = [0, 0], sizes = [1, 32], strides = [1, 1]} : vector<1x128xf32> to vector<1x32xf32>
    %cst_165 = arith.constant 5.000000e-01 : f32
    %498 = vector.broadcast %cst_165 : f32 to vector<1x32xf32>
    %499 = arith.mulf %498, %497 : vector<1x32xf32>
    %500 = math.tanh %499 : vector<1x32xf32>
    %cst_166 = arith.constant 1.000000e+00 : f32
    %501 = vector.broadcast %cst_166 : f32 to vector<1x32xf32>
    %502 = arith.addf %500, %501 : vector<1x32xf32>
    %cst_167 = arith.constant 5.000000e-01 : f32
    %503 = vector.broadcast %cst_167 : f32 to vector<1x32xf32>
    %504 = arith.mulf %503, %502 : vector<1x32xf32>
    %505 = vector.extract_strided_slice %484 {offsets = [0, 64], sizes = [1, 32], strides = [1, 1]} : vector<1x128xf32> to vector<1x32xf32>
    %506 = math.tanh %505 : vector<1x32xf32>
    %507 = arith.mulf %504, %506 : vector<1x32xf32>
    %508 = arith.addf %496, %507 : vector<1x32xf32>
    %509 = vector.extract_strided_slice %484 {offsets = [0, 96], sizes = [1, 32], strides = [1, 1]} : vector<1x128xf32> to vector<1x32xf32>
    %cst_168 = arith.constant 5.000000e-01 : f32
    %510 = vector.broadcast %cst_168 : f32 to vector<1x32xf32>
    %511 = arith.mulf %510, %509 : vector<1x32xf32>
    %512 = math.tanh %511 : vector<1x32xf32>
    %cst_169 = arith.constant 1.000000e+00 : f32
    %513 = vector.broadcast %cst_169 : f32 to vector<1x32xf32>
    %514 = arith.addf %512, %513 : vector<1x32xf32>
    %cst_170 = arith.constant 5.000000e-01 : f32
    %515 = vector.broadcast %cst_170 : f32 to vector<1x32xf32>
    %516 = arith.mulf %515, %514 : vector<1x32xf32>
    %517 = math.tanh %508 : vector<1x32xf32>
    %518 = arith.mulf %516, %517 : vector<1x32xf32>
    %c6_171 = arith.constant 6 : index
    %c0_172 = arith.constant 0 : index
    %519 = vector.load %arg13[%c6_171, %c0_172] : memref<8x32xf32, #tpu.memory_space<vmem>>, vector<1x32xf32>
    tpu.vector_store %arg13[%c6_171, %c0_172], %518 {strides = array<i32>} : memref<8x32xf32, #tpu.memory_space<vmem>>, vector<1x32xf32>,
    %520 = vector.extract_strided_slice %487 {offsets = [0, 32], sizes = [1, 32], strides = [1, 1]} : vector<1x128xf32> to vector<1x32xf32>
    %cst_173 = arith.constant 5.000000e-01 : f32
    %521 = vector.broadcast %cst_173 : f32 to vector<1x32xf32>
    %522 = arith.mulf %521, %520 : vector<1x32xf32>
    %523 = math.tanh %522 : vector<1x32xf32>
    %cst_174 = arith.constant 1.000000e+00 : f32
    %524 = vector.broadcast %cst_174 : f32 to vector<1x32xf32>
    %525 = arith.addf %523, %524 : vector<1x32xf32>
    %cst_175 = arith.constant 5.000000e-01 : f32
    %526 = vector.broadcast %cst_175 : f32 to vector<1x32xf32>
    %527 = arith.mulf %526, %525 : vector<1x32xf32>
    %528 = arith.mulf %527, %470 : vector<1x32xf32>
    %529 = vector.extract_strided_slice %487 {offsets = [0, 0], sizes = [1, 32], strides = [1, 1]} : vector<1x128xf32> to vector<1x32xf32>
    %cst_176 = arith.constant 5.000000e-01 : f32
    %530 = vector.broadcast %cst_176 : f32 to vector<1x32xf32>
    %531 = arith.mulf %530, %529 : vector<1x32xf32>
    %532 = math.tanh %531 : vector<1x32xf32>
    %cst_177 = arith.constant 1.000000e+00 : f32
    %533 = vector.broadcast %cst_177 : f32 to vector<1x32xf32>
    %534 = arith.addf %532, %533 : vector<1x32xf32>
    %cst_178 = arith.constant 5.000000e-01 : f32
    %535 = vector.broadcast %cst_178 : f32 to vector<1x32xf32>
    %536 = arith.mulf %535, %534 : vector<1x32xf32>
    %537 = vector.extract_strided_slice %487 {offsets = [0, 64], sizes = [1, 32], strides = [1, 1]} : vector<1x128xf32> to vector<1x32xf32>
    %538 = math.tanh %537 : vector<1x32xf32>
    %539 = arith.mulf %536, %538 : vector<1x32xf32>
    %540 = arith.addf %528, %539 : vector<1x32xf32>
    %541 = vector.extract_strided_slice %487 {offsets = [0, 96], sizes = [1, 32], strides = [1, 1]} : vector<1x128xf32> to vector<1x32xf32>
    %cst_179 = arith.constant 5.000000e-01 : f32
    %542 = vector.broadcast %cst_179 : f32 to vector<1x32xf32>
    %543 = arith.mulf %542, %541 : vector<1x32xf32>
    %544 = math.tanh %543 : vector<1x32xf32>
    %cst_180 = arith.constant 1.000000e+00 : f32
    %545 = vector.broadcast %cst_180 : f32 to vector<1x32xf32>
    %546 = arith.addf %544, %545 : vector<1x32xf32>
    %cst_181 = arith.constant 5.000000e-01 : f32
    %547 = vector.broadcast %cst_181 : f32 to vector<1x32xf32>
    %548 = arith.mulf %547, %546 : vector<1x32xf32>
    %549 = math.tanh %540 : vector<1x32xf32>
    %550 = arith.mulf %548, %549 : vector<1x32xf32>
    %c1_182 = arith.constant 1 : index
    %c0_183 = arith.constant 0 : index
    %551 = vector.load %arg14[%c1_182, %c0_183] : memref<8x32xf32, #tpu.memory_space<vmem>>, vector<1x32xf32>
    tpu.vector_store %arg14[%c1_182, %c0_183], %550 {strides = array<i32>} : memref<8x32xf32, #tpu.memory_space<vmem>>, vector<1x32xf32>,
    %552 = vector.extract_strided_slice %54 {offsets = [7, 0], sizes = [1, 128], strides = [1, 1]} : vector<8x128xf32> to vector<1x128xf32>
    %cst_184 = arith.constant dense<0.000000e+00> : vector<1x128xf32>
    %553 = tpu.matmul %518, %56, %cst_184 {dimension_numbers = #tpu.dot_dimension_numbers<[1], [0], [0], [1], [0, 0, 1, 1], [], []>} : vector<1x32xf32>, vector<32x128xf32>, vector<1x128xf32> -> vector<1x128xf32>
    %554 = arith.addf %552, %553 : vector<1x128xf32>
    %555 = vector.extract_strided_slice %55 {offsets = [0, 0], sizes = [1, 128], strides = [1, 1]} : vector<8x128xf32> to vector<1x128xf32>
    %cst_185 = arith.constant dense<0.000000e+00> : vector<1x128xf32>
    %556 = tpu.matmul %550, %57, %cst_185 {dimension_numbers = #tpu.dot_dimension_numbers<[1], [0], [0], [1], [0, 0, 1, 1], [], []>} : vector<1x32xf32>, vector<32x128xf32>, vector<1x128xf32> -> vector<1x128xf32>
    %557 = arith.addf %555, %556 : vector<1x128xf32>
    %558 = vector.extract_strided_slice %554 {offsets = [0, 32], sizes = [1, 32], strides = [1, 1]} : vector<1x128xf32> to vector<1x32xf32>
    %cst_186 = arith.constant 5.000000e-01 : f32
    %559 = vector.broadcast %cst_186 : f32 to vector<1x32xf32>
    %560 = arith.mulf %559, %558 : vector<1x32xf32>
    %561 = math.tanh %560 : vector<1x32xf32>
    %cst_187 = arith.constant 1.000000e+00 : f32
    %562 = vector.broadcast %cst_187 : f32 to vector<1x32xf32>
    %563 = arith.addf %561, %562 : vector<1x32xf32>
    %cst_188 = arith.constant 5.000000e-01 : f32
    %564 = vector.broadcast %cst_188 : f32 to vector<1x32xf32>
    %565 = arith.mulf %564, %563 : vector<1x32xf32>
    %566 = arith.mulf %565, %508 : vector<1x32xf32>
    %567 = vector.extract_strided_slice %554 {offsets = [0, 0], sizes = [1, 32], strides = [1, 1]} : vector<1x128xf32> to vector<1x32xf32>
    %cst_189 = arith.constant 5.000000e-01 : f32
    %568 = vector.broadcast %cst_189 : f32 to vector<1x32xf32>
    %569 = arith.mulf %568, %567 : vector<1x32xf32>
    %570 = math.tanh %569 : vector<1x32xf32>
    %cst_190 = arith.constant 1.000000e+00 : f32
    %571 = vector.broadcast %cst_190 : f32 to vector<1x32xf32>
    %572 = arith.addf %570, %571 : vector<1x32xf32>
    %cst_191 = arith.constant 5.000000e-01 : f32
    %573 = vector.broadcast %cst_191 : f32 to vector<1x32xf32>
    %574 = arith.mulf %573, %572 : vector<1x32xf32>
    %575 = vector.extract_strided_slice %554 {offsets = [0, 64], sizes = [1, 32], strides = [1, 1]} : vector<1x128xf32> to vector<1x32xf32>
    %576 = math.tanh %575 : vector<1x32xf32>
    %577 = arith.mulf %574, %576 : vector<1x32xf32>
    %578 = arith.addf %566, %577 : vector<1x32xf32>
    %579 = vector.extract_strided_slice %554 {offsets = [0, 96], sizes = [1, 32], strides = [1, 1]} : vector<1x128xf32> to vector<1x32xf32>
    %cst_192 = arith.constant 5.000000e-01 : f32
    %580 = vector.broadcast %cst_192 : f32 to vector<1x32xf32>
    %581 = arith.mulf %580, %579 : vector<1x32xf32>
    %582 = math.tanh %581 : vector<1x32xf32>
    %cst_193 = arith.constant 1.000000e+00 : f32
    %583 = vector.broadcast %cst_193 : f32 to vector<1x32xf32>
    %584 = arith.addf %582, %583 : vector<1x32xf32>
    %cst_194 = arith.constant 5.000000e-01 : f32
    %585 = vector.broadcast %cst_194 : f32 to vector<1x32xf32>
    %586 = arith.mulf %585, %584 : vector<1x32xf32>
    %587 = math.tanh %578 : vector<1x32xf32>
    %588 = arith.mulf %586, %587 : vector<1x32xf32>
    %c7_195 = arith.constant 7 : index
    %c0_196 = arith.constant 0 : index
    %589 = vector.load %arg13[%c7_195, %c0_196] : memref<8x32xf32, #tpu.memory_space<vmem>>, vector<1x32xf32>
    tpu.vector_store %arg13[%c7_195, %c0_196], %588 {strides = array<i32>} : memref<8x32xf32, #tpu.memory_space<vmem>>, vector<1x32xf32>,
    %590 = vector.extract_strided_slice %557 {offsets = [0, 32], sizes = [1, 32], strides = [1, 1]} : vector<1x128xf32> to vector<1x32xf32>
    %cst_197 = arith.constant 5.000000e-01 : f32
    %591 = vector.broadcast %cst_197 : f32 to vector<1x32xf32>
    %592 = arith.mulf %591, %590 : vector<1x32xf32>
    %593 = math.tanh %592 : vector<1x32xf32>
    %cst_198 = arith.constant 1.000000e+00 : f32
    %594 = vector.broadcast %cst_198 : f32 to vector<1x32xf32>
    %595 = arith.addf %593, %594 : vector<1x32xf32>
    %cst_199 = arith.constant 5.000000e-01 : f32
    %596 = vector.broadcast %cst_199 : f32 to vector<1x32xf32>
    %597 = arith.mulf %596, %595 : vector<1x32xf32>
    %598 = arith.mulf %597, %540 : vector<1x32xf32>
    %599 = vector.extract_strided_slice %557 {offsets = [0, 0], sizes = [1, 32], strides = [1, 1]} : vector<1x128xf32> to vector<1x32xf32>
    %cst_200 = arith.constant 5.000000e-01 : f32
    %600 = vector.broadcast %cst_200 : f32 to vector<1x32xf32>
    %601 = arith.mulf %600, %599 : vector<1x32xf32>
    %602 = math.tanh %601 : vector<1x32xf32>
    %cst_201 = arith.constant 1.000000e+00 : f32
    %603 = vector.broadcast %cst_201 : f32 to vector<1x32xf32>
    %604 = arith.addf %602, %603 : vector<1x32xf32>
    %cst_202 = arith.constant 5.000000e-01 : f32
    %605 = vector.broadcast %cst_202 : f32 to vector<1x32xf32>
    %606 = arith.mulf %605, %604 : vector<1x32xf32>
    %607 = vector.extract_strided_slice %557 {offsets = [0, 64], sizes = [1, 32], strides = [1, 1]} : vector<1x128xf32> to vector<1x32xf32>
    %608 = math.tanh %607 : vector<1x32xf32>
    %609 = arith.mulf %606, %608 : vector<1x32xf32>
    %610 = arith.addf %598, %609 : vector<1x32xf32>
    %611 = vector.extract_strided_slice %557 {offsets = [0, 96], sizes = [1, 32], strides = [1, 1]} : vector<1x128xf32> to vector<1x32xf32>
    %cst_203 = arith.constant 5.000000e-01 : f32
    %612 = vector.broadcast %cst_203 : f32 to vector<1x32xf32>
    %613 = arith.mulf %612, %611 : vector<1x32xf32>
    %614 = math.tanh %613 : vector<1x32xf32>
    %cst_204 = arith.constant 1.000000e+00 : f32
    %615 = vector.broadcast %cst_204 : f32 to vector<1x32xf32>
    %616 = arith.addf %614, %615 : vector<1x32xf32>
    %cst_205 = arith.constant 5.000000e-01 : f32
    %617 = vector.broadcast %cst_205 : f32 to vector<1x32xf32>
    %618 = arith.mulf %617, %616 : vector<1x32xf32>
    %619 = math.tanh %610 : vector<1x32xf32>
    %620 = arith.mulf %618, %619 : vector<1x32xf32>
    %c0_206 = arith.constant 0 : index
    %c0_207 = arith.constant 0 : index
    %621 = vector.load %arg14[%c0_206, %c0_207] : memref<8x32xf32, #tpu.memory_space<vmem>>, vector<1x32xf32>
    tpu.vector_store %arg14[%c0_206, %c0_207], %620 {strides = array<i32>} : memref<8x32xf32, #tpu.memory_space<vmem>>, vector<1x32xf32>,
    %c0_208 = arith.constant 0 : index
    %c0_209 = arith.constant 0 : index
    %622 = vector.load %arg13[%c0_208, %c0_209] : memref<8x32xf32, #tpu.memory_space<vmem>>, vector<8x32xf32>
    %cst_210 = arith.constant 0.000000e+00 : f32
    %623 = vector.broadcast %cst_210 : f32 to vector<8x32xf32>
    %624 = arith.maximumf %622, %623 : vector<8x32xf32>
    %c0_211 = arith.constant 0 : index
    %c0_212 = arith.constant 0 : index
    %625 = vector.load %arg14[%c0_211, %c0_212] : memref<8x32xf32, #tpu.memory_space<vmem>>, vector<8x32xf32>
    %cst_213 = arith.constant 0.000000e+00 : f32
    %626 = vector.broadcast %cst_213 : f32 to vector<8x32xf32>
    %627 = arith.maximumf %625, %626 : vector<8x32xf32>
    %c0_214 = arith.constant 0 : index
    %c0_215 = arith.constant 0 : index
    %628 = vector.load %arg7[%c0_214, %c0_215] : memref<32x32xf32, #tpu.memory_space<vmem>>, vector<32x32xf32>
    %cst_216 = arith.constant dense<0.000000e+00> : vector<8x32xf32>
    %629 = tpu.matmul %624, %628, %cst_216 {dimension_numbers = #tpu.dot_dimension_numbers<[1], [0], [0], [1], [0, 0, 1, 1], [], []>} : vector<8x32xf32>, vector<32x32xf32>, vector<8x32xf32> -> vector<8x32xf32>
    %c0_217 = arith.constant 0 : index
    %c0_218 = arith.constant 0 : index
    %630 = vector.load %arg8[%c0_217, %c0_218] : memref<32x32xf32, #tpu.memory_space<vmem>>, vector<32x32xf32>
    %cst_219 = arith.constant dense<0.000000e+00> : vector<8x32xf32>
    %631 = tpu.matmul %627, %630, %cst_219 {dimension_numbers = #tpu.dot_dimension_numbers<[1], [0], [0], [1], [0, 0, 1, 1], [], []>} : vector<8x32xf32>, vector<32x32xf32>, vector<8x32xf32> -> vector<8x32xf32>
    %632 = arith.addf %629, %631 : vector<8x32xf32>
    %cst_220 = arith.constant 0.000000e+00 : f32
    %633 = vector.broadcast %cst_220 : f32 to vector<8x32xf32>
    %634 = arith.maximumf %632, %633 : vector<8x32xf32>
    %c0_221 = arith.constant 0 : index
    %c0_222 = arith.constant 0 : index
    %635 = vector.load %arg9[%c0_221, %c0_222] : memref<32x128xf32, #tpu.memory_space<vmem>>, vector<32x128xf32>
    %cst_223 = arith.constant dense<0.000000e+00> : vector<8x128xf32>
    %636 = tpu.matmul %634, %635, %cst_223 {dimension_numbers = #tpu.dot_dimension_numbers<[1], [0], [0], [1], [0, 0, 1, 1], [], []>} : vector<8x32xf32>, vector<32x128xf32>, vector<8x128xf32> -> vector<8x128xf32>
    %cst_224 = arith.constant 0.000000e+00 : f32
    %637 = vector.broadcast %cst_224 : f32 to vector<8x128xf32>
    %638 = arith.maximumf %636, %637 : vector<8x128xf32>
    %c0_225 = arith.constant 0 : index
    %c0_226 = arith.constant 0 : index
    %639 = vector.load %arg10[%c0_225, %c0_226] : memref<128x128xf32, #tpu.memory_space<vmem>>, vector<128x128xf32>
    %cst_227 = arith.constant dense<0.000000e+00> : vector<8x128xf32>
    %640 = tpu.matmul %638, %639, %cst_227 {dimension_numbers = #tpu.dot_dimension_numbers<[1], [0], [0], [1], [0, 0, 1, 1], [], []>} : vector<8x128xf32>, vector<128x128xf32>, vector<8x128xf32> -> vector<8x128xf32>
    %641 = tpu.iota {dimensions = array<i32: 1>} : vector<8x128xi32>
    %c10_i32 = arith.constant 10 : i32
    %642 = vector.broadcast %c10_i32 : i32 to vector<8x128xi32>
    %643 = arith.cmpi slt, %641, %642 : vector<8x128xi32>
    %cst_228 = arith.constant -1.000000e+30 : f32
    %644 = vector.broadcast %cst_228 : f32 to vector<8x128xf32>
    %645 = arith.select %643, %640, %644 : vector<8x128xi1>, vector<8x128xf32>
    %cst_229 = arith.constant dense<0xFF800000> : vector<8xf32>
    %646 = vector.multi_reduction <maximumf>, %645, %cst_229 [1] : vector<8x128xf32> to vector<8xf32>
    %647 = vector.shape_cast %646 : vector<8xf32> to vector<8x1xf32>
    %648 = vector.broadcast %647 : vector<8x1xf32> to vector<8x128xf32>
    %649 = arith.subf %645, %648 : vector<8x128xf32>
    %650 = math.exp %649 : vector<8x128xf32>
    %cst_230 = arith.constant 0.000000e+00 : f32
    %651 = vector.broadcast %cst_230 : f32 to vector<8x128xf32>
    %652 = arith.select %643, %650, %651 : vector<8x128xi1>, vector<8x128xf32>
    %cst_231 = arith.constant dense<0.000000e+00> : vector<8xf32>
    %653 = vector.multi_reduction <add>, %652, %cst_231 [1] : vector<8x128xf32> to vector<8xf32>
    %654 = vector.shape_cast %653 : vector<8xf32> to vector<8x1xf32>
    %655 = vector.broadcast %654 : vector<8x1xf32> to vector<8x128xf32>
    %656 = arith.divf %652, %655 : vector<8x128xf32>
    %c0_232 = arith.constant 0 : index
    %c0_233 = arith.constant 0 : index
    %657 = vector.load %arg11[%c0_232, %c0_233] : memref<8x128xf32, #tpu.memory_space<vmem>>, vector<8x128xf32>
    tpu.vector_store %arg11[%c0_232, %c0_233], %656 {strides = array<i32>} : memref<8x128xf32, #tpu.memory_space<vmem>>, vector<8x128xf32>,
    %cst_234 = arith.constant dense<0xFF800000> : vector<8xf32>
    %658 = vector.multi_reduction <maximumf>, %656, %cst_234 [1] : vector<8x128xf32> to vector<8xf32>
    %659 = vector.shape_cast %658 : vector<8xf32> to vector<8x1xf32>
    %660 = vector.broadcast %659 : vector<8x1xf32> to vector<8x128xf32>
    %661 = arith.cmpf oeq, %656, %660 : vector<8x128xf32>
    %662 = arith.andi %661, %643 : vector<8x128xi1>
    %663 = arith.sitofp %641 : vector<8x128xi32> to vector<8x128xf32>
    %cst_235 = arith.constant 1.280000e+02 : f32
    %664 = vector.broadcast %cst_235 : f32 to vector<8x128xf32>
    %665 = arith.select %662, %663, %664 : vector<8x128xi1>, vector<8x128xf32>
    %cst_236 = arith.constant dense<0x7F800000> : vector<8xf32>
    %666 = vector.multi_reduction <minimumf>, %665, %cst_236 [1] : vector<8x128xf32> to vector<8xf32>
    %667 = vector.shape_cast %666 : vector<8xf32> to vector<8x1xf32>
    %668 = arith.fptosi %667 : vector<8x1xf32> to vector<8x1xi32>
    %c0_237 = arith.constant 0 : index
    %c0_238 = arith.constant 0 : index
    %669 = vector.load %arg12[%c0_237, %c0_238] : memref<8x1xi32, #tpu.memory_space<vmem>>, vector<8x1xi32>
    tpu.vector_store %arg12[%c0_237, %c0_238], %668 {strides = array<i32>} : memref<8x1xi32, #tpu.memory_space<vmem>>, vector<8x1xi32>,
    return
  }
  func.func @transform_0(%arg0: i32, %arg1: memref<8xi32, #tpu.memory_space<smem>>) -> (i32, i32) {
    %c0_i32 = arith.constant 0 : i32
    %c0_i32_0 = arith.constant 0 : i32
    %c0_i32_1 = arith.constant 0 : i32
    return %c0_i32, %c0_i32_0 : i32, i32
  }
  func.func @transform_1(%arg0: i32, %arg1: memref<8xi32, #tpu.memory_space<smem>>) -> (i32, i32) {
    %c0_i32 = arith.constant 0 : i32
    %c0_i32_0 = arith.constant 0 : i32
    %c0_i32_1 = arith.constant 0 : i32
    return %c0_i32, %c0_i32_0 : i32, i32
  }
  func.func @transform_2(%arg0: i32, %arg1: memref<8xi32, #tpu.memory_space<smem>>) -> (i32, i32) {
    %c0_i32 = arith.constant 0 : i32
    %c0_i32_0 = arith.constant 0 : i32
    %c0_i32_1 = arith.constant 0 : i32
    return %c0_i32, %c0_i32_0 : i32, i32
  }
  func.func @transform_3(%arg0: i32, %arg1: memref<8xi32, #tpu.memory_space<smem>>) -> (i32, i32) {
    %c0_i32 = arith.constant 0 : i32
    %c0_i32_0 = arith.constant 0 : i32
    %c0_i32_1 = arith.constant 0 : i32
    return %c0_i32, %c0_i32_0 : i32, i32
  }
  func.func @transform_4(%arg0: i32, %arg1: memref<8xi32, #tpu.memory_space<smem>>) -> (i32, i32) {
    %c0_i32 = arith.constant 0 : i32
    %c0_i32_0 = arith.constant 0 : i32
    %c0_i32_1 = arith.constant 0 : i32
    return %c0_i32, %c0_i32_0 : i32, i32
  }
  func.func @transform_5(%arg0: i32, %arg1: memref<8xi32, #tpu.memory_space<smem>>) -> (i32, i32) {
    %c0_i32 = arith.constant 0 : i32
    %c0_i32_0 = arith.constant 0 : i32
    %c0_i32_1 = arith.constant 0 : i32
    return %c0_i32, %c0_i32_0 : i32, i32
  }
  func.func @transform_6(%arg0: i32, %arg1: memref<8xi32, #tpu.memory_space<smem>>) -> (i32, i32) {
    %c0_i32 = arith.constant 0 : i32
    %c0_i32_0 = arith.constant 0 : i32
    %c0_i32_1 = arith.constant 0 : i32
    return %c0_i32, %c0_i32_0 : i32, i32
  }
  func.func @transform_7(%arg0: i32, %arg1: memref<8xi32, #tpu.memory_space<smem>>) -> (i32, i32) {
    %c0_i32 = arith.constant 0 : i32
    %c0_i32_0 = arith.constant 0 : i32
    %c0_i32_1 = arith.constant 0 : i32
    return %c0_i32, %c0_i32_0 : i32, i32
  }
  func.func @transform_8(%arg0: i32, %arg1: memref<8xi32, #tpu.memory_space<smem>>) -> (i32, i32) {
    %c0_i32 = arith.constant 0 : i32
    %c0_i32_0 = arith.constant 0 : i32
    %c0_i32_1 = arith.constant 0 : i32
    return %c0_i32, %c0_i32_0 : i32, i32
  }
  func.func @transform_9(%arg0: i32, %arg1: memref<8xi32, #tpu.memory_space<smem>>) -> (i32, i32) {
    %c0_i32 = arith.constant 0 : i32
    %c0_i32_0 = arith.constant 0 : i32
    %c0_i32_1 = arith.constant 0 : i32
    return %c0_i32, %c0_i32_0 : i32, i32
  }
  func.func @transform_10(%arg0: i32, %arg1: memref<8xi32, #tpu.memory_space<smem>>) -> (i32, i32) {
    %c0_i32 = arith.constant 0 : i32
    %c0_i32_0 = arith.constant 0 : i32
    %c0_i32_1 = arith.constant 0 : i32
    return %c0_i32, %c0_i32_0 : i32, i32
  }
}

</mosaic_0001>

<llo_original>
// kernel: tpu_custom_call.1
$region0: #{tpu_custom_call.1}
  #allocation0 [shape = 'u32[]', space=smem, size = 0x4, offset = 0x4, fixed_abs, tag = 'smem constant byte address 0x4 - core index']
  #allocation1 [shape = 'u32[144,128]{1,0:T(1,128)}', space=vmem, size = 0x12000, scoped, tag = 'internal scratch']
  #allocation2 [shape = 'f32[8,32]{1,0:T(8,128)}', space=vmem, size = 0x1000, scoped, tag = 'scratch operand']
  #allocation3 [shape = 'f32[8,32]{1,0:T(8,128)}', space=vmem, size = 0x1000, scoped, tag = 'scratch operand']
  #allocation4 [shape = 's32[1]{0}', space=sflag, size = 0x4, scoped, tag = 'scoped memory for tpu_custom_call.1']
  #allocation5 [shape = 'u8[512]{0}', space=smem, size = 0x200, scoped, tag = 'prefetched SMEM operand 0']
  %s0 = inlined_call_operand.hbm [shape: s32[8], index: 0, kind: input, shape index: {}]
  %s1 = inlined_call_operand.vmem [shape: f32[128,32], index: 1, kind: input, shape index: {}]
  %s2 = inlined_call_operand.vmem [shape: f32[32,256], index: 2, kind: input, shape index: {}]
  %s3 = inlined_call_operand.vmem [shape: f32[1,256], index: 3, kind: input, shape index: {}]
  %s4 = inlined_call_operand.hbm [shape: f32[32,128], index: 4, kind: input, shape index: {}]
  %s5 = inlined_call_operand.hbm [shape: f32[32,128], index: 5, kind: input, shape index: {}]
  %s6 = inlined_call_operand.hbm [shape: f32[32,32], index: 6, kind: input, shape index: {}]
  %s7 = inlined_call_operand.hbm [shape: f32[32,32], index: 7, kind: input, shape index: {}]
  %s8 = inlined_call_operand.hbm [shape: f32[32,128], index: 8, kind: input, shape index: {}]
  %s9 = inlined_call_operand.vmem [shape: f32[128,128], index: 9, kind: input, shape index: {}]
  %s10 = inlined_call_operand.hbm [shape: f32[8,128], index: 10, kind: output, shape index: {0}]
  %s11 = inlined_call_operand.vmem [shape: s32[8,1], index: 11, kind: output, shape index: {1}]
  %12 = xla_tuple %s10, %s11
  %s13 = sld [smem:[#allocation0]]
  $region74: #{tpu_custom_call.1} parent=0
    _
  %s15 = ssub.s32 1, %s13
  %s16 = scalar_select 0, %s15, %s13
  %18 = dma.hbm_to_smem %s0, 16, [#allocation5], [#allocation4]
  %19 = dma.done [#allocation4], 16
  %20 = sfence
  $region1: #{tpu_custom_call.1} parent=0
    #allocation6 [shape = 'u8[16384]{0}', space=vmem, size = 0x4000, scoped, tag = 'input window, operand 4, single buffered']
    #allocation7 [shape = 's32[1]{0}', space=sflag, size = 0x4, scoped, tag = 'scoped memory for tpu_custom_call.1']
    #allocation8 [shape = 's32[1]{0}', space=sflag, size = 0x4, scoped, tag = 'scoped memory for tpu_custom_call.1']
    #allocation9 [shape = 'u8[16384]{0}', space=vmem, size = 0x4000, scoped, tag = 'input window, operand 5, single buffered']
    #allocation10 [shape = 's32[1]{0}', space=sflag, size = 0x4, scoped, tag = 'scoped memory for tpu_custom_call.1']
    #allocation11 [shape = 'u8[16384]{0}', space=vmem, size = 0x4000, scoped, tag = 'input window, operand 6, single buffered']
    #allocation12 [shape = 'u8[16384]{0}', space=vmem, size = 0x4000, scoped, tag = 'input window, operand 7, single buffered']
    #allocation13 [shape = 's32[1]{0}', space=sflag, size = 0x4, scoped, tag = 'scoped memory for tpu_custom_call.1']
    #allocation14 [shape = 'u8[16384]{0}', space=vmem, size = 0x4000, scoped, tag = 'input window, operand 8, single buffered']
    #allocation15 [shape = 'u8[4096]{0}', space=vmem, size = 0x1000, scoped, tag = 'output window, operand 0, single buffered']
    %21 = vsyncpa [#allocation7], 0
    %22 = vsyncpa [#allocation10], 0
    %23 = vsyncpa [#allocation13], 0
    %24 = vsyncpa [#allocation8], 0
    // Predicated region
    $region2: #{tpu_custom_call.1} parent=1 // pred_check
      _
    $region3: #{tpu_custom_call.1} parent=1 // pred_check_branch
      %26 = sbr.rel (0) target = $region5
    $region4: #{tpu_custom_call.1} parent=1 // pred_region
      _
    $region5: #{tpu_custom_call.1} parent=1 // pred_fallthru
      _
    // Predicated region
    $region6: #{tpu_custom_call.1} parent=1 // pred_check
      _
    $region7: #{tpu_custom_call.1} parent=1 // pred_check_branch
      %28 = sbr.rel (0) target = $region9
    $region8: #{tpu_custom_call.1} parent=1 // pred_region
      _
    $region9: #{tpu_custom_call.1} parent=1 // pred_fallthru
      _
    // Predicated region
    $region10: #{tpu_custom_call.1} parent=1 // pred_check
      _
    $region11: #{tpu_custom_call.1} parent=1 // pred_check_branch
      %30 = sbr.rel (0) target = $region13
    $region12: #{tpu_custom_call.1} parent=1 // pred_region
      _
    $region13: #{tpu_custom_call.1} parent=1 // pred_fallthru
      _
    // Predicated region
    $region14: #{tpu_custom_call.1} parent=1 // pred_check
      _
    $region15: #{tpu_custom_call.1} parent=1 // pred_check_branch
      %32 = sbr.rel (0) target = $region17
    $region16: #{tpu_custom_call.1} parent=1 // pred_region
      %s34 = ssub.s32 512, 512
      %35 = vsyncadd [#allocation7], %s34
      %s36 = sshll.u32 [#allocation6], 4
      %s37 = int_to_ptr.vmem [resolvable:$true] %s36
      %42 = dma.hbm_to_vmem [thread:$0]  %s4, 512, %s37, [#allocation7], 128, 128, 8
    $region17: #{tpu_custom_call.1} parent=1 // pred_fallthru
      _
    // Predicated region
    $region18: #{tpu_custom_call.1} parent=1 // pred_check
      _
    $region19: #{tpu_custom_call.1} parent=1 // pred_check_branch
      %44 = sbr.rel (0) target = $region21
    $region20: #{tpu_custom_call.1} parent=1 // pred_region
      %s46 = ssub.s32 512, 512
      %47 = vsyncadd [#allocation10], %s46
      %s48 = sshll.u32 [#allocation9], 4
      %s49 = int_to_ptr.vmem [resolvable:$true] %s48
      %54 = dma.hbm_to_vmem [thread:$0]  %s5, 512, %s49, [#allocation10], 128, 128, 8
    $region21: #{tpu_custom_call.1} parent=1 // pred_fallthru
      _
    // Predicated region
    $region22: #{tpu_custom_call.1} parent=1 // pred_check
      _
    $region23: #{tpu_custom_call.1} parent=1 // pred_check_branch
      %56 = sbr.rel (0) target = $region25
    $region24: #{tpu_custom_call.1} parent=1 // pred_region
      %s58 = ssub.s32 512, 512
      %59 = vsyncadd [#allocation10], %s58
      %s60 = sshll.u32 [#allocation11], 4
      %s61 = int_to_ptr.vmem [resolvable:$true] %s60
      %66 = dma.hbm_to_vmem [thread:$0]  %s6, 512, %s61, [#allocation10], 128, 128, 8
    $region25: #{tpu_custom_call.1} parent=1 // pred_fallthru
      _
    // Predicated region
    $region26: #{tpu_custom_call.1} parent=1 // pred_check
      _
    $region27: #{tpu_custom_call.1} parent=1 // pred_check_branch
      %68 = sbr.rel (0) target = $region29
    $region28: #{tpu_custom_call.1} parent=1 // pred_region
      %s70 = ssub.s32 512, 512
      %71 = vsyncadd [#allocation13], %s70
      %s72 = sshll.u32 [#allocation12], 4
      %s73 = int_to_ptr.vmem [resolvable:$true] %s72
      %78 = dma.hbm_to_vmem [thread:$0]  %s7, 512, %s73, [#allocation13], 128, 128, 8
    $region29: #{tpu_custom_call.1} parent=1 // pred_fallthru
      _
    // Predicated region
    $region30: #{tpu_custom_call.1} parent=1 // pred_check
      _
    $region31: #{tpu_custom_call.1} parent=1 // pred_check_branch
      %80 = sbr.rel (0) target = $region33
    $region32: #{tpu_custom_call.1} parent=1 // pred_region
      %s82 = ssub.s32 512, 512
      %83 = vsyncadd [#allocation13], %s82
      %s84 = sshll.u32 [#allocation14], 4
      %s85 = int_to_ptr.vmem [resolvable:$true] %s84
      %90 = dma.hbm_to_vmem [thread:$0]  %s8, 512, %s85, [#allocation13], 128, 128, 8
    $region33: #{tpu_custom_call.1} parent=1 // pred_fallthru
      _
    // Predicated region
    $region34: #{tpu_custom_call.1} parent=1 // pred_check
      _
    $region35: #{tpu_custom_call.1} parent=1 // pred_check_branch
      %92 = sbr.rel (0) target = $region37
    $region36: #{tpu_custom_call.1} parent=1 // pred_region
      _
    $region37: #{tpu_custom_call.1} parent=1 // pred_fallthru
      _
    // Predicated region
    $region38: #{tpu_custom_call.1} parent=1 // pred_check
      _
    $region39: #{tpu_custom_call.1} parent=1 // pred_check_branch
      %94 = sbr.rel (0) target = $region41
    $region40: #{tpu_custom_call.1} parent=1 // pred_region
      %95 = dma.done [#allocation7], 512
    $region41: #{tpu_custom_call.1} parent=1 // pred_fallthru
      _
    // Predicated region
    $region42: #{tpu_custom_call.1} parent=1 // pred_check
      _
    $region43: #{tpu_custom_call.1} parent=1 // pred_check_branch
      %97 = sbr.rel (0) target = $region45
    $region44: #{tpu_custom_call.1} parent=1 // pred_region
      %98 = dma.done [#allocation10], 512
    $region45: #{tpu_custom_call.1} parent=1 // pred_fallthru
      _
    // Predicated region
    $region46: #{tpu_custom_call.1} parent=1 // pred_check
      _
    $region47: #{tpu_custom_call.1} parent=1 // pred_check_branch
      %100 = sbr.rel (0) target = $region49
    $region48: #{tpu_custom_call.1} parent=1 // pred_region
      %101 = dma.done [#allocation10], 512
    $region49: #{tpu_custom_call.1} parent=1 // pred_fallthru
      _
    // Predicated region
    $region50: #{tpu_custom_call.1} parent=1 // pred_check
      _
    $region51: #{tpu_custom_call.1} parent=1 // pred_check_branch
      %103 = sbr.rel (0) target = $region53
    $region52: #{tpu_custom_call.1} parent=1 // pred_region
      %104 = dma.done [#allocation13], 512
    $region53: #{tpu_custom_call.1} parent=1 // pred_fallthru
      _
    // Predicated region
    $region54: #{tpu_custom_call.1} parent=1 // pred_check
      _
    $region55: #{tpu_custom_call.1} parent=1 // pred_check_branch
      %106 = sbr.rel (0) target = $region57
    $region56: #{tpu_custom_call.1} parent=1 // pred_region
      %107 = dma.done [#allocation13], 512
    $region57: #{tpu_custom_call.1} parent=1 // pred_fallthru
      _
    %v108 = vlaneseq
    %v109 = vshrl.u32 %v108, 7
    %vm110 = vcmp.eq.s32.totalorder %v109, 0
    %s111 = sld [smem:[#allocation5]]
    %v112 = vstv %s111
    %v113 = vsel %vm110, %v112, 0
    %vm114 = vcmp.eq.s32.totalorder %v109, 1
    %s115 = sld [smem:[#allocation5 + $0x1]]
    %v116 = vstv %s115
    %v117 = vsel %vm114, %v116, %v113
    %vm118 = vcmp.eq.s32.totalorder %v109, 2
    %s119 = sld [smem:[#allocation5 + $0x2]]
    %v120 = vstv %s119
    %v121 = vsel %vm118, %v120, %v117
    %vm122 = vcmp.eq.s32.totalorder %v109, 3
    %s123 = sld [smem:[#allocation5 + $0x3]]
    %v124 = vstv %s123
    %v125 = vsel %vm122, %v124, %v121
    %vm126 = vcmp.eq.s32.totalorder %v109, 4
    %s127 = sld [smem:[#allocation5 + $0x4]]
    %v128 = vstv %s127
    %v129 = vsel %vm126, %v128, %v125
    %vm130 = vcmp.eq.s32.totalorder %v109, 5
    %s131 = sld [smem:[#allocation5 + $0x5]]
    %v132 = vstv %s131
    %v133 = vsel %vm130, %v132, %v129
    %vm134 = vcmp.eq.s32.totalorder %v109, 6
    %s135 = sld [smem:[#allocation5 + $0x6]]
    %v136 = vstv %s135
    %v137 = vsel %vm134, %v136, %v133
    %vm138 = vcmp.eq.s32.totalorder %v109, 7
    %s139 = sld [smem:[#allocation5 + $0x7]]
    %v140 = vstv %s139
    %v141 = vsel %vm138, %v140, %v137
    %v142 = vlaneseq
    %v143 = vand.u32 %v142, 127
    %vm144 = vcmp.eq.s32.totalorder %v143, %v141
    %v145 = vsel %vm144, 1, 0
    %v146 = vcvt.s32.f32 %v145
    %v147 = vld [vmem:[%s1] sm:$0xff]
    %v148 = vld [vmem:[%s1 + $0x8] sm:$0xff]
    %v149 = vld [vmem:[%s1 + $0x10] sm:$0xff]
    %v150 = vld [vmem:[%s1 + $0x18] sm:$0xff]
    %v151 = vld [vmem:[%s1 + $0x20] sm:$0xff]
    %v152 = vld [vmem:[%s1 + $0x28] sm:$0xff]
    %v153 = vld [vmem:[%s1 + $0x30] sm:$0xff]
    %v154 = vld [vmem:[%s1 + $0x38] sm:$0xff]
    %v155 = vld [vmem:[%s1 + $0x40] sm:$0xff]
    %v156 = vld [vmem:[%s1 + $0x48] sm:$0xff]
    %v157 = vld [vmem:[%s1 + $0x50] sm:$0xff]
    %v158 = vld [vmem:[%s1 + $0x58] sm:$0xff]
    %v159 = vld [vmem:[%s1 + $0x60] sm:$0xff]
    %v160 = vld [vmem:[%s1 + $0x68] sm:$0xff]
    %v161 = vld [vmem:[%s1 + $0x70] sm:$0xff]
    %v162 = vld [vmem:[%s1 + $0x78] sm:$0xff]
    %163 = vmatprep.subr.mxu0 0.0
    %164 = vmatpush1.msra.mxu0 %v147
    %165 = vmatprep.subr.mxu0 0.0
    %166 = vmatpush1.msra.mxu0 %v148
    %167 = vmatprep.subr.mxu0 0.0
    %168 = vmatpush1.msra.mxu0 %v149
    %169 = vmatprep.subr.mxu0 0.0
    %170 = vmatpush1.msra.mxu0 %v150
    %171 = vmatprep.subr.mxu0 0.0
    %172 = vmatpush1.msra.mxu0 %v151
    %173 = vmatprep.subr.mxu0 0.0
    %174 = vmatpush1.msra.mxu0 %v152
    %175 = vmatprep.subr.mxu0 0.0
    %176 = vmatpush1.msra.mxu0 %v153
    %177 = vmatprep.subr.mxu0 0.0
    %178 = vmatpush1.msra.mxu0 %v154
    %179 = vmatprep.subr.mxu0 0.0
    %180 = vmatpush1.msra.mxu0 %v155
    %181 = vmatprep.subr.mxu0 0.0
    %182 = vmatpush1.msra.mxu0 %v156
    %183 = vmatprep.subr.mxu0 0.0
    %184 = vmatpush1.msra.mxu0 %v157
    %185 = vmatprep.subr.mxu0 0.0
    %186 = vmatpush1.msra.mxu0 %v158
    %187 = vmatprep.subr.mxu0 0.0
    %188 = vmatpush1.msra.mxu0 %v159
    %189 = vmatprep.subr.mxu0 0.0
    %190 = vmatpush1.msra.mxu0 %v160
    %191 = vmatprep.subr.mxu0 0.0
    %192 = vmatpush1.msra.mxu0 %v161
    %193 = vmatprep.subr.mxu0 0.0
    %194 = vmatpush1.msra.mxu0 %v162
    %195 = vmatprep.subr.mxu0 0.0
    %196 = vmatpush1.msra.mxu0 0.0
    %197 = vmatprep.subr.mxu0 0.0
    %198 = vmatpush1.msra.mxu0 0.0
    %199 = vmatprep.subr.mxu0 0.0
    %200 = vmatpush1.msra.mxu0 0.0
    %201 = vmatprep.subr.mxu0 0.0
    %202 = vmatpush1.msra.mxu0 0.0
    %203 = vmatprep.subr.mxu0 0.0
    %204 = vmatpush1.msra.mxu0 0.0
    %205 = vmatprep.subr.mxu0 0.0
    %206 = vmatpush1.msra.mxu0 0.0
    %207 = vmatprep.subr.mxu0 0.0
    %208 = vmatpush1.msra.mxu0 0.0
    %209 = vmatprep.subr.mxu0 0.0
    %210 = vmatpush1.msra.mxu0 0.0
    %211 = vmatprep.subr.mxu0 0.0
    %212 = vmatpush1.msra.mxu0 0.0
    %213 = vmatprep.subr.mxu0 0.0
    %214 = vmatpush1.msra.mxu0 0.0
    %215 = vmatprep.subr.mxu0 0.0
    %216 = vmatpush1.msra.mxu0 0.0
    %217 = vmatprep.subr.mxu0 0.0
    %218 = vmatpush1.msra.mxu0 0.0
    %219 = vmatprep.subr.mxu0 0.0
    %220 = vmatpush1.msra.mxu0 0.0
    %221 = vmatprep.subr.mxu0 0.0
    %222 = vmatpush1.msra.mxu0 0.0
    %223 = vmatprep.subr.mxu0 0.0
    %224 = vmatpush1.msra.mxu0 0.0
    %225 = vmatprep.subr.mxu0 0.0
    %226 = vmatpush1.msra.mxu0 0.0
    %227 = vmatprep.mubr.f32.mxu0 0.0
    %228 = vmatmul.mubr.f32.gmra.mrb[0].mxu0 %v146
    %v229 = vpop.f32.mrb[0].mxu0
    %v230 = vadd.f32 0.0, %v229
    %v231 = vpop.f32.mrb[0].mxu0
    %232 = vdwg.mxu0
    %v233 = vld [vmem:[%s2] sm:$0xff]
    %v234 = vld [vmem:[%s2 + $0x8] sm:$0xff]
    %v235 = vld [vmem:[%s2 + $0x10] sm:$0xff]
    %v236 = vld [vmem:[%s2 + $0x18] sm:$0xff]
    %v237 = vld [vmem:[%s2 + $0x20] sm:$0xff]
    %v238 = vld [vmem:[%s2 + $0x28] sm:$0xff]
    %v239 = vld [vmem:[%s2 + $0x30] sm:$0xff]
    %v240 = vld [vmem:[%s2 + $0x38] sm:$0xff]
    %v241 = vld [vmem:[%s3] sm:$0x3]
    %v243 = vlaneseq
    %v244 = vshrl.u32 %v243, 7
    %v245 = vsub.s32 0, %v244
    %v246 = vrot.slane %v241, %v245
    %v247 = vlaneseq
    %v248 = vshrl.u32 %v247, 7
    %v249 = vsub.s32 1, %v248
    %v250 = vrot.slane %v241, %v249
    %vm253 = vcmask 261120
    %v255 = vsel %vm253, %v230, 0
    %257 = vmatprep.subr.mxu0 %v234
    %258 = vmatpush1.msra.mxu0 %v233
    %259 = vmatprep.subr.mxu0 %v236
    %260 = vmatpush1.msra.mxu0 %v235
    %261 = vmatprep.subr.mxu0 %v238
    %262 = vmatpush1.msra.mxu0 %v237
    %263 = vmatprep.subr.mxu0 %v240
    %264 = vmatpush1.msra.mxu0 %v239
    %265 = vmatprep.subr.mxu0 0.0
    %266 = vmatpush1.msra.mxu0 0.0
    %267 = vmatprep.subr.mxu0 0.0
    %268 = vmatpush1.msra.mxu0 0.0
    %269 = vmatprep.subr.mxu0 0.0
    %270 = vmatpush1.msra.mxu0 0.0
    %271 = vmatprep.subr.mxu0 0.0
    %272 = vmatpush1.msra.mxu0 0.0
    %273 = vmatprep.subr.mxu0 0.0
    %274 = vmatpush1.msra.mxu0 0.0
    %275 = vmatprep.subr.mxu0 0.0
    %276 = vmatpush1.msra.mxu0 0.0
    %277 = vmatprep.subr.mxu0 0.0
    %278 = vmatpush1.msra.mxu0 0.0
    %279 = vmatprep.subr.mxu0 0.0
    %280 = vmatpush1.msra.mxu0 0.0
    %281 = vmatprep.subr.mxu0 0.0
    %282 = vmatpush1.msra.mxu0 0.0
    %283 = vmatprep.subr.mxu0 0.0
    %284 = vmatpush1.msra.mxu0 0.0
    %285 = vmatprep.subr.mxu0 0.0
    %286 = vmatpush1.msra.mxu0 0.0
    %287 = vmatprep.subr.mxu0 0.0
    %288 = vmatpush1.msra.mxu0 0.0
    %289 = vmatprep.subr.mxu0 0.0
    %290 = vmatpush1.msra.mxu0 0.0
    %291 = vmatprep.subr.mxu0 0.0
    %292 = vmatpush1.msra.mxu0 0.0
    %293 = vmatprep.subr.mxu0 0.0
    %294 = vmatpush1.msra.mxu0 0.0
    %295 = vmatprep.subr.mxu0 0.0
    %296 = vmatpush1.msra.mxu0 0.0
    %297 = vmatprep.subr.mxu0 0.0
    %298 = vmatpush1.msra.mxu0 0.0
    %299 = vmatprep.subr.mxu0 0.0
    %300 = vmatpush1.msra.mxu0 0.0
    %301 = vmatprep.subr.mxu0 0.0
    %302 = vmatpush1.msra.mxu0 0.0
    %303 = vmatprep.subr.mxu0 0.0
    %304 = vmatpush1.msra.mxu0 0.0
    %305 = vmatprep.subr.mxu0 0.0
    %306 = vmatpush1.msra.mxu0 0.0
    %307 = vmatprep.subr.mxu0 0.0
    %308 = vmatpush1.msra.mxu0 0.0
    %309 = vmatprep.subr.mxu0 0.0
    %310 = vmatpush1.msra.mxu0 0.0
    %311 = vmatprep.subr.mxu0 0.0
    %312 = vmatpush1.msra.mxu0 0.0
    %313 = vmatprep.subr.mxu0 0.0
    %314 = vmatpush1.msra.mxu0 0.0
    %315 = vmatprep.subr.mxu0 0.0
    %316 = vmatpush1.msra.mxu0 0.0
    %317 = vmatprep.subr.mxu0 0.0
    %318 = vmatpush1.msra.mxu0 0.0
    %319 = vmatprep.subr.mxu0 0.0
    %320 = vmatpush1.msra.mxu0 0.0
    %321 = vmatprep.mubr.f32.mxu0 0.0
    %322 = vmatmul.mubr.f32.gmra.mrb[0].mxu0 %v255
    %v323 = vpop.f32.mrb[0].mxu0
    %v324 = vadd.f32 %v246, %v323
    %v325 = vpop.f32.mrb[0].mxu0
    %v326 = vadd.f32 %v250, %v325
    %327 = vdwg.mxu0
    %v328 = vld [vmem:[#allocation6] sm:$0xff]
    %v329 = vld [vmem:[#allocation6 + $0x8] sm:$0xff]
    %v330 = vld [vmem:[#allocation6 + $0x10] sm:$0xff]
    %v331 = vld [vmem:[#allocation6 + $0x18] sm:$0xff]
    %v332 = vld [vmem:[#allocation9] sm:$0xff]
    %v333 = vld [vmem:[#allocation9 + $0x8] sm:$0xff]
    %v334 = vld [vmem:[#allocation9 + $0x10] sm:$0xff]
    %v335 = vld [vmem:[#allocation9 + $0x18] sm:$0xff]
    %v337 = vsel %vm253, 0.0, 0
    %339 = vmatprep.subr.mxu0 0.0
    %340 = vmatpush1.msra.mxu0 %v328
    %341 = vmatprep.subr.mxu0 0.0
    %342 = vmatpush1.msra.mxu0 %v329
    %343 = vmatprep.subr.mxu0 0.0
    %344 = vmatpush1.msra.mxu0 %v330
    %345 = vmatprep.subr.mxu0 0.0
    %346 = vmatpush1.msra.mxu0 %v331
    %347 = vmatprep.subr.mxu0 0.0
    %348 = vmatpush1.msra.mxu0 0.0
    %349 = vmatprep.subr.mxu0 0.0
    %350 = vmatpush1.msra.mxu0 0.0
    %351 = vmatprep.subr.mxu0 0.0
    %352 = vmatpush1.msra.mxu0 0.0
    %353 = vmatprep.subr.mxu0 0.0
    %354 = vmatpush1.msra.mxu0 0.0
    %355 = vmatprep.subr.mxu0 0.0
    %356 = vmatpush1.msra.mxu0 0.0
    %357 = vmatprep.subr.mxu0 0.0
    %358 = vmatpush1.msra.mxu0 0.0
    %359 = vmatprep.subr.mxu0 0.0
    %360 = vmatpush1.msra.mxu0 0.0
    %361 = vmatprep.subr.mxu0 0.0
    %362 = vmatpush1.msra.mxu0 0.0
    %363 = vmatprep.subr.mxu0 0.0
    %364 = vmatpush1.msra.mxu0 0.0
    %365 = vmatprep.subr.mxu0 0.0
    %366 = vmatpush1.msra.mxu0 0.0
    %367 = vmatprep.subr.mxu0 0.0
    %368 = vmatpush1.msra.mxu0 0.0
    %369 = vmatprep.subr.mxu0 0.0
    %370 = vmatpush1.msra.mxu0 0.0
    %371 = vmatprep.subr.mxu0 0.0
    %372 = vmatpush1.msra.mxu0 0.0
    %373 = vmatprep.subr.mxu0 0.0
    %374 = vmatpush1.msra.mxu0 0.0
    %375 = vmatprep.subr.mxu0 0.0
    %376 = vmatpush1.msra.mxu0 0.0
    %377 = vmatprep.subr.mxu0 0.0
    %378 = vmatpush1.msra.mxu0 0.0
    %379 = vmatprep.subr.mxu0 0.0
    %380 = vmatpush1.msra.mxu0 0.0
    %381 = vmatprep.subr.mxu0 0.0
    %382 = vmatpush1.msra.mxu0 0.0
    %383 = vmatprep.subr.mxu0 0.0
    %384 = vmatpush1.msra.mxu0 0.0
    %385 = vmatprep.subr.mxu0 0.0
    %386 = vmatpush1.msra.mxu0 0.0
    %387 = vmatprep.subr.mxu0 0.0
    %388 = vmatpush1.msra.mxu0 0.0
    %389 = vmatprep.subr.mxu0 0.0
    %390 = vmatpush1.msra.mxu0 0.0
    %391 = vmatprep.subr.mxu0 0.0
    %392 = vmatpush1.msra.mxu0 0.0
    %393 = vmatprep.subr.mxu0 0.0
    %394 = vmatpush1.msra.mxu0 0.0
    %395 = vmatprep.subr.mxu0 0.0
    %396 = vmatpush1.msra.mxu0 0.0
    %397 = vmatprep.subr.mxu0 0.0
    %398 = vmatpush1.msra.mxu0 0.0
    %399 = vmatprep.subr.mxu0 0.0
    %400 = vmatpush1.msra.mxu0 0.0
    %401 = vmatprep.subr.mxu0 0.0
    %402 = vmatpush1.msra.mxu0 0.0
    %403 = vmatprep.mubr.f32.mxu0 0.0
    %404 = vmatmul.mubr.f32.gmra.mrb[0].mxu0 %v337
    %v405 = vpop.f32.mrb[0].mxu0
    %v406 = vadd.f32 0.0, %v405
    %v407 = vpop.f32.mrb[0].mxu0
    %408 = vdwg.mxu0
    %v409 = vadd.f32 %v324, %v406
    %410 = vmatprep.subr.mxu0 0.0
    %411 = vmatpush1.msra.mxu0 %v332
    %412 = vmatprep.subr.mxu0 0.0
    %413 = vmatpush1.msra.mxu0 %v333
    %414 = vmatprep.subr.mxu0 0.0
    %415 = vmatpush1.msra.mxu0 %v334
    %416 = vmatprep.subr.mxu0 0.0
    %417 = vmatpush1.msra.mxu0 %v335
    %418 = vmatprep.subr.mxu0 0.0
    %419 = vmatpush1.msra.mxu0 0.0
    %420 = vmatprep.subr.mxu0 0.0
    %421 = vmatpush1.msra.mxu0 0.0
    %422 = vmatprep.subr.mxu0 0.0
    %423 = vmatpush1.msra.mxu0 0.0
    %424 = vmatprep.subr.mxu0 0.0
    %425 = vmatpush1.msra.mxu0 0.0
    %426 = vmatprep.subr.mxu0 0.0
    %427 = vmatpush1.msra.mxu0 0.0
    %428 = vmatprep.subr.mxu0 0.0
    %429 = vmatpush1.msra.mxu0 0.0
    %430 = vmatprep.subr.mxu0 0.0
    %431 = vmatpush1.msra.mxu0 0.0
    %432 = vmatprep.subr.mxu0 0.0
    %433 = vmatpush1.msra.mxu0 0.0
    %434 = vmatprep.subr.mxu0 0.0
    %435 = vmatpush1.msra.mxu0 0.0
    %436 = vmatprep.subr.mxu0 0.0
    %437 = vmatpush1.msra.mxu0 0.0
    %438 = vmatprep.subr.mxu0 0.0
    %439 = vmatpush1.msra.mxu0 0.0
    %440 = vmatprep.subr.mxu0 0.0
    %441 = vmatpush1.msra.mxu0 0.0
    %442 = vmatprep.subr.mxu0 0.0
    %443 = vmatpush1.msra.mxu0 0.0
    %444 = vmatprep.subr.mxu0 0.0
    %445 = vmatpush1.msra.mxu0 0.0
    %446 = vmatprep.subr.mxu0 0.0
    %447 = vmatpush1.msra.mxu0 0.0
    %448 = vmatprep.subr.mxu0 0.0
    %449 = vmatpush1.msra.mxu0 0.0
    %450 = vmatprep.subr.mxu0 0.0
    %451 = vmatpush1.msra.mxu0 0.0
    %452 = vmatprep.subr.mxu0 0.0
    %453 = vmatpush1.msra.mxu0 0.0
    %454 = vmatprep.subr.mxu0 0.0
    %455 = vmatpush1.msra.mxu0 0.0
    %456 = vmatprep.subr.mxu0 0.0
    %457 = vmatpush1.msra.mxu0 0.0
    %458 = vmatprep.subr.mxu0 0.0
    %459 = vmatpush1.msra.mxu0 0.0
    %460 = vmatprep.subr.mxu0 0.0
    %461 = vmatpush1.msra.mxu0 0.0
    %462 = vmatprep.subr.mxu0 0.0
    %463 = vmatpush1.msra.mxu0 0.0
    %464 = vmatprep.subr.mxu0 0.0
    %465 = vmatpush1.msra.mxu0 0.0
    %466 = vmatprep.subr.mxu0 0.0
    %467 = vmatpush1.msra.mxu0 0.0
    %468 = vmatprep.subr.mxu0 0.0
    %469 = vmatpush1.msra.mxu0 0.0
    %470 = vmatprep.subr.mxu0 0.0
    %471 = vmatpush1.msra.mxu0 0.0
    %472 = vmatprep.subr.mxu0 0.0
    %473 = vmatpush1.msra.mxu0 0.0
    %474 = vmatprep.mubr.f32.mxu0 0.0
    %475 = vmatmul.mubr.f32.gmra.mrb[0].mxu0 %v337
    %v476 = vpop.f32.mrb[0].mxu0
    %v477 = vadd.f32 0.0, %v476
    %v478 = vpop.f32.mrb[0].mxu0
    %479 = vdwg.mxu0
    %v481 = vrot.slane %v477, 1
    %v483 = vadd.f32 %v326, %v481
    %v484 = vmul.f32 %v409, 0.5
    %v485 = vtanh.pop %v484
    %v486 = vadd.f32 %v485, 1.0
    %v487 = vmul.f32 %v486, 0.5
    %v488 = vmul.f32 %v487, 0.0
    %v489 = vtanh.pop %v409
    %491 = vrot.lane.b32.xlu0 %v489, 64
    %v492 = vpop.permute.xlu0 %491
    %v494 = vmul.f32 %v487, %v492
    %496 = vrot.lane.b32.xlu0 %v494, 32
    %v497 = vpop.permute.xlu0 %496
    %v499 = vadd.f32 %v488, %v497
    %v500 = vtanh.pop %v499
    %502 = vrot.lane.b32.xlu0 %v500, 64
    %v503 = vpop.permute.xlu0 %502
    %v505 = vmul.f32 %v487, %v503
    %507 = vrot.lane.b32.xlu0 %v505, 32
    %v508 = vpop.permute.xlu0 %507
    %vm510 = vcmask 253952
    %511 = vst.msk [vmem:[#allocation2] sm:$0x1] %vm510, %v508
    %v512 = vmul.f32 %v483, 0.5
    %v513 = vtanh.pop %v512
    %v514 = vadd.f32 %v513, 1.0
    %v515 = vmul.f32 %v514, 0.5
    %v516 = vmul.f32 %v515, 0.0
    %v517 = vtanh.pop %v483
    %519 = vrot.lane.b32.xlu0 %v517, 64
    %v520 = vpop.permute.xlu0 %519
    %v522 = vmul.f32 %v515, %v520
    %524 = vrot.lane.b32.xlu0 %v522, 32
    %v525 = vpop.permute.xlu0 %524
    %v527 = vadd.f32 %v516, %v525
    %v528 = vtanh.pop %v527
    %530 = vrot.lane.b32.xlu0 %v528, 64
    %v531 = vpop.permute.xlu0 %530
    %v533 = vmul.f32 %v515, %v531
    %535 = vrot.lane.b32.xlu0 %v533, 32
    %v536 = vpop.permute.xlu0 %535
    %vm538 = vcmask 261127
    %539 = vst.msk [vmem:[#allocation3] sm:$0x80] %vm538, %v536
    %v540 = vsel %vm253, %v508, 0
    %542 = vmatprep.subr.mxu0 0.0
    %543 = vmatpush1.msra.mxu0 %v328
    %544 = vmatprep.subr.mxu0 0.0
    %545 = vmatpush1.msra.mxu0 %v329
    %546 = vmatprep.subr.mxu0 0.0
    %547 = vmatpush1.msra.mxu0 %v330
    %548 = vmatprep.subr.mxu0 0.0
    %549 = vmatpush1.msra.mxu0 %v331
    %550 = vmatprep.subr.mxu0 0.0
    %551 = vmatpush1.msra.mxu0 0.0
    %552 = vmatprep.subr.mxu0 0.0
    %553 = vmatpush1.msra.mxu0 0.0
    %554 = vmatprep.subr.mxu0 0.0
    %555 = vmatpush1.msra.mxu0 0.0
    %556 = vmatprep.subr.mxu0 0.0
    %557 = vmatpush1.msra.mxu0 0.0
    %558 = vmatprep.subr.mxu0 0.0
    %559 = vmatpush1.msra.mxu0 0.0
    %560 = vmatprep.subr.mxu0 0.0
    %561 = vmatpush1.msra.mxu0 0.0
    %562 = vmatprep.subr.mxu0 0.0
    %563 = vmatpush1.msra.mxu0 0.0
    %564 = vmatprep.subr.mxu0 0.0
    %565 = vmatpush1.msra.mxu0 0.0
    %566 = vmatprep.subr.mxu0 0.0
    %567 = vmatpush1.msra.mxu0 0.0
    %568 = vmatprep.subr.mxu0 0.0
    %569 = vmatpush1.msra.mxu0 0.0
    %570 = vmatprep.subr.mxu0 0.0
    %571 = vmatpush1.msra.mxu0 0.0
    %572 = vmatprep.subr.mxu0 0.0
    %573 = vmatpush1.msra.mxu0 0.0
    %574 = vmatprep.subr.mxu0 0.0
    %575 = vmatpush1.msra.mxu0 0.0
    %576 = vmatprep.subr.mxu0 0.0
    %577 = vmatpush1.msra.mxu0 0.0
    %578 = vmatprep.subr.mxu0 0.0
    %579 = vmatpush1.msra.mxu0 0.0
    %580 = vmatprep.subr.mxu0 0.0
    %581 = vmatpush1.msra.mxu0 0.0
    %582 = vmatprep.subr.mxu0 0.0
    %583 = vmatpush1.msra.mxu0 0.0
    %584 = vmatprep.subr.mxu0 0.0
    %585 = vmatpush1.msra.mxu0 0.0
    %586 = vmatprep.subr.mxu0 0.0
    %587 = vmatpush1.msra.mxu0 0.0
    %588 = vmatprep.subr.mxu0 0.0
    %589 = vmatpush1.msra.mxu0 0.0
    %590 = vmatprep.subr.mxu0 0.0
    %591 = vmatpush1.msra.mxu0 0.0
    %592 = vmatprep.subr.mxu0 0.0
    %593 = vmatpush1.msra.mxu0 0.0
    %594 = vmatprep.subr.mxu0 0.0
    %595 = vmatpush1.msra.mxu0 0.0
    %596 = vmatprep.subr.mxu0 0.0
    %597 = vmatpush1.msra.mxu0 0.0
    %598 = vmatprep.subr.mxu0 0.0
    %599 = vmatpush1.msra.mxu0 0.0
    %600 = vmatprep.subr.mxu0 0.0
    %601 = vmatpush1.msra.mxu0 0.0
    %602 = vmatprep.subr.mxu0 0.0
    %603 = vmatpush1.msra.mxu0 0.0
    %604 = vmatprep.subr.mxu0 0.0
    %605 = vmatpush1.msra.mxu0 0.0
    %606 = vmatprep.mubr.f32.mxu0 0.0
    %607 = vmatmul.mubr.f32.gmra.mrb[0].mxu0 %v540
    %v608 = vpop.f32.mrb[0].mxu0
    %v609 = vadd.f32 0.0, %v608
    %v610 = vpop.f32.mrb[0].mxu0
    %611 = vdwg.mxu0
    %v613 = vrot.slane %v609, 7
    %v615 = vadd.f32 %v324, %v613
    %v616 = vrot.slane %v533, 7
    %617 = vrot.lane.b32.xlu0 %v616, 32
    %v618 = vpop.permute.xlu0 %617
    %v619 = vsel %vm253, %v618, 0
    %621 = vmatprep.subr.mxu0 0.0
    %622 = vmatpush1.msra.mxu0 %v332
    %623 = vmatprep.subr.mxu0 0.0
    %624 = vmatpush1.msra.mxu0 %v333
    %625 = vmatprep.subr.mxu0 0.0
    %626 = vmatpush1.msra.mxu0 %v334
    %627 = vmatprep.subr.mxu0 0.0
    %628 = vmatpush1.msra.mxu0 %v335
    %629 = vmatprep.subr.mxu0 0.0
    %630 = vmatpush1.msra.mxu0 0.0
    %631 = vmatprep.subr.mxu0 0.0
    %632 = vmatpush1.msra.mxu0 0.0
    %633 = vmatprep.subr.mxu0 0.0
    %634 = vmatpush1.msra.mxu0 0.0
    %635 = vmatprep.subr.mxu0 0.0
    %636 = vmatpush1.msra.mxu0 0.0
    %637 = vmatprep.subr.mxu0 0.0
    %638 = vmatpush1.msra.mxu0 0.0
    %639 = vmatprep.subr.mxu0 0.0
    %640 = vmatpush1.msra.mxu0 0.0
    %641 = vmatprep.subr.mxu0 0.0
    %642 = vmatpush1.msra.mxu0 0.0
    %643 = vmatprep.subr.mxu0 0.0
    %644 = vmatpush1.msra.mxu0 0.0
    %645 = vmatprep.subr.mxu0 0.0
    %646 = vmatpush1.msra.mxu0 0.0
    %647 = vmatprep.subr.mxu0 0.0
    %648 = vmatpush1.msra.mxu0 0.0
    %649 = vmatprep.subr.mxu0 0.0
    %650 = vmatpush1.msra.mxu0 0.0
    %651 = vmatprep.subr.mxu0 0.0
    %652 = vmatpush1.msra.mxu0 0.0
    %653 = vmatprep.subr.mxu0 0.0
    %654 = vmatpush1.msra.mxu0 0.0
    %655 = vmatprep.subr.mxu0 0.0
    %656 = vmatpush1.msra.mxu0 0.0
    %657 = vmatprep.subr.mxu0 0.0
    %658 = vmatpush1.msra.mxu0 0.0
    %659 = vmatprep.subr.mxu0 0.0
    %660 = vmatpush1.msra.mxu0 0.0
    %661 = vmatprep.subr.mxu0 0.0
    %662 = vmatpush1.msra.mxu0 0.0
    %663 = vmatprep.subr.mxu0 0.0
    %664 = vmatpush1.msra.mxu0 0.0
    %665 = vmatprep.subr.mxu0 0.0
    %666 = vmatpush1.msra.mxu0 0.0
    %667 = vmatprep.subr.mxu0 0.0
    %668 = vmatpush1.msra.mxu0 0.0
    %669 = vmatprep.subr.mxu0 0.0
    %670 = vmatpush1.msra.mxu0 0.0
    %671 = vmatprep.subr.mxu0 0.0
    %672 = vmatpush1.msra.mxu0 0.0
    %673 = vmatprep.subr.mxu0 0.0
    %674 = vmatpush1.msra.mxu0 0.0
    %675 = vmatprep.subr.mxu0 0.0
    %676 = vmatpush1.msra.mxu0 0.0
    %677 = vmatprep.subr.mxu0 0.0
    %678 = vmatpush1.msra.mxu0 0.0
    %679 = vmatprep.subr.mxu0 0.0
    %680 = vmatpush1.msra.mxu0 0.0
    %681 = vmatprep.subr.mxu0 0.0
    %682 = vmatpush1.msra.mxu0 0.0
    %683 = vmatprep.subr.mxu0 0.0
    %684 = vmatpush1.msra.mxu0 0.0
    %685 = vmatprep.mubr.f32.mxu0 0.0
    %686 = vmatmul.mubr.f32.gmra.mrb[0].mxu0 %v619
    %v687 = vpop.f32.mrb[0].mxu0
    %v688 = vadd.f32 0.0, %v687
    %v689 = vpop.f32.mrb[0].mxu0
    %690 = vdwg.mxu0
    %v692 = vrot.slane %v688, 2
    %v694 = vadd.f32 %v326, %v692
    %v695 = vmul.f32 %v615, 0.5
    %v696 = vtanh.pop %v695
    %v697 = vadd.f32 %v696, 1.0
    %v698 = vmul.f32 %v697, 0.5
    %v700 = vrot.slane %v499, 7
    %v702 = vmul.f32 %v698, %v700
    %v703 = vtanh.pop %v615
    %705 = vrot.lane.b32.xlu0 %v703, 64
    %v706 = vpop.permute.xlu0 %705
    %v708 = vmul.f32 %v698, %v706
    %710 = vrot.lane.b32.xlu0 %v708, 32
    %v711 = vpop.permute.xlu0 %710
    %v713 = vadd.f32 %v702, %v711
    %v714 = vtanh.pop %v713
    %716 = vrot.lane.b32.xlu0 %v714, 64
    %v717 = vpop.permute.xlu0 %716
    %v719 = vmul.f32 %v698, %v717
    %721 = vrot.lane.b32.xlu0 %v719, 32
    %v722 = vpop.permute.xlu0 %721
    %vm724 = vcmask 254977
    %725 = vst.msk [vmem:[#allocation2] sm:$0x2] %vm724, %v722
    %v726 = vmul.f32 %v694, 0.5
    %v727 = vtanh.pop %v726
    %v728 = vadd.f32 %v727, 1.0
    %v729 = vmul.f32 %v728, 0.5
    %v731 = vrot.slane %v527, 1
    %v733 = vmul.f32 %v729, %v731
    %v734 = vtanh.pop %v694
    %736 = vrot.lane.b32.xlu0 %v734, 64
    %v737 = vpop.permute.xlu0 %736
    %v739 = vmul.f32 %v729, %v737
    %741 = vrot.lane.b32.xlu0 %v739, 32
    %v742 = vpop.permute.xlu0 %741
    %v744 = vadd.f32 %v733, %v742
    %v745 = vtanh.pop %v744
    %747 = vrot.lane.b32.xlu0 %v745, 64
    %v748 = vpop.permute.xlu0 %747
    %v750 = vmul.f32 %v729, %v748
    %752 = vrot.lane.b32.xlu0 %v750, 32
    %v753 = vpop.permute.xlu0 %752
    %vm755 = vcmask 260102
    %756 = vst.msk [vmem:[#allocation3] sm:$0x40] %vm755, %v753
    %v757 = vrot.slane %v719, 1
    %758 = vrot.lane.b32.xlu0 %v757, 32
    %v759 = vpop.permute.xlu0 %758
    %v760 = vsel %vm253, %v759, 0
    %762 = vmatprep.subr.mxu0 0.0
    %763 = vmatpush1.msra.mxu0 %v328
    %764 = vmatprep.subr.mxu0 0.0
    %765 = vmatpush1.msra.mxu0 %v329
    %766 = vmatprep.subr.mxu0 0.0
    %767 = vmatpush1.msra.mxu0 %v330
    %768 = vmatprep.subr.mxu0 0.0
    %769 = vmatpush1.msra.mxu0 %v331
    %770 = vmatprep.subr.mxu0 0.0
    %771 = vmatpush1.msra.mxu0 0.0
    %772 = vmatprep.subr.mxu0 0.0
    %773 = vmatpush1.msra.mxu0 0.0
    %774 = vmatprep.subr.mxu0 0.0
    %775 = vmatpush1.msra.mxu0 0.0
    %776 = vmatprep.subr.mxu0 0.0
    %777 = vmatpush1.msra.mxu0 0.0
    %778 = vmatprep.subr.mxu0 0.0
    %779 = vmatpush1.msra.mxu0 0.0
    %780 = vmatprep.subr.mxu0 0.0
    %781 = vmatpush1.msra.mxu0 0.0
    %782 = vmatprep.subr.mxu0 0.0
    %783 = vmatpush1.msra.mxu0 0.0
    %784 = vmatprep.subr.mxu0 0.0
    %785 = vmatpush1.msra.mxu0 0.0
    %786 = vmatprep.subr.mxu0 0.0
    %787 = vmatpush1.msra.mxu0 0.0
    %788 = vmatprep.subr.mxu0 0.0
    %789 = vmatpush1.msra.mxu0 0.0
    %790 = vmatprep.subr.mxu0 0.0
    %791 = vmatpush1.msra.mxu0 0.0
    %792 = vmatprep.subr.mxu0 0.0
    %793 = vmatpush1.msra.mxu0 0.0
    %794 = vmatprep.subr.mxu0 0.0
    %795 = vmatpush1.msra.mxu0 0.0
    %796 = vmatprep.subr.mxu0 0.0
    %797 = vmatpush1.msra.mxu0 0.0
    %798 = vmatprep.subr.mxu0 0.0
    %799 = vmatpush1.msra.mxu0 0.0
    %800 = vmatprep.subr.mxu0 0.0
    %801 = vmatpush1.msra.mxu0 0.0
    %802 = vmatprep.subr.mxu0 0.0
    %803 = vmatpush1.msra.mxu0 0.0
    %804 = vmatprep.subr.mxu0 0.0
    %805 = vmatpush1.msra.mxu0 0.0
    %806 = vmatprep.subr.mxu0 0.0
    %807 = vmatpush1.msra.mxu0 0.0
    %808 = vmatprep.subr.mxu0 0.0
    %809 = vmatpush1.msra.mxu0 0.0
    %810 = vmatprep.subr.mxu0 0.0
    %811 = vmatpush1.msra.mxu0 0.0
    %812 = vmatprep.subr.mxu0 0.0
    %813 = vmatpush1.msra.mxu0 0.0
    %814 = vmatprep.subr.mxu0 0.0
    %815 = vmatpush1.msra.mxu0 0.0
    %816 = vmatprep.subr.mxu0 0.0
    %817 = vmatpush1.msra.mxu0 0.0
    %818 = vmatprep.subr.mxu0 0.0
    %819 = vmatpush1.msra.mxu0 0.0
    %820 = vmatprep.subr.mxu0 0.0
    %821 = vmatpush1.msra.mxu0 0.0
    %822 = vmatprep.subr.mxu0 0.0
    %823 = vmatpush1.msra.mxu0 0.0
    %824 = vmatprep.subr.mxu0 0.0
    %825 = vmatpush1.msra.mxu0 0.0
    %826 = vmatprep.mubr.f32.mxu0 0.0
    %827 = vmatmul.mubr.f32.gmra.mrb[0].mxu0 %v760
    %v828 = vpop.f32.mrb[0].mxu0
    %v829 = vadd.f32 0.0, %v828
    %v830 = vpop.f32.mrb[0].mxu0
    %831 = vdwg.mxu0
    %v833 = vrot.slane %v829, 6
    %v835 = vadd.f32 %v324, %v833
    %v836 = vrot.slane %v750, 6
    %837 = vrot.lane.b32.xlu0 %v836, 32
    %v838 = vpop.permute.xlu0 %837
    %v839 = vsel %vm253, %v838, 0
    %841 = vmatprep.subr.mxu0 0.0
    %842 = vmatpush1.msra.mxu0 %v332
    %843 = vmatprep.subr.mxu0 0.0
    %844 = vmatpush1.msra.mxu0 %v333
    %845 = vmatprep.subr.mxu0 0.0
    %846 = vmatpush1.msra.mxu0 %v334
    %847 = vmatprep.subr.mxu0 0.0
    %848 = vmatpush1.msra.mxu0 %v335
    %849 = vmatprep.subr.mxu0 0.0
    %850 = vmatpush1.msra.mxu0 0.0
    %851 = vmatprep.subr.mxu0 0.0
    %852 = vmatpush1.msra.mxu0 0.0
    %853 = vmatprep.subr.mxu0 0.0
    %854 = vmatpush1.msra.mxu0 0.0
    %855 = vmatprep.subr.mxu0 0.0
    %856 = vmatpush1.msra.mxu0 0.0
    %857 = vmatprep.subr.mxu0 0.0
    %858 = vmatpush1.msra.mxu0 0.0
    %859 = vmatprep.subr.mxu0 0.0
    %860 = vmatpush1.msra.mxu0 0.0
    %861 = vmatprep.subr.mxu0 0.0
    %862 = vmatpush1.msra.mxu0 0.0
    %863 = vmatprep.subr.mxu0 0.0
    %864 = vmatpush1.msra.mxu0 0.0
    %865 = vmatprep.subr.mxu0 0.0
    %866 = vmatpush1.msra.mxu0 0.0
    %867 = vmatprep.subr.mxu0 0.0
    %868 = vmatpush1.msra.mxu0 0.0
    %869 = vmatprep.subr.mxu0 0.0
    %870 = vmatpush1.msra.mxu0 0.0
    %871 = vmatprep.subr.mxu0 0.0
    %872 = vmatpush1.msra.mxu0 0.0
    %873 = vmatprep.subr.mxu0 0.0
    %874 = vmatpush1.msra.mxu0 0.0
    %875 = vmatprep.subr.mxu0 0.0
    %876 = vmatpush1.msra.mxu0 0.0
    %877 = vmatprep.subr.mxu0 0.0
    %878 = vmatpush1.msra.mxu0 0.0
    %879 = vmatprep.subr.mxu0 0.0
    %880 = vmatpush1.msra.mxu0 0.0
    %881 = vmatprep.subr.mxu0 0.0
    %882 = vmatpush1.msra.mxu0 0.0
    %883 = vmatprep.subr.mxu0 0.0
    %884 = vmatpush1.msra.mxu0 0.0
    %885 = vmatprep.subr.mxu0 0.0
    %886 = vmatpush1.msra.mxu0 0.0
    %887 = vmatprep.subr.mxu0 0.0
    %888 = vmatpush1.msra.mxu0 0.0
    %889 = vmatprep.subr.mxu0 0.0
    %890 = vmatpush1.msra.mxu0 0.0
    %891 = vmatprep.subr.mxu0 0.0
    %892 = vmatpush1.msra.mxu0 0.0
    %893 = vmatprep.subr.mxu0 0.0
    %894 = vmatpush1.msra.mxu0 0.0
    %895 = vmatprep.subr.mxu0 0.0
    %896 = vmatpush1.msra.mxu0 0.0
    %897 = vmatprep.subr.mxu0 0.0
    %898 = vmatpush1.msra.mxu0 0.0
    %899 = vmatprep.subr.mxu0 0.0
    %900 = vmatpush1.msra.mxu0 0.0
    %901 = vmatprep.subr.mxu0 0.0
    %902 = vmatpush1.msra.mxu0 0.0
    %903 = vmatprep.subr.mxu0 0.0
    %904 = vmatpush1.msra.mxu0 0.0
    %905 = vmatprep.mubr.f32.mxu0 0.0
    %906 = vmatmul.mubr.f32.gmra.mrb[0].mxu0 %v839
    %v907 = vpop.f32.mrb[0].mxu0
    %v908 = vadd.f32 0.0, %v907
    %v909 = vpop.f32.mrb[0].mxu0
    %910 = vdwg.mxu0
    %v912 = vrot.slane %v908, 3
    %v914 = vadd.f32 %v326, %v912
    %v915 = vmul.f32 %v835, 0.5
    %v916 = vtanh.pop %v915
    %v917 = vadd.f32 %v916, 1.0
    %v918 = vmul.f32 %v917, 0.5
    %v920 = vrot.slane %v713, 7
    %v922 = vmul.f32 %v918, %v920
    %v923 = vtanh.pop %v835
    %925 = vrot.lane.b32.xlu0 %v923, 64
    %v926 = vpop.permute.xlu0 %925
    %v928 = vmul.f32 %v918, %v926
    %930 = vrot.lane.b32.xlu0 %v928, 32
    %v931 = vpop.permute.xlu0 %930
    %v933 = vadd.f32 %v922, %v931
    %v934 = vtanh.pop %v933
    %936 = vrot.lane.b32.xlu0 %v934, 64
    %v937 = vpop.permute.xlu0 %936
    %v939 = vmul.f32 %v918, %v937
    %941 = vrot.lane.b32.xlu0 %v939, 32
    %v942 = vpop.permute.xlu0 %941
    %vm944 = vcmask 256002
    %945 = vst.msk [vmem:[#allocation2] sm:$0x4] %vm944, %v942
    %v946 = vmul.f32 %v914, 0.5
    %v947 = vtanh.pop %v946
    %v948 = vadd.f32 %v947, 1.0
    %v949 = vmul.f32 %v948, 0.5
    %v951 = vrot.slane %v744, 1
    %v953 = vmul.f32 %v949, %v951
    %v954 = vtanh.pop %v914
    %956 = vrot.lane.b32.xlu0 %v954, 64
    %v957 = vpop.permute.xlu0 %956
    %v959 = vmul.f32 %v949, %v957
    %961 = vrot.lane.b32.xlu0 %v959, 32
    %v962 = vpop.permute.xlu0 %961
    %v964 = vadd.f32 %v953, %v962
    %v965 = vtanh.pop %v964
    %967 = vrot.lane.b32.xlu0 %v965, 64
    %v968 = vpop.permute.xlu0 %967
    %v970 = vmul.f32 %v949, %v968
    %972 = vrot.lane.b32.xlu0 %v970, 32
    %v973 = vpop.permute.xlu0 %972
    %vm975 = vcmask 259077
    %976 = vst.msk [vmem:[#allocation3] sm:$0x20] %vm975, %v973
    %v977 = vrot.slane %v939, 2
    %978 = vrot.lane.b32.xlu0 %v977, 32
    %v979 = vpop.permute.xlu0 %978
    %v980 = vsel %vm253, %v979, 0
    %982 = vmatprep.subr.mxu0 0.0
    %983 = vmatpush1.msra.mxu0 %v328
    %984 = vmatprep.subr.mxu0 0.0
    %985 = vmatpush1.msra.mxu0 %v329
    %986 = vmatprep.subr.mxu0 0.0
    %987 = vmatpush1.msra.mxu0 %v330
    %988 = vmatprep.subr.mxu0 0.0
    %989 = vmatpush1.msra.mxu0 %v331
    %990 = vmatprep.subr.mxu0 0.0
    %991 = vmatpush1.msra.mxu0 0.0
    %992 = vmatprep.subr.mxu0 0.0
    %993 = vmatpush1.msra.mxu0 0.0
    %994 = vmatprep.subr.mxu0 0.0
    %995 = vmatpush1.msra.mxu0 0.0
    %996 = vmatprep.subr.mxu0 0.0
    %997 = vmatpush1.msra.mxu0 0.0
    %998 = vmatprep.subr.mxu0 0.0
    %999 = vmatpush1.msra.mxu0 0.0
    %1000 = vmatprep.subr.mxu0 0.0
    %1001 = vmatpush1.msra.mxu0 0.0
    %1002 = vmatprep.subr.mxu0 0.0
    %1003 = vmatpush1.msra.mxu0 0.0
    %1004 = vmatprep.subr.mxu0 0.0
    %1005 = vmatpush1.msra.mxu0 0.0
    %1006 = vmatprep.subr.mxu0 0.0
    %1007 = vmatpush1.msra.mxu0 0.0
    %1008 = vmatprep.subr.mxu0 0.0
    %1009 = vmatpush1.msra.mxu0 0.0
    %1010 = vmatprep.subr.mxu0 0.0
    %1011 = vmatpush1.msra.mxu0 0.0
    %1012 = vmatprep.subr.mxu0 0.0
    %1013 = vmatpush1.msra.mxu0 0.0
    %1014 = vmatprep.subr.mxu0 0.0
    %1015 = vmatpush1.msra.mxu0 0.0
    %1016 = vmatprep.subr.mxu0 0.0
    %1017 = vmatpush1.msra.mxu0 0.0
    %1018 = vmatprep.subr.mxu0 0.0
    %1019 = vmatpush1.msra.mxu0 0.0
    %1020 = vmatprep.subr.mxu0 0.0
    %1021 = vmatpush1.msra.mxu0 0.0
    %1022 = vmatprep.subr.mxu0 0.0
    %1023 = vmatpush1.msra.mxu0 0.0
    %1024 = vmatprep.subr.mxu0 0.0
    %1025 = vmatpush1.msra.mxu0 0.0
    %1026 = vmatprep.subr.mxu0 0.0
    %1027 = vmatpush1.msra.mxu0 0.0
    %1028 = vmatprep.subr.mxu0 0.0
    %1029 = vmatpush1.msra.mxu0 0.0
    %1030 = vmatprep.subr.mxu0 0.0
    %1031 = vmatpush1.msra.mxu0 0.0
    %1032 = vmatprep.subr.mxu0 0.0
    %1033 = vmatpush1.msra.mxu0 0.0
    %1034 = vmatprep.subr.mxu0 0.0
    %1035 = vmatpush1.msra.mxu0 0.0
    %1036 = vmatprep.subr.mxu0 0.0
    %1037 = vmatpush1.msra.mxu0 0.0
    %1038 = vmatprep.subr.mxu0 0.0
    %1039 = vmatpush1.msra.mxu0 0.0
    %1040 = vmatprep.subr.mxu0 0.0
    %1041 = vmatpush1.msra.mxu0 0.0
    %1042 = vmatprep.subr.mxu0 0.0
    %1043 = vmatpush1.msra.mxu0 0.0
    %1044 = vmatprep.subr.mxu0 0.0
    %1045 = vmatpush1.msra.mxu0 0.0
    %1046 = vmatprep.mubr.f32.mxu0 0.0
    %1047 = vmatmul.mubr.f32.gmra.mrb[0].mxu0 %v980
    %v1048 = vpop.f32.mrb[0].mxu0
    %v1049 = vadd.f32 0.0, %v1048
    %v1050 = vpop.f32.mrb[0].mxu0
    %1051 = vdwg.mxu0
    %v1053 = vrot.slane %v1049, 5
    %v1055 = vadd.f32 %v324, %v1053
    %v1056 = vrot.slane %v970, 5
    %1057 = vrot.lane.b32.xlu0 %v1056, 32
    %v1058 = vpop.permute.xlu0 %1057
    %v1059 = vsel %vm253, %v1058, 0
    %1061 = vmatprep.subr.mxu0 0.0
    %1062 = vmatpush1.msra.mxu0 %v332
    %1063 = vmatprep.subr.mxu0 0.0
    %1064 = vmatpush1.msra.mxu0 %v333
    %1065 = vmatprep.subr.mxu0 0.0
    %1066 = vmatpush1.msra.mxu0 %v334
    %1067 = vmatprep.subr.mxu0 0.0
    %1068 = vmatpush1.msra.mxu0 %v335
    %1069 = vmatprep.subr.mxu0 0.0
    %1070 = vmatpush1.msra.mxu0 0.0
    %1071 = vmatprep.subr.mxu0 0.0
    %1072 = vmatpush1.msra.mxu0 0.0
    %1073 = vmatprep.subr.mxu0 0.0
    %1074 = vmatpush1.msra.mxu0 0.0
    %1075 = vmatprep.subr.mxu0 0.0
    %1076 = vmatpush1.msra.mxu0 0.0
    %1077 = vmatprep.subr.mxu0 0.0
    %1078 = vmatpush1.msra.mxu0 0.0
    %1079 = vmatprep.subr.mxu0 0.0
    %1080 = vmatpush1.msra.mxu0 0.0
    %1081 = vmatprep.subr.mxu0 0.0
    %1082 = vmatpush1.msra.mxu0 0.0
    %1083 = vmatprep.subr.mxu0 0.0
    %1084 = vmatpush1.msra.mxu0 0.0
    %1085 = vmatprep.subr.mxu0 0.0
    %1086 = vmatpush1.msra.mxu0 0.0
    %1087 = vmatprep.subr.mxu0 0.0
    %1088 = vmatpush1.msra.mxu0 0.0
    %1089 = vmatprep.subr.mxu0 0.0
    %1090 = vmatpush1.msra.mxu0 0.0
    %1091 = vmatprep.subr.mxu0 0.0
    %1092 = vmatpush1.msra.mxu0 0.0
    %1093 = vmatprep.subr.mxu0 0.0
    %1094 = vmatpush1.msra.mxu0 0.0
    %1095 = vmatprep.subr.mxu0 0.0
    %1096 = vmatpush1.msra.mxu0 0.0
    %1097 = vmatprep.subr.mxu0 0.0
    %1098 = vmatpush1.msra.mxu0 0.0
    %1099 = vmatprep.subr.mxu0 0.0
    %1100 = vmatpush1.msra.mxu0 0.0
    %1101 = vmatprep.subr.mxu0 0.0
    %1102 = vmatpush1.msra.mxu0 0.0
    %1103 = vmatprep.subr.mxu0 0.0
    %1104 = vmatpush1.msra.mxu0 0.0
    %1105 = vmatprep.subr.mxu0 0.0
    %1106 = vmatpush1.msra.mxu0 0.0
    %1107 = vmatprep.subr.mxu0 0.0
    %1108 = vmatpush1.msra.mxu0 0.0
    %1109 = vmatprep.subr.mxu0 0.0
    %1110 = vmatpush1.msra.mxu0 0.0
    %1111 = vmatprep.subr.mxu0 0.0
    %1112 = vmatpush1.msra.mxu0 0.0
    %1113 = vmatprep.subr.mxu0 0.0
    %1114 = vmatpush1.msra.mxu0 0.0
    %1115 = vmatprep.subr.mxu0 0.0
    %1116 = vmatpush1.msra.mxu0 0.0
    %1117 = vmatprep.subr.mxu0 0.0
    %1118 = vmatpush1.msra.mxu0 0.0
    %1119 = vmatprep.subr.mxu0 0.0
    %1120 = vmatpush1.msra.mxu0 0.0
    %1121 = vmatprep.subr.mxu0 0.0
    %1122 = vmatpush1.msra.mxu0 0.0
    %1123 = vmatprep.subr.mxu0 0.0
    %1124 = vmatpush1.msra.mxu0 0.0
    %1125 = vmatprep.mubr.f32.mxu0 0.0
    %1126 = vmatmul.mubr.f32.gmra.mrb[0].mxu0 %v1059
    %v1127 = vpop.f32.mrb[0].mxu0
    %v1128 = vadd.f32 0.0, %v1127
    %v1129 = vpop.f32.mrb[0].mxu0
    %1130 = vdwg.mxu0
    %v1132 = vrot.slane %v1128, 4
    %v1134 = vadd.f32 %v326, %v1132
    %v1135 = vmul.f32 %v1055, 0.5
    %v1136 = vtanh.pop %v1135
    %v1137 = vadd.f32 %v1136, 1.0
    %v1138 = vmul.f32 %v1137, 0.5
    %v1140 = vrot.slane %v933, 7
    %v1142 = vmul.f32 %v1138, %v1140
    %v1143 = vtanh.pop %v1055
    %1145 = vrot.lane.b32.xlu0 %v1143, 64
    %v1146 = vpop.permute.xlu0 %1145
    %v1148 = vmul.f32 %v1138, %v1146
    %1150 = vrot.lane.b32.xlu0 %v1148, 32
    %v1151 = vpop.permute.xlu0 %1150
    %v1153 = vadd.f32 %v1142, %v1151
    %v1154 = vtanh.pop %v1153
    %1156 = vrot.lane.b32.xlu0 %v1154, 64
    %v1157 = vpop.permute.xlu0 %1156
    %v1159 = vmul.f32 %v1138, %v1157
    %1161 = vrot.lane.b32.xlu0 %v1159, 32
    %v1162 = vpop.permute.xlu0 %1161
    %vm1164 = vcmask 257027
    %1165 = vst.msk [vmem:[#allocation2] sm:$0x8] %vm1164, %v1162
    %v1166 = vmul.f32 %v1134, 0.5
    %v1167 = vtanh.pop %v1166
    %v1168 = vadd.f32 %v1167, 1.0
    %v1169 = vmul.f32 %v1168, 0.5
    %v1171 = vrot.slane %v964, 1
    %v1173 = vmul.f32 %v1169, %v1171
    %v1174 = vtanh.pop %v1134
    %1176 = vrot.lane.b32.xlu0 %v1174, 64
    %v1177 = vpop.permute.xlu0 %1176
    %v1179 = vmul.f32 %v1169, %v1177
    %1181 = vrot.lane.b32.xlu0 %v1179, 32
    %v1182 = vpop.permute.xlu0 %1181
    %v1184 = vadd.f32 %v1173, %v1182
    %v1185 = vtanh.pop %v1184
    %1187 = vrot.lane.b32.xlu0 %v1185, 64
    %v1188 = vpop.permute.xlu0 %1187
    %v1190 = vmul.f32 %v1169, %v1188
    %1192 = vrot.lane.b32.xlu0 %v1190, 32
    %v1193 = vpop.permute.xlu0 %1192
    %vm1195 = vcmask 258052
    %1196 = vst.msk [vmem:[#allocation3] sm:$0x10] %vm1195, %v1193
    %v1197 = vrot.slane %v1159, 3
    %1198 = vrot.lane.b32.xlu0 %v1197, 32
    %v1199 = vpop.permute.xlu0 %1198
    %v1200 = vsel %vm253, %v1199, 0
    %1202 = vmatprep.subr.mxu0 0.0
    %1203 = vmatpush1.msra.mxu0 %v328
    %1204 = vmatprep.subr.mxu0 0.0
    %1205 = vmatpush1.msra.mxu0 %v329
    %1206 = vmatprep.subr.mxu0 0.0
    %1207 = vmatpush1.msra.mxu0 %v330
    %1208 = vmatprep.subr.mxu0 0.0
    %1209 = vmatpush1.msra.mxu0 %v331
    %1210 = vmatprep.subr.mxu0 0.0
    %1211 = vmatpush1.msra.mxu0 0.0
    %1212 = vmatprep.subr.mxu0 0.0
    %1213 = vmatpush1.msra.mxu0 0.0
    %1214 = vmatprep.subr.mxu0 0.0
    %1215 = vmatpush1.msra.mxu0 0.0
    %1216 = vmatprep.subr.mxu0 0.0
    %1217 = vmatpush1.msra.mxu0 0.0
    %1218 = vmatprep.subr.mxu0 0.0
    %1219 = vmatpush1.msra.mxu0 0.0
    %1220 = vmatprep.subr.mxu0 0.0
    %1221 = vmatpush1.msra.mxu0 0.0
    %1222 = vmatprep.subr.mxu0 0.0
    %1223 = vmatpush1.msra.mxu0 0.0
    %1224 = vmatprep.subr.mxu0 0.0
    %1225 = vmatpush1.msra.mxu0 0.0
    %1226 = vmatprep.subr.mxu0 0.0
    %1227 = vmatpush1.msra.mxu0 0.0
    %1228 = vmatprep.subr.mxu0 0.0
    %1229 = vmatpush1.msra.mxu0 0.0
    %1230 = vmatprep.subr.mxu0 0.0
    %1231 = vmatpush1.msra.mxu0 0.0
    %1232 = vmatprep.subr.mxu0 0.0
    %1233 = vmatpush1.msra.mxu0 0.0
    %1234 = vmatprep.subr.mxu0 0.0
    %1235 = vmatpush1.msra.mxu0 0.0
    %1236 = vmatprep.subr.mxu0 0.0
    %1237 = vmatpush1.msra.mxu0 0.0
    %1238 = vmatprep.subr.mxu0 0.0
    %1239 = vmatpush1.msra.mxu0 0.0
    %1240 = vmatprep.subr.mxu0 0.0
    %1241 = vmatpush1.msra.mxu0 0.0
    %1242 = vmatprep.subr.mxu0 0.0
    %1243 = vmatpush1.msra.mxu0 0.0
    %1244 = vmatprep.subr.mxu0 0.0
    %1245 = vmatpush1.msra.mxu0 0.0
    %1246 = vmatprep.subr.mxu0 0.0
    %1247 = vmatpush1.msra.mxu0 0.0
    %1248 = vmatprep.subr.mxu0 0.0
    %1249 = vmatpush1.msra.mxu0 0.0
    %1250 = vmatprep.subr.mxu0 0.0
    %1251 = vmatpush1.msra.mxu0 0.0
    %1252 = vmatprep.subr.mxu0 0.0
    %1253 = vmatpush1.msra.mxu0 0.0
    %1254 = vmatprep.subr.mxu0 0.0
    %1255 = vmatpush1.msra.mxu0 0.0
    %1256 = vmatprep.subr.mxu0 0.0
    %1257 = vmatpush1.msra.mxu0 0.0
    %1258 = vmatprep.subr.mxu0 0.0
    %1259 = vmatpush1.msra.mxu0 0.0
    %1260 = vmatprep.subr.mxu0 0.0
    %1261 = vmatpush1.msra.mxu0 0.0
    %1262 = vmatprep.subr.mxu0 0.0
    %1263 = vmatpush1.msra.mxu0 0.0
    %1264 = vmatprep.subr.mxu0 0.0
    %1265 = vmatpush1.msra.mxu0 0.0
    %1266 = vmatprep.mubr.f32.mxu0 0.0
    %1267 = vmatmul.mubr.f32.gmra.mrb[0].mxu0 %v1200
    %v1268 = vpop.f32.mrb[0].mxu0
    %v1269 = vadd.f32 0.0, %v1268
    %v1270 = vpop.f32.mrb[0].mxu0
    %1271 = vdwg.mxu0
    %v1273 = vrot.slane %v1269, 4
    %v1275 = vadd.f32 %v324, %v1273
    %v1276 = vrot.slane %v1190, 4
    %1277 = vrot.lane.b32.xlu0 %v1276, 32
    %v1278 = vpop.permute.xlu0 %1277
    %v1279 = vsel %vm253, %v1278, 0
    %1281 = vmatprep.subr.mxu0 0.0
    %1282 = vmatpush1.msra.mxu0 %v332
    %1283 = vmatprep.subr.mxu0 0.0
    %1284 = vmatpush1.msra.mxu0 %v333
    %1285 = vmatprep.subr.mxu0 0.0
    %1286 = vmatpush1.msra.mxu0 %v334
    %1287 = vmatprep.subr.mxu0 0.0
    %1288 = vmatpush1.msra.mxu0 %v335
    %1289 = vmatprep.subr.mxu0 0.0
    %1290 = vmatpush1.msra.mxu0 0.0
    %1291 = vmatprep.subr.mxu0 0.0
    %1292 = vmatpush1.msra.mxu0 0.0
    %1293 = vmatprep.subr.mxu0 0.0
    %1294 = vmatpush1.msra.mxu0 0.0
    %1295 = vmatprep.subr.mxu0 0.0
    %1296 = vmatpush1.msra.mxu0 0.0
    %1297 = vmatprep.subr.mxu0 0.0
    %1298 = vmatpush1.msra.mxu0 0.0
    %1299 = vmatprep.subr.mxu0 0.0
    %1300 = vmatpush1.msra.mxu0 0.0
    %1301 = vmatprep.subr.mxu0 0.0
    %1302 = vmatpush1.msra.mxu0 0.0
    %1303 = vmatprep.subr.mxu0 0.0
    %1304 = vmatpush1.msra.mxu0 0.0
    %1305 = vmatprep.subr.mxu0 0.0
    %1306 = vmatpush1.msra.mxu0 0.0
    %1307 = vmatprep.subr.mxu0 0.0
    %1308 = vmatpush1.msra.mxu0 0.0
    %1309 = vmatprep.subr.mxu0 0.0
    %1310 = vmatpush1.msra.mxu0 0.0
    %1311 = vmatprep.subr.mxu0 0.0
    %1312 = vmatpush1.msra.mxu0 0.0
    %1313 = vmatprep.subr.mxu0 0.0
    %1314 = vmatpush1.msra.mxu0 0.0
    %1315 = vmatprep.subr.mxu0 0.0
    %1316 = vmatpush1.msra.mxu0 0.0
    %1317 = vmatprep.subr.mxu0 0.0
    %1318 = vmatpush1.msra.mxu0 0.0
    %1319 = vmatprep.subr.mxu0 0.0
    %1320 = vmatpush1.msra.mxu0 0.0
    %1321 = vmatprep.subr.mxu0 0.0
    %1322 = vmatpush1.msra.mxu0 0.0
    %1323 = vmatprep.subr.mxu0 0.0
    %1324 = vmatpush1.msra.mxu0 0.0
    %1325 = vmatprep.subr.mxu0 0.0
    %1326 = vmatpush1.msra.mxu0 0.0
    %1327 = vmatprep.subr.mxu0 0.0
    %1328 = vmatpush1.msra.mxu0 0.0
    %1329 = vmatprep.subr.mxu0 0.0
    %1330 = vmatpush1.msra.mxu0 0.0
    %1331 = vmatprep.subr.mxu0 0.0
    %1332 = vmatpush1.msra.mxu0 0.0
    %1333 = vmatprep.subr.mxu0 0.0
    %1334 = vmatpush1.msra.mxu0 0.0
    %1335 = vmatprep.subr.mxu0 0.0
    %1336 = vmatpush1.msra.mxu0 0.0
    %1337 = vmatprep.subr.mxu0 0.0
    %1338 = vmatpush1.msra.mxu0 0.0
    %1339 = vmatprep.subr.mxu0 0.0
    %1340 = vmatpush1.msra.mxu0 0.0
    %1341 = vmatprep.subr.mxu0 0.0
    %1342 = vmatpush1.msra.mxu0 0.0
    %1343 = vmatprep.subr.mxu0 0.0
    %1344 = vmatpush1.msra.mxu0 0.0
    %1345 = vmatprep.mubr.f32.mxu0 0.0
    %1346 = vmatmul.mubr.f32.gmra.mrb[0].mxu0 %v1279
    %v1347 = vpop.f32.mrb[0].mxu0
    %v1348 = vadd.f32 0.0, %v1347
    %v1349 = vpop.f32.mrb[0].mxu0
    %1350 = vdwg.mxu0
    %v1352 = vrot.slane %v1348, 5
    %v1354 = vadd.f32 %v326, %v1352
    %v1355 = vmul.f32 %v1275, 0.5
    %v1356 = vtanh.pop %v1355
    %v1357 = vadd.f32 %v1356, 1.0
    %v1358 = vmul.f32 %v1357, 0.5
    %v1360 = vrot.slane %v1153, 7
    %v1362 = vmul.f32 %v1358, %v1360
    %v1363 = vtanh.pop %v1275
    %1365 = vrot.lane.b32.xlu0 %v1363, 64
    %v1366 = vpop.permute.xlu0 %1365
    %v1368 = vmul.f32 %v1358, %v1366
    %1370 = vrot.lane.b32.xlu0 %v1368, 32
    %v1371 = vpop.permute.xlu0 %1370
    %v1373 = vadd.f32 %v1362, %v1371
    %v1374 = vtanh.pop %v1373
    %1376 = vrot.lane.b32.xlu0 %v1374, 64
    %v1377 = vpop.permute.xlu0 %1376
    %v1379 = vmul.f32 %v1358, %v1377
    %1381 = vrot.lane.b32.xlu0 %v1379, 32
    %v1382 = vpop.permute.xlu0 %1381
    %1384 = vst.msk [vmem:[#allocation2] sm:$0x10] %vm1195, %v1382
    %v1385 = vmul.f32 %v1354, 0.5
    %v1386 = vtanh.pop %v1385
    %v1387 = vadd.f32 %v1386, 1.0
    %v1388 = vmul.f32 %v1387, 0.5
    %v1390 = vrot.slane %v1184, 1
    %v1392 = vmul.f32 %v1388, %v1390
    %v1393 = vtanh.pop %v1354
    %1395 = vrot.lane.b32.xlu0 %v1393, 64
    %v1396 = vpop.permute.xlu0 %1395
    %v1398 = vmul.f32 %v1388, %v1396
    %1400 = vrot.lane.b32.xlu0 %v1398, 32
    %v1401 = vpop.permute.xlu0 %1400
    %v1403 = vadd.f32 %v1392, %v1401
    %v1404 = vtanh.pop %v1403
    %1406 = vrot.lane.b32.xlu0 %v1404, 64
    %v1407 = vpop.permute.xlu0 %1406
    %v1409 = vmul.f32 %v1388, %v1407
    %1411 = vrot.lane.b32.xlu0 %v1409, 32
    %v1412 = vpop.permute.xlu0 %1411
    %1414 = vst.msk [vmem:[#allocation3] sm:$0x8] %vm1164, %v1412
    %v1415 = vrot.slane %v1379, 4
    %1416 = vrot.lane.b32.xlu0 %v1415, 32
    %v1417 = vpop.permute.xlu0 %1416
    %v1418 = vsel %vm253, %v1417, 0
    %1420 = vmatprep.subr.mxu0 0.0
    %1421 = vmatpush1.msra.mxu0 %v328
    %1422 = vmatprep.subr.mxu0 0.0
    %1423 = vmatpush1.msra.mxu0 %v329
    %1424 = vmatprep.subr.mxu0 0.0
    %1425 = vmatpush1.msra.mxu0 %v330
    %1426 = vmatprep.subr.mxu0 0.0
    %1427 = vmatpush1.msra.mxu0 %v331
    %1428 = vmatprep.subr.mxu0 0.0
    %1429 = vmatpush1.msra.mxu0 0.0
    %1430 = vmatprep.subr.mxu0 0.0
    %1431 = vmatpush1.msra.mxu0 0.0
    %1432 = vmatprep.subr.mxu0 0.0
    %1433 = vmatpush1.msra.mxu0 0.0
    %1434 = vmatprep.subr.mxu0 0.0
    %1435 = vmatpush1.msra.mxu0 0.0
    %1436 = vmatprep.subr.mxu0 0.0
    %1437 = vmatpush1.msra.mxu0 0.0
    %1438 = vmatprep.subr.mxu0 0.0
    %1439 = vmatpush1.msra.mxu0 0.0
    %1440 = vmatprep.subr.mxu0 0.0
    %1441 = vmatpush1.msra.mxu0 0.0
    %1442 = vmatprep.subr.mxu0 0.0
    %1443 = vmatpush1.msra.mxu0 0.0
    %1444 = vmatprep.subr.mxu0 0.0
    %1445 = vmatpush1.msra.mxu0 0.0
    %1446 = vmatprep.subr.mxu0 0.0
    %1447 = vmatpush1.msra.mxu0 0.0
    %1448 = vmatprep.subr.mxu0 0.0
    %1449 = vmatpush1.msra.mxu0 0.0
    %1450 = vmatprep.subr.mxu0 0.0
    %1451 = vmatpush1.msra.mxu0 0.0
    %1452 = vmatprep.subr.mxu0 0.0
    %1453 = vmatpush1.msra.mxu0 0.0
    %1454 = vmatprep.subr.mxu0 0.0
    %1455 = vmatpush1.msra.mxu0 0.0
    %1456 = vmatprep.subr.mxu0 0.0
    %1457 = vmatpush1.msra.mxu0 0.0
    %1458 = vmatprep.subr.mxu0 0.0
    %1459 = vmatpush1.msra.mxu0 0.0
    %1460 = vmatprep.subr.mxu0 0.0
    %1461 = vmatpush1.msra.mxu0 0.0
    %1462 = vmatprep.subr.mxu0 0.0
    %1463 = vmatpush1.msra.mxu0 0.0
    %1464 = vmatprep.subr.mxu0 0.0
    %1465 = vmatpush1.msra.mxu0 0.0
    %1466 = vmatprep.subr.mxu0 0.0
    %1467 = vmatpush1.msra.mxu0 0.0
    %1468 = vmatprep.subr.mxu0 0.0
    %1469 = vmatpush1.msra.mxu0 0.0
    %1470 = vmatprep.subr.mxu0 0.0
    %1471 = vmatpush1.msra.mxu0 0.0
    %1472 = vmatprep.subr.mxu0 0.0
    %1473 = vmatpush1.msra.mxu0 0.0
    %1474 = vmatprep.subr.mxu0 0.0
    %1475 = vmatpush1.msra.mxu0 0.0
    %1476 = vmatprep.subr.mxu0 0.0
    %1477 = vmatpush1.msra.mxu0 0.0
    %1478 = vmatprep.subr.mxu0 0.0
    %1479 = vmatpush1.msra.mxu0 0.0
    %1480 = vmatprep.subr.mxu0 0.0
    %1481 = vmatpush1.msra.mxu0 0.0
    %1482 = vmatprep.subr.mxu0 0.0
    %1483 = vmatpush1.msra.mxu0 0.0
    %1484 = vmatprep.mubr.f32.mxu0 0.0
    %1485 = vmatmul.mubr.f32.gmra.mrb[0].mxu0 %v1418
    %v1486 = vpop.f32.mrb[0].mxu0
    %v1487 = vadd.f32 0.0, %v1486
    %v1488 = vpop.f32.mrb[0].mxu0
    %1489 = vdwg.mxu0
    %v1491 = vrot.slane %v1487, 3
    %v1493 = vadd.f32 %v324, %v1491
    %v1494 = vrot.slane %v1409, 3
    %1495 = vrot.lane.b32.xlu0 %v1494, 32
    %v1496 = vpop.permute.xlu0 %1495
    %v1497 = vsel %vm253, %v1496, 0
    %1499 = vmatprep.subr.mxu0 0.0
    %1500 = vmatpush1.msra.mxu0 %v332
    %1501 = vmatprep.subr.mxu0 0.0
    %1502 = vmatpush1.msra.mxu0 %v333
    %1503 = vmatprep.subr.mxu0 0.0
    %1504 = vmatpush1.msra.mxu0 %v334
    %1505 = vmatprep.subr.mxu0 0.0
    %1506 = vmatpush1.msra.mxu0 %v335
    %1507 = vmatprep.subr.mxu0 0.0
    %1508 = vmatpush1.msra.mxu0 0.0
    %1509 = vmatprep.subr.mxu0 0.0
    %1510 = vmatpush1.msra.mxu0 0.0
    %1511 = vmatprep.subr.mxu0 0.0
    %1512 = vmatpush1.msra.mxu0 0.0
    %1513 = vmatprep.subr.mxu0 0.0
    %1514 = vmatpush1.msra.mxu0 0.0
    %1515 = vmatprep.subr.mxu0 0.0
    %1516 = vmatpush1.msra.mxu0 0.0
    %1517 = vmatprep.subr.mxu0 0.0
    %1518 = vmatpush1.msra.mxu0 0.0
    %1519 = vmatprep.subr.mxu0 0.0
    %1520 = vmatpush1.msra.mxu0 0.0
    %1521 = vmatprep.subr.mxu0 0.0
    %1522 = vmatpush1.msra.mxu0 0.0
    %1523 = vmatprep.subr.mxu0 0.0
    %1524 = vmatpush1.msra.mxu0 0.0
    %1525 = vmatprep.subr.mxu0 0.0
    %1526 = vmatpush1.msra.mxu0 0.0
    %1527 = vmatprep.subr.mxu0 0.0
    %1528 = vmatpush1.msra.mxu0 0.0
    %1529 = vmatprep.subr.mxu0 0.0
    %1530 = vmatpush1.msra.mxu0 0.0
    %1531 = vmatprep.subr.mxu0 0.0
    %1532 = vmatpush1.msra.mxu0 0.0
    %1533 = vmatprep.subr.mxu0 0.0
    %1534 = vmatpush1.msra.mxu0 0.0
    %1535 = vmatprep.subr.mxu0 0.0
    %1536 = vmatpush1.msra.mxu0 0.0
    %1537 = vmatprep.subr.mxu0 0.0
    %1538 = vmatpush1.msra.mxu0 0.0
    %1539 = vmatprep.subr.mxu0 0.0
    %1540 = vmatpush1.msra.mxu0 0.0
    %1541 = vmatprep.subr.mxu0 0.0
    %1542 = vmatpush1.msra.mxu0 0.0
    %1543 = vmatprep.subr.mxu0 0.0
    %1544 = vmatpush1.msra.mxu0 0.0
    %1545 = vmatprep.subr.mxu0 0.0
    %1546 = vmatpush1.msra.mxu0 0.0
    %1547 = vmatprep.subr.mxu0 0.0
    %1548 = vmatpush1.msra.mxu0 0.0
    %1549 = vmatprep.subr.mxu0 0.0
    %1550 = vmatpush1.msra.mxu0 0.0
    %1551 = vmatprep.subr.mxu0 0.0
    %1552 = vmatpush1.msra.mxu0 0.0
    %1553 = vmatprep.subr.mxu0 0.0
    %1554 = vmatpush1.msra.mxu0 0.0
    %1555 = vmatprep.subr.mxu0 0.0
    %1556 = vmatpush1.msra.mxu0 0.0
    %1557 = vmatprep.subr.mxu0 0.0
    %1558 = vmatpush1.msra.mxu0 0.0
    %1559 = vmatprep.subr.mxu0 0.0
    %1560 = vmatpush1.msra.mxu0 0.0
    %1561 = vmatprep.subr.mxu0 0.0
    %1562 = vmatpush1.msra.mxu0 0.0
    %1563 = vmatprep.mubr.f32.mxu0 0.0
    %1564 = vmatmul.mubr.f32.gmra.mrb[0].mxu0 %v1497
    %v1565 = vpop.f32.mrb[0].mxu0
    %v1566 = vadd.f32 0.0, %v1565
    %v1567 = vpop.f32.mrb[0].mxu0
    %1568 = vdwg.mxu0
    %v1570 = vrot.slane %v1566, 6
    %v1572 = vadd.f32 %v326, %v1570
    %v1573 = vmul.f32 %v1493, 0.5
    %v1574 = vtanh.pop %v1573
    %v1575 = vadd.f32 %v1574, 1.0
    %v1576 = vmul.f32 %v1575, 0.5
    %v1578 = vrot.slane %v1373, 7
    %v1580 = vmul.f32 %v1576, %v1578
    %v1581 = vtanh.pop %v1493
    %1583 = vrot.lane.b32.xlu0 %v1581, 64
    %v1584 = vpop.permute.xlu0 %1583
    %v1586 = vmul.f32 %v1576, %v1584
    %1588 = vrot.lane.b32.xlu0 %v1586, 32
    %v1589 = vpop.permute.xlu0 %1588
    %v1591 = vadd.f32 %v1580, %v1589
    %v1592 = vtanh.pop %v1591
    %1594 = vrot.lane.b32.xlu0 %v1592, 64
    %v1595 = vpop.permute.xlu0 %1594
    %v1597 = vmul.f32 %v1576, %v1595
    %1599 = vrot.lane.b32.xlu0 %v1597, 32
    %v1600 = vpop.permute.xlu0 %1599
    %1602 = vst.msk [vmem:[#allocation2] sm:$0x20] %vm975, %v1600
    %v1603 = vmul.f32 %v1572, 0.5
    %v1604 = vtanh.pop %v1603
    %v1605 = vadd.f32 %v1604, 1.0
    %v1606 = vmul.f32 %v1605, 0.5
    %v1608 = vrot.slane %v1403, 1
    %v1610 = vmul.f32 %v1606, %v1608
    %v1611 = vtanh.pop %v1572
    %1613 = vrot.lane.b32.xlu0 %v1611, 64
    %v1614 = vpop.permute.xlu0 %1613
    %v1616 = vmul.f32 %v1606, %v1614
    %1618 = vrot.lane.b32.xlu0 %v1616, 32
    %v1619 = vpop.permute.xlu0 %1618
    %v1621 = vadd.f32 %v1610, %v1619
    %v1622 = vtanh.pop %v1621
    %1624 = vrot.lane.b32.xlu0 %v1622, 64
    %v1625 = vpop.permute.xlu0 %1624
    %v1627 = vmul.f32 %v1606, %v1625
    %1629 = vrot.lane.b32.xlu0 %v1627, 32
    %v1630 = vpop.permute.xlu0 %1629
    %1632 = vst.msk [vmem:[#allocation3] sm:$0x4] %vm944, %v1630
    %v1633 = vrot.slane %v1597, 5
    %1634 = vrot.lane.b32.xlu0 %v1633, 32
    %v1635 = vpop.permute.xlu0 %1634
    %v1636 = vsel %vm253, %v1635, 0
    %1638 = vmatprep.subr.mxu0 0.0
    %1639 = vmatpush1.msra.mxu0 %v328
    %1640 = vmatprep.subr.mxu0 0.0
    %1641 = vmatpush1.msra.mxu0 %v329
    %1642 = vmatprep.subr.mxu0 0.0
    %1643 = vmatpush1.msra.mxu0 %v330
    %1644 = vmatprep.subr.mxu0 0.0
    %1645 = vmatpush1.msra.mxu0 %v331
    %1646 = vmatprep.subr.mxu0 0.0
    %1647 = vmatpush1.msra.mxu0 0.0
    %1648 = vmatprep.subr.mxu0 0.0
    %1649 = vmatpush1.msra.mxu0 0.0
    %1650 = vmatprep.subr.mxu0 0.0
    %1651 = vmatpush1.msra.mxu0 0.0
    %1652 = vmatprep.subr.mxu0 0.0
    %1653 = vmatpush1.msra.mxu0 0.0
    %1654 = vmatprep.subr.mxu0 0.0
    %1655 = vmatpush1.msra.mxu0 0.0
    %1656 = vmatprep.subr.mxu0 0.0
    %1657 = vmatpush1.msra.mxu0 0.0
    %1658 = vmatprep.subr.mxu0 0.0
    %1659 = vmatpush1.msra.mxu0 0.0
    %1660 = vmatprep.subr.mxu0 0.0
    %1661 = vmatpush1.msra.mxu0 0.0
    %1662 = vmatprep.subr.mxu0 0.0
    %1663 = vmatpush1.msra.mxu0 0.0
    %1664 = vmatprep.subr.mxu0 0.0
    %1665 = vmatpush1.msra.mxu0 0.0
    %1666 = vmatprep.subr.mxu0 0.0
    %1667 = vmatpush1.msra.mxu0 0.0
    %1668 = vmatprep.subr.mxu0 0.0
    %1669 = vmatpush1.msra.mxu0 0.0
    %1670 = vmatprep.subr.mxu0 0.0
    %1671 = vmatpush1.msra.mxu0 0.0
    %1672 = vmatprep.subr.mxu0 0.0
    %1673 = vmatpush1.msra.mxu0 0.0
    %1674 = vmatprep.subr.mxu0 0.0
    %1675 = vmatpush1.msra.mxu0 0.0
    %1676 = vmatprep.subr.mxu0 0.0
    %1677 = vmatpush1.msra.mxu0 0.0
    %1678 = vmatprep.subr.mxu0 0.0
    %1679 = vmatpush1.msra.mxu0 0.0
    %1680 = vmatprep.subr.mxu0 0.0
    %1681 = vmatpush1.msra.mxu0 0.0
    %1682 = vmatprep.subr.mxu0 0.0
    %1683 = vmatpush1.msra.mxu0 0.0
    %1684 = vmatprep.subr.mxu0 0.0
    %1685 = vmatpush1.msra.mxu0 0.0
    %1686 = vmatprep.subr.mxu0 0.0
    %1687 = vmatpush1.msra.mxu0 0.0
    %1688 = vmatprep.subr.mxu0 0.0
    %1689 = vmatpush1.msra.mxu0 0.0
    %1690 = vmatprep.subr.mxu0 0.0
    %1691 = vmatpush1.msra.mxu0 0.0
    %1692 = vmatprep.subr.mxu0 0.0
    %1693 = vmatpush1.msra.mxu0 0.0
    %1694 = vmatprep.subr.mxu0 0.0
    %1695 = vmatpush1.msra.mxu0 0.0
    %1696 = vmatprep.subr.mxu0 0.0
    %1697 = vmatpush1.msra.mxu0 0.0
    %1698 = vmatprep.subr.mxu0 0.0
    %1699 = vmatpush1.msra.mxu0 0.0
    %1700 = vmatprep.subr.mxu0 0.0
    %1701 = vmatpush1.msra.mxu0 0.0
    %1702 = vmatprep.mubr.f32.mxu0 0.0
    %1703 = vmatmul.mubr.f32.gmra.mrb[0].mxu0 %v1636
    %v1704 = vpop.f32.mrb[0].mxu0
    %v1705 = vadd.f32 0.0, %v1704
    %v1706 = vpop.f32.mrb[0].mxu0
    %1707 = vdwg.mxu0
    %v1709 = vrot.slane %v1705, 2
    %v1711 = vadd.f32 %v324, %v1709
    %v1712 = vrot.slane %v1627, 2
    %1713 = vrot.lane.b32.xlu0 %v1712, 32
    %v1714 = vpop.permute.xlu0 %1713
    %v1715 = vsel %vm253, %v1714, 0
    %1717 = vmatprep.subr.mxu0 0.0
    %1718 = vmatpush1.msra.mxu0 %v332
    %1719 = vmatprep.subr.mxu0 0.0
    %1720 = vmatpush1.msra.mxu0 %v333
    %1721 = vmatprep.subr.mxu0 0.0
    %1722 = vmatpush1.msra.mxu0 %v334
    %1723 = vmatprep.subr.mxu0 0.0
    %1724 = vmatpush1.msra.mxu0 %v335
    %1725 = vmatprep.subr.mxu0 0.0
    %1726 = vmatpush1.msra.mxu0 0.0
    %1727 = vmatprep.subr.mxu0 0.0
    %1728 = vmatpush1.msra.mxu0 0.0
    %1729 = vmatprep.subr.mxu0 0.0
    %1730 = vmatpush1.msra.mxu0 0.0
    %1731 = vmatprep.subr.mxu0 0.0
    %1732 = vmatpush1.msra.mxu0 0.0
    %1733 = vmatprep.subr.mxu0 0.0
    %1734 = vmatpush1.msra.mxu0 0.0
    %1735 = vmatprep.subr.mxu0 0.0
    %1736 = vmatpush1.msra.mxu0 0.0
    %1737 = vmatprep.subr.mxu0 0.0
    %1738 = vmatpush1.msra.mxu0 0.0
    %1739 = vmatprep.subr.mxu0 0.0
    %1740 = vmatpush1.msra.mxu0 0.0
    %1741 = vmatprep.subr.mxu0 0.0
    %1742 = vmatpush1.msra.mxu0 0.0
    %1743 = vmatprep.subr.mxu0 0.0
    %1744 = vmatpush1.msra.mxu0 0.0
    %1745 = vmatprep.subr.mxu0 0.0
    %1746 = vmatpush1.msra.mxu0 0.0
    %1747 = vmatprep.subr.mxu0 0.0
    %1748 = vmatpush1.msra.mxu0 0.0
    %1749 = vmatprep.subr.mxu0 0.0
    %1750 = vmatpush1.msra.mxu0 0.0
    %1751 = vmatprep.subr.mxu0 0.0
    %1752 = vmatpush1.msra.mxu0 0.0
    %1753 = vmatprep.subr.mxu0 0.0
    %1754 = vmatpush1.msra.mxu0 0.0
    %1755 = vmatprep.subr.mxu0 0.0
    %1756 = vmatpush1.msra.mxu0 0.0
    %1757 = vmatprep.subr.mxu0 0.0
    %1758 = vmatpush1.msra.mxu0 0.0
    %1759 = vmatprep.subr.mxu0 0.0
    %1760 = vmatpush1.msra.mxu0 0.0
    %1761 = vmatprep.subr.mxu0 0.0
    %1762 = vmatpush1.msra.mxu0 0.0
    %1763 = vmatprep.subr.mxu0 0.0
    %1764 = vmatpush1.msra.mxu0 0.0
    %1765 = vmatprep.subr.mxu0 0.0
    %1766 = vmatpush1.msra.mxu0 0.0
    %1767 = vmatprep.subr.mxu0 0.0
    %1768 = vmatpush1.msra.mxu0 0.0
    %1769 = vmatprep.subr.mxu0 0.0
    %1770 = vmatpush1.msra.mxu0 0.0
    %1771 = vmatprep.subr.mxu0 0.0
    %1772 = vmatpush1.msra.mxu0 0.0
    %1773 = vmatprep.subr.mxu0 0.0
    %1774 = vmatpush1.msra.mxu0 0.0
    %1775 = vmatprep.subr.mxu0 0.0
    %1776 = vmatpush1.msra.mxu0 0.0
    %1777 = vmatprep.subr.mxu0 0.0
    %1778 = vmatpush1.msra.mxu0 0.0
    %1779 = vmatprep.subr.mxu0 0.0
    %1780 = vmatpush1.msra.mxu0 0.0
    %1781 = vmatprep.mubr.f32.mxu0 0.0
    %1782 = vmatmul.mubr.f32.gmra.mrb[0].mxu0 %v1715
    %v1783 = vpop.f32.mrb[0].mxu0
    %v1784 = vadd.f32 0.0, %v1783
    %v1785 = vpop.f32.mrb[0].mxu0
    %1786 = vdwg.mxu0
    %v1788 = vrot.slane %v1784, 7
    %v1790 = vadd.f32 %v326, %v1788
    %v1791 = vmul.f32 %v1711, 0.5
    %v1792 = vtanh.pop %v1791
    %v1793 = vadd.f32 %v1792, 1.0
    %v1794 = vmul.f32 %v1793, 0.5
    %v1796 = vrot.slane %v1591, 7
    %v1798 = vmul.f32 %v1794, %v1796
    %v1799 = vtanh.pop %v1711
    %1801 = vrot.lane.b32.xlu0 %v1799, 64
    %v1802 = vpop.permute.xlu0 %1801
    %v1804 = vmul.f32 %v1794, %v1802
    %1806 = vrot.lane.b32.xlu0 %v1804, 32
    %v1807 = vpop.permute.xlu0 %1806
    %v1809 = vadd.f32 %v1798, %v1807
    %v1810 = vtanh.pop %v1809
    %1812 = vrot.lane.b32.xlu0 %v1810, 64
    %v1813 = vpop.permute.xlu0 %1812
    %v1815 = vmul.f32 %v1794, %v1813
    %1817 = vrot.lane.b32.xlu0 %v1815, 32
    %v1818 = vpop.permute.xlu0 %1817
    %1820 = vst.msk [vmem:[#allocation2] sm:$0x40] %vm755, %v1818
    %v1821 = vmul.f32 %v1790, 0.5
    %v1822 = vtanh.pop %v1821
    %v1823 = vadd.f32 %v1822, 1.0
    %v1824 = vmul.f32 %v1823, 0.5
    %v1826 = vrot.slane %v1621, 1
    %v1828 = vmul.f32 %v1824, %v1826
    %v1829 = vtanh.pop %v1790
    %1831 = vrot.lane.b32.xlu0 %v1829, 64
    %v1832 = vpop.permute.xlu0 %1831
    %v1834 = vmul.f32 %v1824, %v1832
    %1836 = vrot.lane.b32.xlu0 %v1834, 32
    %v1837 = vpop.permute.xlu0 %1836
    %v1839 = vadd.f32 %v1828, %v1837
    %v1840 = vtanh.pop %v1839
    %1842 = vrot.lane.b32.xlu0 %v1840, 64
    %v1843 = vpop.permute.xlu0 %1842
    %v1845 = vmul.f32 %v1824, %v1843
    %1847 = vrot.lane.b32.xlu0 %v1845, 32
    %v1848 = vpop.permute.xlu0 %1847
    %1850 = vst.msk [vmem:[#allocation3] sm:$0x2] %vm724, %v1848
    %v1851 = vrot.slane %v1815, 6
    %1852 = vrot.lane.b32.xlu0 %v1851, 32
    %v1853 = vpop.permute.xlu0 %1852
    %v1854 = vsel %vm253, %v1853, 0
    %1856 = vmatprep.subr.mxu0 0.0
    %1857 = vmatpush1.msra.mxu0 %v328
    %1858 = vmatprep.subr.mxu0 0.0
    %1859 = vmatpush1.msra.mxu0 %v329
    %1860 = vmatprep.subr.mxu0 0.0
    %1861 = vmatpush1.msra.mxu0 %v330
    %1862 = vmatprep.subr.mxu0 0.0
    %1863 = vmatpush1.msra.mxu0 %v331
    %1864 = vmatprep.subr.mxu0 0.0
    %1865 = vmatpush1.msra.mxu0 0.0
    %1866 = vmatprep.subr.mxu0 0.0
    %1867 = vmatpush1.msra.mxu0 0.0
    %1868 = vmatprep.subr.mxu0 0.0
    %1869 = vmatpush1.msra.mxu0 0.0
    %1870 = vmatprep.subr.mxu0 0.0
    %1871 = vmatpush1.msra.mxu0 0.0
    %1872 = vmatprep.subr.mxu0 0.0
    %1873 = vmatpush1.msra.mxu0 0.0
    %1874 = vmatprep.subr.mxu0 0.0
    %1875 = vmatpush1.msra.mxu0 0.0
    %1876 = vmatprep.subr.mxu0 0.0
    %1877 = vmatpush1.msra.mxu0 0.0
    %1878 = vmatprep.subr.mxu0 0.0
    %1879 = vmatpush1.msra.mxu0 0.0
    %1880 = vmatprep.subr.mxu0 0.0
    %1881 = vmatpush1.msra.mxu0 0.0
    %1882 = vmatprep.subr.mxu0 0.0
    %1883 = vmatpush1.msra.mxu0 0.0
    %1884 = vmatprep.subr.mxu0 0.0
    %1885 = vmatpush1.msra.mxu0 0.0
    %1886 = vmatprep.subr.mxu0 0.0
    %1887 = vmatpush1.msra.mxu0 0.0
    %1888 = vmatprep.subr.mxu0 0.0
    %1889 = vmatpush1.msra.mxu0 0.0
    %1890 = vmatprep.subr.mxu0 0.0
    %1891 = vmatpush1.msra.mxu0 0.0
    %1892 = vmatprep.subr.mxu0 0.0
    %1893 = vmatpush1.msra.mxu0 0.0
    %1894 = vmatprep.subr.mxu0 0.0
    %1895 = vmatpush1.msra.mxu0 0.0
    %1896 = vmatprep.subr.mxu0 0.0
    %1897 = vmatpush1.msra.mxu0 0.0
    %1898 = vmatprep.subr.mxu0 0.0
    %1899 = vmatpush1.msra.mxu0 0.0
    %1900 = vmatprep.subr.mxu0 0.0
    %1901 = vmatpush1.msra.mxu0 0.0
    %1902 = vmatprep.subr.mxu0 0.0
    %1903 = vmatpush1.msra.mxu0 0.0
    %1904 = vmatprep.subr.mxu0 0.0
    %1905 = vmatpush1.msra.mxu0 0.0
    %1906 = vmatprep.subr.mxu0 0.0
    %1907 = vmatpush1.msra.mxu0 0.0
    %1908 = vmatprep.subr.mxu0 0.0
    %1909 = vmatpush1.msra.mxu0 0.0
    %1910 = vmatprep.subr.mxu0 0.0
    %1911 = vmatpush1.msra.mxu0 0.0
    %1912 = vmatprep.subr.mxu0 0.0
    %1913 = vmatpush1.msra.mxu0 0.0
    %1914 = vmatprep.subr.mxu0 0.0
    %1915 = vmatpush1.msra.mxu0 0.0
    %1916 = vmatprep.subr.mxu0 0.0
    %1917 = vmatpush1.msra.mxu0 0.0
    %1918 = vmatprep.subr.mxu0 0.0
    %1919 = vmatpush1.msra.mxu0 0.0
    %1920 = vmatprep.mubr.f32.mxu0 0.0
    %1921 = vmatmul.mubr.f32.gmra.mrb[0].mxu0 %v1854
    %v1922 = vpop.f32.mrb[0].mxu0
    %v1923 = vadd.f32 0.0, %v1922
    %v1924 = vpop.f32.mrb[0].mxu0
    %1925 = vdwg.mxu0
    %v1927 = vrot.slane %v1923, 1
    %v1929 = vadd.f32 %v324, %v1927
    %v1930 = vrot.slane %v1845, 1
    %1931 = vrot.lane.b32.xlu0 %v1930, 32
    %v1932 = vpop.permute.xlu0 %1931
    %v1933 = vsel %vm253, %v1932, 0
    %1935 = vmatprep.subr.mxu0 0.0
    %1936 = vmatpush1.msra.mxu0 %v332
    %1937 = vmatprep.subr.mxu0 0.0
    %1938 = vmatpush1.msra.mxu0 %v333
    %1939 = vmatprep.subr.mxu0 0.0
    %1940 = vmatpush1.msra.mxu0 %v334
    %1941 = vmatprep.subr.mxu0 0.0
    %1942 = vmatpush1.msra.mxu0 %v335
    %1943 = vmatprep.subr.mxu0 0.0
    %1944 = vmatpush1.msra.mxu0 0.0
    %1945 = vmatprep.subr.mxu0 0.0
    %1946 = vmatpush1.msra.mxu0 0.0
    %1947 = vmatprep.subr.mxu0 0.0
    %1948 = vmatpush1.msra.mxu0 0.0
    %1949 = vmatprep.subr.mxu0 0.0
    %1950 = vmatpush1.msra.mxu0 0.0
    %1951 = vmatprep.subr.mxu0 0.0
    %1952 = vmatpush1.msra.mxu0 0.0
    %1953 = vmatprep.subr.mxu0 0.0
    %1954 = vmatpush1.msra.mxu0 0.0
    %1955 = vmatprep.subr.mxu0 0.0
    %1956 = vmatpush1.msra.mxu0 0.0
    %1957 = vmatprep.subr.mxu0 0.0
    %1958 = vmatpush1.msra.mxu0 0.0
    %1959 = vmatprep.subr.mxu0 0.0
    %1960 = vmatpush1.msra.mxu0 0.0
    %1961 = vmatprep.subr.mxu0 0.0
    %1962 = vmatpush1.msra.mxu0 0.0
    %1963 = vmatprep.subr.mxu0 0.0
    %1964 = vmatpush1.msra.mxu0 0.0
    %1965 = vmatprep.subr.mxu0 0.0
    %1966 = vmatpush1.msra.mxu0 0.0
    %1967 = vmatprep.subr.mxu0 0.0
    %1968 = vmatpush1.msra.mxu0 0.0
    %1969 = vmatprep.subr.mxu0 0.0
    %1970 = vmatpush1.msra.mxu0 0.0
    %1971 = vmatprep.subr.mxu0 0.0
    %1972 = vmatpush1.msra.mxu0 0.0
    %1973 = vmatprep.subr.mxu0 0.0
    %1974 = vmatpush1.msra.mxu0 0.0
    %1975 = vmatprep.subr.mxu0 0.0
    %1976 = vmatpush1.msra.mxu0 0.0
    %1977 = vmatprep.subr.mxu0 0.0
    %1978 = vmatpush1.msra.mxu0 0.0
    %1979 = vmatprep.subr.mxu0 0.0
    %1980 = vmatpush1.msra.mxu0 0.0
    %1981 = vmatprep.subr.mxu0 0.0
    %1982 = vmatpush1.msra.mxu0 0.0
    %1983 = vmatprep.subr.mxu0 0.0
    %1984 = vmatpush1.msra.mxu0 0.0
    %1985 = vmatprep.subr.mxu0 0.0
    %1986 = vmatpush1.msra.mxu0 0.0
    %1987 = vmatprep.subr.mxu0 0.0
    %1988 = vmatpush1.msra.mxu0 0.0
    %1989 = vmatprep.subr.mxu0 0.0
    %1990 = vmatpush1.msra.mxu0 0.0
    %1991 = vmatprep.subr.mxu0 0.0
    %1992 = vmatpush1.msra.mxu0 0.0
    %1993 = vmatprep.subr.mxu0 0.0
    %1994 = vmatpush1.msra.mxu0 0.0
    %1995 = vmatprep.subr.mxu0 0.0
    %1996 = vmatpush1.msra.mxu0 0.0
    %1997 = vmatprep.subr.mxu0 0.0
    %1998 = vmatpush1.msra.mxu0 0.0
    %1999 = vmatprep.mubr.f32.mxu0 0.0
    %2000 = vmatmul.mubr.f32.gmra.mrb[0].mxu0 %v1933
    %v2001 = vpop.f32.mrb[0].mxu0
    %v2002 = vadd.f32 0.0, %v2001
    %v2003 = vpop.f32.mrb[0].mxu0
    %2004 = vdwg.mxu0
    %v2005 = vadd.f32 %v326, %v2002
    %v2006 = vmul.f32 %v1929, 0.5
    %v2007 = vtanh.pop %v2006
    %v2008 = vadd.f32 %v2007, 1.0
    %v2009 = vmul.f32 %v2008, 0.5
    %v2011 = vrot.slane %v1809, 7
    %v2013 = vmul.f32 %v2009, %v2011
    %v2014 = vtanh.pop %v1929
    %2016 = vrot.lane.b32.xlu0 %v2014, 64
    %v2017 = vpop.permute.xlu0 %2016
    %v2019 = vmul.f32 %v2009, %v2017
    %2021 = vrot.lane.b32.xlu0 %v2019, 32
    %v2022 = vpop.permute.xlu0 %2021
    %v2024 = vadd.f32 %v2013, %v2022
    %v2025 = vtanh.pop %v2024
    %2027 = vrot.lane.b32.xlu0 %v2025, 64
    %v2028 = vpop.permute.xlu0 %2027
    %v2030 = vmul.f32 %v2009, %v2028
    %2032 = vrot.lane.b32.xlu0 %v2030, 32
    %v2033 = vpop.permute.xlu0 %2032
    %2035 = vst.msk [vmem:[#allocation2] sm:$0x80] %vm538, %v2033
    %v2036 = vmul.f32 %v2005, 0.5
    %v2037 = vtanh.pop %v2036
    %v2038 = vadd.f32 %v2037, 1.0
    %v2039 = vmul.f32 %v2038, 0.5
    %v2041 = vrot.slane %v1839, 1
    %v2043 = vmul.f32 %v2039, %v2041
    %v2044 = vtanh.pop %v2005
    %2046 = vrot.lane.b32.xlu0 %v2044, 64
    %v2047 = vpop.permute.xlu0 %2046
    %v2049 = vmul.f32 %v2039, %v2047
    %2051 = vrot.lane.b32.xlu0 %v2049, 32
    %v2052 = vpop.permute.xlu0 %2051
    %v2054 = vadd.f32 %v2043, %v2052
    %v2055 = vtanh.pop %v2054
    %2057 = vrot.lane.b32.xlu0 %v2055, 64
    %v2058 = vpop.permute.xlu0 %2057
    %v2060 = vmul.f32 %v2039, %v2058
    %2062 = vrot.lane.b32.xlu0 %v2060, 32
    %v2063 = vpop.permute.xlu0 %2062
    %2065 = vst.msk [vmem:[#allocation3] sm:$0x1] %vm510, %v2063
    %v2066 = vld [vmem:[#allocation2] sm:$0xff]
    %v2067 = vmax.f32 %v2066, 0.0
    %v2068 = vld [vmem:[#allocation3] sm:$0xff]
    %v2069 = vmax.f32 %v2068, 0.0
    %v2070 = vld [vmem:[#allocation11] sm:$0xff]
    %v2071 = vld [vmem:[#allocation11 + $0x8] sm:$0xff]
    %v2072 = vld [vmem:[#allocation11 + $0x10] sm:$0xff]
    %v2073 = vld [vmem:[#allocation11 + $0x18] sm:$0xff]
    %v2074 = vld [vmem:[#allocation12] sm:$0xff]
    %v2075 = vld [vmem:[#allocation12 + $0x8] sm:$0xff]
    %v2076 = vld [vmem:[#allocation12 + $0x10] sm:$0xff]
    %v2077 = vld [vmem:[#allocation12 + $0x18] sm:$0xff]
    %v2079 = vsel %vm253, %v2069, 0
    %2081 = vmatprep.subr.mxu0 0.0
    %2082 = vmatpush1.msra.mxu0 %v2074
    %2083 = vmatprep.subr.mxu0 0.0
    %2084 = vmatpush1.msra.mxu0 %v2075
    %2085 = vmatprep.subr.mxu0 0.0
    %2086 = vmatpush1.msra.mxu0 %v2076
    %2087 = vmatprep.subr.mxu0 0.0
    %2088 = vmatpush1.msra.mxu0 %v2077
    %2089 = vmatprep.subr.mxu0 0.0
    %2090 = vmatpush1.msra.mxu0 0.0
    %2091 = vmatprep.subr.mxu0 0.0
    %2092 = vmatpush1.msra.mxu0 0.0
    %2093 = vmatprep.subr.mxu0 0.0
    %2094 = vmatpush1.msra.mxu0 0.0
    %2095 = vmatprep.subr.mxu0 0.0
    %2096 = vmatpush1.msra.mxu0 0.0
    %2097 = vmatprep.subr.mxu0 0.0
    %2098 = vmatpush1.msra.mxu0 0.0
    %2099 = vmatprep.subr.mxu0 0.0
    %2100 = vmatpush1.msra.mxu0 0.0
    %2101 = vmatprep.subr.mxu0 0.0
    %2102 = vmatpush1.msra.mxu0 0.0
    %2103 = vmatprep.subr.mxu0 0.0
    %2104 = vmatpush1.msra.mxu0 0.0
    %2105 = vmatprep.subr.mxu0 0.0
    %2106 = vmatpush1.msra.mxu0 0.0
    %2107 = vmatprep.subr.mxu0 0.0
    %2108 = vmatpush1.msra.mxu0 0.0
    %2109 = vmatprep.subr.mxu0 0.0
    %2110 = vmatpush1.msra.mxu0 0.0
    %2111 = vmatprep.subr.mxu0 0.0
    %2112 = vmatpush1.msra.mxu0 0.0
    %2113 = vmatprep.subr.mxu0 0.0
    %2114 = vmatpush1.msra.mxu0 0.0
    %2115 = vmatprep.subr.mxu0 0.0
    %2116 = vmatpush1.msra.mxu0 0.0
    %2117 = vmatprep.subr.mxu0 0.0
    %2118 = vmatpush1.msra.mxu0 0.0
    %2119 = vmatprep.subr.mxu0 0.0
    %2120 = vmatpush1.msra.mxu0 0.0
    %2121 = vmatprep.subr.mxu0 0.0
    %2122 = vmatpush1.msra.mxu0 0.0
    %2123 = vmatprep.subr.mxu0 0.0
    %2124 = vmatpush1.msra.mxu0 0.0
    %2125 = vmatprep.subr.mxu0 0.0
    %2126 = vmatpush1.msra.mxu0 0.0
    %2127 = vmatprep.subr.mxu0 0.0
    %2128 = vmatpush1.msra.mxu0 0.0
    %2129 = vmatprep.subr.mxu0 0.0
    %2130 = vmatpush1.msra.mxu0 0.0
    %2131 = vmatprep.subr.mxu0 0.0
    %2132 = vmatpush1.msra.mxu0 0.0
    %2133 = vmatprep.subr.mxu0 0.0
    %2134 = vmatpush1.msra.mxu0 0.0
    %2135 = vmatprep.subr.mxu0 0.0
    %2136 = vmatpush1.msra.mxu0 0.0
    %2137 = vmatprep.subr.mxu0 0.0
    %2138 = vmatpush1.msra.mxu0 0.0
    %2139 = vmatprep.subr.mxu0 0.0
    %2140 = vmatpush1.msra.mxu0 0.0
    %2141 = vmatprep.subr.mxu0 0.0
    %2142 = vmatpush1.msra.mxu0 0.0
    %2143 = vmatprep.subr.mxu0 0.0
    %2144 = vmatpush1.msra.mxu0 0.0
    %2145 = vmatprep.mubr.f32.mxu0 0.0
    %2146 = vmatmul.mubr.f32.gmra.mrb[0].mxu0 %v2079
    %v2147 = vpop.f32.mrb[0].mxu0
    %v2148 = vadd.f32 0.0, %v2147
    %v2149 = vpop.f32.mrb[0].mxu0
    %2150 = vdwg.mxu0
    %v2152 = vsel %vm253, %v2067, 0
    %2154 = vmatprep.subr.mxu0 0.0
    %2155 = vmatpush1.msra.mxu0 %v2070
    %2156 = vmatprep.subr.mxu0 0.0
    %2157 = vmatpush1.msra.mxu0 %v2071
    %2158 = vmatprep.subr.mxu0 0.0
    %2159 = vmatpush1.msra.mxu0 %v2072
    %2160 = vmatprep.subr.mxu0 0.0
    %2161 = vmatpush1.msra.mxu0 %v2073
    %2162 = vmatprep.subr.mxu0 0.0
    %2163 = vmatpush1.msra.mxu0 0.0
    %2164 = vmatprep.subr.mxu0 0.0
    %2165 = vmatpush1.msra.mxu0 0.0
    %2166 = vmatprep.subr.mxu0 0.0
    %2167 = vmatpush1.msra.mxu0 0.0
    %2168 = vmatprep.subr.mxu0 0.0
    %2169 = vmatpush1.msra.mxu0 0.0
    %2170 = vmatprep.subr.mxu0 0.0
    %2171 = vmatpush1.msra.mxu0 0.0
    %2172 = vmatprep.subr.mxu0 0.0
    %2173 = vmatpush1.msra.mxu0 0.0
    %2174 = vmatprep.subr.mxu0 0.0
    %2175 = vmatpush1.msra.mxu0 0.0
    %2176 = vmatprep.subr.mxu0 0.0
    %2177 = vmatpush1.msra.mxu0 0.0
    %2178 = vmatprep.subr.mxu0 0.0
    %2179 = vmatpush1.msra.mxu0 0.0
    %2180 = vmatprep.subr.mxu0 0.0
    %2181 = vmatpush1.msra.mxu0 0.0
    %2182 = vmatprep.subr.mxu0 0.0
    %2183 = vmatpush1.msra.mxu0 0.0
    %2184 = vmatprep.subr.mxu0 0.0
    %2185 = vmatpush1.msra.mxu0 0.0
    %2186 = vmatprep.subr.mxu0 0.0
    %2187 = vmatpush1.msra.mxu0 0.0
    %2188 = vmatprep.subr.mxu0 0.0
    %2189 = vmatpush1.msra.mxu0 0.0
    %2190 = vmatprep.subr.mxu0 0.0
    %2191 = vmatpush1.msra.mxu0 0.0
    %2192 = vmatprep.subr.mxu0 0.0
    %2193 = vmatpush1.msra.mxu0 0.0
    %2194 = vmatprep.subr.mxu0 0.0
    %2195 = vmatpush1.msra.mxu0 0.0
    %2196 = vmatprep.subr.mxu0 0.0
    %2197 = vmatpush1.msra.mxu0 0.0
    %2198 = vmatprep.subr.mxu0 0.0
    %2199 = vmatpush1.msra.mxu0 0.0
    %2200 = vmatprep.subr.mxu0 0.0
    %2201 = vmatpush1.msra.mxu0 0.0
    %2202 = vmatprep.subr.mxu0 0.0
    %2203 = vmatpush1.msra.mxu0 0.0
    %2204 = vmatprep.subr.mxu0 0.0
    %2205 = vmatpush1.msra.mxu0 0.0
    %2206 = vmatprep.subr.mxu0 0.0
    %2207 = vmatpush1.msra.mxu0 0.0
    %2208 = vmatprep.subr.mxu0 0.0
    %2209 = vmatpush1.msra.mxu0 0.0
    %2210 = vmatprep.subr.mxu0 0.0
    %2211 = vmatpush1.msra.mxu0 0.0
    %2212 = vmatprep.subr.mxu0 0.0
    %2213 = vmatpush1.msra.mxu0 0.0
    %2214 = vmatprep.subr.mxu0 0.0
    %2215 = vmatpush1.msra.mxu0 0.0
    %2216 = vmatprep.subr.mxu0 0.0
    %2217 = vmatpush1.msra.mxu0 0.0
    %2218 = vmatprep.mubr.f32.mxu0 0.0
    %2219 = vmatmul.mubr.f32.gmra.mrb[0].mxu0 %v2152
    %v2220 = vpop.f32.mrb[0].mxu0
    %v2221 = vadd.f32 %v2148, %v2220
    %v2222 = vpop.f32.mrb[0].mxu0
    %2223 = vdwg.mxu0
    %v2224 = vmax.f32 %v2221, 0.0
    %v2225 = vld [vmem:[#allocation14] sm:$0xff]
    %v2226 = vld [vmem:[#allocation14 + $0x8] sm:$0xff]
    %v2227 = vld [vmem:[#allocation14 + $0x10] sm:$0xff]
    %v2228 = vld [vmem:[#allocation14 + $0x18] sm:$0xff]
    %v2230 = vsel %vm253, %v2224, 0
    %2232 = vmatprep.subr.mxu0 0.0
    %2233 = vmatpush1.msra.mxu0 %v2225
    %2234 = vmatprep.subr.mxu0 0.0
    %2235 = vmatpush1.msra.mxu0 %v2226
    %2236 = vmatprep.subr.mxu0 0.0
    %2237 = vmatpush1.msra.mxu0 %v2227
    %2238 = vmatprep.subr.mxu0 0.0
    %2239 = vmatpush1.msra.mxu0 %v2228
    %2240 = vmatprep.subr.mxu0 0.0
    %2241 = vmatpush1.msra.mxu0 0.0
    %2242 = vmatprep.subr.mxu0 0.0
    %2243 = vmatpush1.msra.mxu0 0.0
    %2244 = vmatprep.subr.mxu0 0.0
    %2245 = vmatpush1.msra.mxu0 0.0
    %2246 = vmatprep.subr.mxu0 0.0
    %2247 = vmatpush1.msra.mxu0 0.0
    %2248 = vmatprep.subr.mxu0 0.0
    %2249 = vmatpush1.msra.mxu0 0.0
    %2250 = vmatprep.subr.mxu0 0.0
    %2251 = vmatpush1.msra.mxu0 0.0
    %2252 = vmatprep.subr.mxu0 0.0
    %2253 = vmatpush1.msra.mxu0 0.0
    %2254 = vmatprep.subr.mxu0 0.0
    %2255 = vmatpush1.msra.mxu0 0.0
    %2256 = vmatprep.subr.mxu0 0.0
    %2257 = vmatpush1.msra.mxu0 0.0
    %2258 = vmatprep.subr.mxu0 0.0
    %2259 = vmatpush1.msra.mxu0 0.0
    %2260 = vmatprep.subr.mxu0 0.0
    %2261 = vmatpush1.msra.mxu0 0.0
    %2262 = vmatprep.subr.mxu0 0.0
    %2263 = vmatpush1.msra.mxu0 0.0
    %2264 = vmatprep.subr.mxu0 0.0
    %2265 = vmatpush1.msra.mxu0 0.0
    %2266 = vmatprep.subr.mxu0 0.0
    %2267 = vmatpush1.msra.mxu0 0.0
    %2268 = vmatprep.subr.mxu0 0.0
    %2269 = vmatpush1.msra.mxu0 0.0
    %2270 = vmatprep.subr.mxu0 0.0
    %2271 = vmatpush1.msra.mxu0 0.0
    %2272 = vmatprep.subr.mxu0 0.0
    %2273 = vmatpush1.msra.mxu0 0.0
    %2274 = vmatprep.subr.mxu0 0.0
    %2275 = vmatpush1.msra.mxu0 0.0
    %2276 = vmatprep.subr.mxu0 0.0
    %2277 = vmatpush1.msra.mxu0 0.0
    %2278 = vmatprep.subr.mxu0 0.0
    %2279 = vmatpush1.msra.mxu0 0.0
    %2280 = vmatprep.subr.mxu0 0.0
    %2281 = vmatpush1.msra.mxu0 0.0
    %2282 = vmatprep.subr.mxu0 0.0
    %2283 = vmatpush1.msra.mxu0 0.0
    %2284 = vmatprep.subr.mxu0 0.0
    %2285 = vmatpush1.msra.mxu0 0.0
    %2286 = vmatprep.subr.mxu0 0.0
    %2287 = vmatpush1.msra.mxu0 0.0
    %2288 = vmatprep.subr.mxu0 0.0
    %2289 = vmatpush1.msra.mxu0 0.0
    %2290 = vmatprep.subr.mxu0 0.0
    %2291 = vmatpush1.msra.mxu0 0.0
    %2292 = vmatprep.subr.mxu0 0.0
    %2293 = vmatpush1.msra.mxu0 0.0
    %2294 = vmatprep.subr.mxu0 0.0
    %2295 = vmatpush1.msra.mxu0 0.0
    %2296 = vmatprep.mubr.f32.mxu0 0.0
    %2297 = vmatmul.mubr.f32.gmra.mrb[0].mxu0 %v2230
    %v2298 = vpop.f32.mrb[0].mxu0
    %v2299 = vadd.f32 0.0, %v2298
    %v2300 = vpop.f32.mrb[0].mxu0
    %2301 = vdwg.mxu0
    %v2302 = vmax.f32 %v2299, 0.0
    %v2303 = vld [vmem:[%s9] sm:$0xff]
    %v2304 = vld [vmem:[%s9 + $0x8] sm:$0xff]
    %v2305 = vld [vmem:[%s9 + $0x10] sm:$0xff]
    %v2306 = vld [vmem:[%s9 + $0x18] sm:$0xff]
    %v2307 = vld [vmem:[%s9 + $0x20] sm:$0xff]
    %v2308 = vld [vmem:[%s9 + $0x28] sm:$0xff]
    %v2309 = vld [vmem:[%s9 + $0x30] sm:$0xff]
    %v2310 = vld [vmem:[%s9 + $0x38] sm:$0xff]
    %v2311 = vld [vmem:[%s9 + $0x40] sm:$0xff]
    %v2312 = vld [vmem:[%s9 + $0x48] sm:$0xff]
    %v2313 = vld [vmem:[%s9 + $0x50] sm:$0xff]
    %v2314 = vld [vmem:[%s9 + $0x58] sm:$0xff]
    %v2315 = vld [vmem:[%s9 + $0x60] sm:$0xff]
    %v2316 = vld [vmem:[%s9 + $0x68] sm:$0xff]
    %v2317 = vld [vmem:[%s9 + $0x70] sm:$0xff]
    %v2318 = vld [vmem:[%s9 + $0x78] sm:$0xff]
    %2319 = vmatprep.subr.mxu0 0.0
    %2320 = vmatpush1.msra.mxu0 %v2303
    %2321 = vmatprep.subr.mxu0 0.0
    %2322 = vmatpush1.msra.mxu0 %v2304
    %2323 = vmatprep.subr.mxu0 0.0
    %2324 = vmatpush1.msra.mxu0 %v2305
    %2325 = vmatprep.subr.mxu0 0.0
    %2326 = vmatpush1.msra.mxu0 %v2306
    %2327 = vmatprep.subr.mxu0 0.0
    %2328 = vmatpush1.msra.mxu0 %v2307
    %2329 = vmatprep.subr.mxu0 0.0
    %2330 = vmatpush1.msra.mxu0 %v2308
    %2331 = vmatprep.subr.mxu0 0.0
    %2332 = vmatpush1.msra.mxu0 %v2309
    %2333 = vmatprep.subr.mxu0 0.0
    %2334 = vmatpush1.msra.mxu0 %v2310
    %2335 = vmatprep.subr.mxu0 0.0
    %2336 = vmatpush1.msra.mxu0 %v2311
    %2337 = vmatprep.subr.mxu0 0.0
    %2338 = vmatpush1.msra.mxu0 %v2312
    %2339 = vmatprep.subr.mxu0 0.0
    %2340 = vmatpush1.msra.mxu0 %v2313
    %2341 = vmatprep.subr.mxu0 0.0
    %2342 = vmatpush1.msra.mxu0 %v2314
    %2343 = vmatprep.subr.mxu0 0.0
    %2344 = vmatpush1.msra.mxu0 %v2315
    %2345 = vmatprep.subr.mxu0 0.0
    %2346 = vmatpush1.msra.mxu0 %v2316
    %2347 = vmatprep.subr.mxu0 0.0
    %2348 = vmatpush1.msra.mxu0 %v2317
    %2349 = vmatprep.subr.mxu0 0.0
    %2350 = vmatpush1.msra.mxu0 %v2318
    %2351 = vmatprep.subr.mxu0 0.0
    %2352 = vmatpush1.msra.mxu0 0.0
    %2353 = vmatprep.subr.mxu0 0.0
    %2354 = vmatpush1.msra.mxu0 0.0
    %2355 = vmatprep.subr.mxu0 0.0
    %2356 = vmatpush1.msra.mxu0 0.0
    %2357 = vmatprep.subr.mxu0 0.0
    %2358 = vmatpush1.msra.mxu0 0.0
    %2359 = vmatprep.subr.mxu0 0.0
    %2360 = vmatpush1.msra.mxu0 0.0
    %2361 = vmatprep.subr.mxu0 0.0
    %2362 = vmatpush1.msra.mxu0 0.0
    %2363 = vmatprep.subr.mxu0 0.0
    %2364 = vmatpush1.msra.mxu0 0.0
    %2365 = vmatprep.subr.mxu0 0.0
    %2366 = vmatpush1.msra.mxu0 0.0
    %2367 = vmatprep.subr.mxu0 0.0
    %2368 = vmatpush1.msra.mxu0 0.0
    %2369 = vmatprep.subr.mxu0 0.0
    %2370 = vmatpush1.msra.mxu0 0.0
    %2371 = vmatprep.subr.mxu0 0.0
    %2372 = vmatpush1.msra.mxu0 0.0
    %2373 = vmatprep.subr.mxu0 0.0
    %2374 = vmatpush1.msra.mxu0 0.0
    %2375 = vmatprep.subr.mxu0 0.0
    %2376 = vmatpush1.msra.mxu0 0.0
    %2377 = vmatprep.subr.mxu0 0.0
    %2378 = vmatpush1.msra.mxu0 0.0
    %2379 = vmatprep.subr.mxu0 0.0
    %2380 = vmatpush1.msra.mxu0 0.0
    %2381 = vmatprep.subr.mxu0 0.0
    %2382 = vmatpush1.msra.mxu0 0.0
    %2383 = vmatprep.mubr.f32.mxu0 0.0
    %2384 = vmatmul.mubr.f32.gmra.mrb[0].mxu0 %v2302
    %v2385 = vpop.f32.mrb[0].mxu0
    %v2386 = vadd.f32 0.0, %v2385
    %v2387 = vpop.f32.mrb[0].mxu0
    %2388 = vdwg.mxu0
    %vm2389 = vcmp.lt.s32.totalorder %v143, 10
    %v2390 = vsel %vm2389, %v2386, -1e+30
    %2391 = vmax.xlane.f32.xlu0 %v2390
    %v2392 = vpop.xlane.xlu0 %2391
    %v2393 = vsub.f32 %v2390, %v2392
    %v2394 = vmul.f32 %v2393, 1.442695
    %v2395 = vpow.pop %v2394
    %v2396 = vsel %vm2389, %v2395, 0.0
    %2397 = vadd.xlane.f32.xlu0 %v2396
    %v2398 = vpop.xlane.xlu0 %2397
    %v2399 = vrcp.pop %v2398
    %v2400 = vmul.f32 %v2396, %v2399
    %2401 = vst [vmem:[#allocation15] sm:$0xff] %v2400
    %2402 = vmax.xlane.f32.xlu0 %v2400
    %v2403 = vpop.xlane.xlu0 %2402
    %vm2404 = vcmp.eq.f32.partialorder %v2400, %v2403
    %vm2405 = vmand %vm2404, %vm2389
    %v2406 = vcvt.s32.f32 %v143
    %v2407 = vsel %vm2405, %v2406, 128.0
    %2408 = vmin.xlane.f32.xlu0 %v2407
    %v2409 = vpop.xlane.xlu0 %2408
    %v2410 = vcvt.f32.s32.to.zero.pseudo %v2409
    %vm2411 = vcmask 7168
    %2412 = vst.msk [vmem:[%s11] sm:$0xff] %vm2411, %v2410
    // Predicated region
    $region58: #{tpu_custom_call.1} parent=1 // pred_check
      _
    $region59: #{tpu_custom_call.1} parent=1 // pred_check_branch
      %2414 = sbr.rel (0) target = $region61
    $region60: #{tpu_custom_call.1} parent=1 // pred_region
      %s2416 = ssub.s32 128, 128
      %2417 = vsyncadd [#allocation8], %s2416
      %s2419 = sshll.u32 [#allocation15], 4
      %s2420 = int_to_ptr.vmem [resolvable:$true] %s2419
      %2422 = dma.vmem_to_hbm [thread:$0]  %s2420, 128, %s10, [#allocation8]
    $region61: #{tpu_custom_call.1} parent=1 // pred_fallthru
      _
    // Predicated region
    $region62: #{tpu_custom_call.1} parent=1 // pred_check
      _
    $region63: #{tpu_custom_call.1} parent=1 // pred_check_branch
      %2424 = sbr.rel (0) target = $region65
    $region64: #{tpu_custom_call.1} parent=1 // pred_region
      _
    $region65: #{tpu_custom_call.1} parent=1 // pred_fallthru
      _
    // Predicated region
    $region66: #{tpu_custom_call.1} parent=1 // pred_check
      _
    $region67: #{tpu_custom_call.1} parent=1 // pred_check_branch
      %2426 = sbr.rel (0) target = $region69
    $region68: #{tpu_custom_call.1} parent=1 // pred_region
      %2427 = dma.done [#allocation8], 128
    $region69: #{tpu_custom_call.1} parent=1 // pred_fallthru
      _
    // Predicated region
    $region70: #{tpu_custom_call.1} parent=1 // pred_check
      _
    $region71: #{tpu_custom_call.1} parent=1 // pred_check_branch
      %2429 = sbr.rel (0) target = $region73
    $region72: #{tpu_custom_call.1} parent=1 // pred_region
      _
    $region73: #{tpu_custom_call.1} parent=1 // pred_fallthru
      _
    %2430 = vsyncpa [#allocation7], 1
    %2431 = vsyncpa [#allocation10], 1
    %2432 = vsyncpa [#allocation13], 1
    %2433 = vsyncpa [#allocation8], 1

</llo_original>
